<compile_context>
chip_gen: v7x
topology: tpu7x:2x2x1
jax: 0.10.0
libtpu: 0.0.40
codegen_flags: <defaults>
</compile_context>

<pallas_src>
import functools

import jax
import jax.numpy as jnp
from jax.experimental import pallas as pl
from jax.experimental.pallas import tpu as pltpu


# Fixed AgentNN hyper-parameters (from the PyTorch module).
KH1, S1 = 8, 4
KH2, S2 = 4, 2
KH3, S3 = 3, 1
C1, C2, C3 = 32, 64, 64
FC1 = 512


def _conv_dims(h, w):
    h1, w1 = (h - KH1) // S1 + 1, (w - KH1) // S1 + 1
    h2, w2 = (h1 - KH2) // S2 + 1, (w1 - KH2) // S2 + 1
    h3, w3 = (h2 - KH3) // S3 + 1, (w2 - KH3) // S3 + 1
    return (h1, w1), (h2, w2), (h3, w3)


def conv_out_size(input_shape):
    _, h, w = input_shape
    (_, _), (_, _), (h3, w3) = _conv_dims(h, w)
    return C3 * h3 * w3


# ----------------------------- fused Pallas kernel ---------------------------

def _fused_kernel(x1_ref, lw1_ref, b1_ref, lw2_ref, b2_ref, lw3_ref, b3_ref,
                  fw1_ref, fb1_ref, fw2_ref, fb2_ref, out_ref,
                  *, g, ho2, ho3):
    """Whole AgentNN forward for one batch block; everything VMEM-resident."""
    f32, bf16 = jnp.float32, jnp.bfloat16

    # conv1 + ReLU: one dense MXU matmul against the lowered row-Toeplitz
    # weight.  Rows of h1 are (oh1, b_in_block); columns are (ow1, c1).
    h1 = jnp.dot(x1_ref[...], lw1_ref[...], preferred_element_type=f32)
    h1 = jnp.maximum(h1 + b1_ref[...], 0.0)              # (ho1*g, wo1*C1) f32

    # conv2 + ReLU: K-reduction over the KH2 kernel-row taps; the rows needed
    # for output row oh2 / tap i are a contiguous block of g rows of h1.
    n2 = lw2_ref.shape[2]                                # wo2*C2
    h2 = []
    for oh in range(ho2):
        acc = jnp.zeros((g, n2), f32)
        for i in range(KH2):
            r0 = (S2 * oh + i) * g
            blk = h1[r0:r0 + g, :].astype(bf16)
            acc = acc + jnp.dot(blk, lw2_ref[i], preferred_element_type=f32)
        h2.append(jnp.maximum(acc + b2_ref[...], 0.0).astype(bf16))

    # conv3 + ReLU: same tap decomposition (stride 1).
    n3 = lw3_ref.shape[2]                                # wo3*C3
    h3 = []
    for oh in range(ho3):
        acc = jnp.zeros((g, n3), f32)
        for i in range(KH3):
            acc = acc + jnp.dot(h2[S3 * oh + i], lw3_ref[i],
                                preferred_element_type=f32)
        h3.append(jnp.maximum(acc + b3_ref[...], 0.0).astype(bf16))

    # Flatten: lane-concatenate the oh3 row blocks -> feature order
    # (oh3, ow3, c3); fc1's weight was pre-permuted to match (no-op for 1x1).
    z = h3[0] if ho3 == 1 else jnp.concatenate(h3, axis=1)

    # fc1 + ReLU, fc2 (output padded to a lane-dense 128-wide slab).
    h4 = jnp.dot(z, fw1_ref[...], preferred_element_type=f32) + fb1_ref[...]
    h4 = jnp.maximum(h4, 0.0).astype(bf16)
    q = jnp.dot(h4, fw2_ref[...], preferred_element_type=f32) + fb2_ref[...]
    q = q.astype(out_ref.dtype)                          # (g, na_pad)

    outr, na_pad = out_ref.shape
    if outr == g:
        out_ref[...] = q
    elif g == 1:
        out_ref[...] = jnp.broadcast_to(q, (outr, na_pad))
    else:
        out_ref[...] = jnp.zeros((outr, na_pad), out_ref.dtype)
        out_ref[0:g, :] = q


# --------------------------- one-time weight lowering -------------------------

def _lowered_conv_weight(w_oihw, w_in, stride):
    """PyTorch (Cout,Cin,KH,KW) conv weight -> (KH, w_in*Cin, Wo*Cout) so that
    out_row(oh) = sum_i input_row(stride*oh + i) @ result[i]."""
    cout, cin, kh, kw = w_oihw.shape
    wo = (w_in - kw) // stride + 1
    w_t = jnp.transpose(w_oihw, (2, 3, 1, 0))            # (KH, KW, Cin, Cout)
    big = jnp.zeros((kh, w_in, cin, wo, cout), jnp.float32)
    for ow in range(wo):
        big = big.at[:, ow * stride:ow * stride + kw, :, ow, :].set(w_t)
    return big.reshape(kh, w_in * cin, wo * cout)


def prepare_params(params, input_shape, n_actions):
    """Lower PyTorch-layout weights into matmul-ready bf16 matrices (run once)."""
    c, h, w = input_shape
    (ho1, wo1), (ho2, wo2), (ho3, wo3) = _conv_dims(h, w)
    f32, bf16 = jnp.float32, jnp.bfloat16

    lw1 = _lowered_conv_weight(params["c1w"], w, S1).reshape(KH1 * w * c,
                                                             wo1 * C1)
    lw2 = _lowered_conv_weight(params["c2w"], wo1, S2)   # (KH2, wo1*C1, wo2*C2)
    lw3 = _lowered_conv_weight(params["c3w"], wo2, S3)   # (KH3, wo2*C2, wo3*C3)

    b1 = jnp.tile(params["c1b"], wo1).reshape(1, wo1 * C1).astype(f32)
    b2 = jnp.tile(params["c2b"], wo2).reshape(1, wo2 * C2).astype(f32)
    b3 = jnp.tile(params["c3b"], wo3).reshape(1, wo3 * C3).astype(f32)

    # fc1: permute input features from PyTorch's NCHW flatten order
    # (c3, oh3, ow3) to the kernel's (oh3, ow3, c3) layout; store as (K, N).
    fw1 = (params["f1w"].reshape(FC1, C3, ho3, wo3)
           .transpose(2, 3, 1, 0).reshape(ho3 * wo3 * C3, FC1))
    fb1 = params["f1b"].reshape(1, FC1).astype(f32)

    # fc2: pre-transposed and zero-padded to a lane-dense (>=128) output width.
    na_pad = ((max(n_actions, 128) + 127) // 128) * 128
    fw2 = jnp.zeros((FC1, na_pad), f32).at[:, :n_actions].set(params["f2w"].T)
    fb2 = jnp.zeros((1, na_pad), f32).at[:, :n_actions].set(
        params["f2b"][None, :])

    return {
        "lw1": lw1.astype(bf16), "b1": b1,
        "lw2": lw2.astype(bf16), "b2": b2,
        "lw3": lw3.astype(bf16), "b3": b3,
        "fw1": fw1.astype(bf16), "fb1": fb1,
        "fw2": fw2.astype(bf16), "fb2": fb2,
    }


# ------------------------------ fused forward pass ----------------------------

@functools.partial(jax.jit, static_argnames=("n_actions", "batch_block"))
def agent_nn_forward(prepped, x_nchw, *, n_actions, batch_block=1):
    b, c, h, w = x_nchw.shape
    (ho1, wo1), (ho2, wo2), (ho3, wo3) = _conv_dims(h, w)
    k1 = KH1 * w * c
    assert prepped["lw1"].shape[0] == k1, "input shape mismatch with params"

    g = batch_block
    assert b % g == 0, (b, g)
    nb = b // g
    outr = ((max(g, 8) + 7) // 8) * 8                    # sublane-aligned rows
    na_pad = prepped["fw2"].shape[1]

    # XLA glue (fused under jit): NCHW->NHWC, then the conv1 per-output-row
    # input windows laid out (block, oh1, b_in_block) so every in-kernel
    # gather is a contiguous row-block slice.
    x = jnp.transpose(x_nchw, (0, 2, 3, 1))
    wins = [x[:, S1 * i:S1 * i + KH1, :, :].reshape(b, k1) for i in range(ho1)]
    x1 = jnp.stack(wins, axis=1)                          # (b, ho1, k1)
    x1 = (x1.reshape(nb, g, ho1, k1).transpose(0, 2, 1, 3)
            .reshape(nb * ho1 * g, k1).astype(jnp.bfloat16))

    kernel = functools.partial(_fused_kernel, g=g, ho2=ho2, ho3=ho3)

    def _full_spec(arr):
        nd = arr.ndim
        return pl.BlockSpec(arr.shape, lambda i: (0,) * nd)

    weights = (prepped["lw1"], prepped["b1"], prepped["lw2"], prepped["b2"],
               prepped["lw3"], prepped["b3"], prepped["fw1"], prepped["fb1"],
               prepped["fw2"], prepped["fb2"])

    out = pl.pallas_call(
        kernel,
        out_shape=jax.ShapeDtypeStruct((nb * outr, na_pad), jnp.float32),
        grid=(nb,),
        in_specs=[pl.BlockSpec((ho1 * g, k1), lambda i: (i, 0))]
                 + [_full_spec(a) for a in weights],
        out_specs=pl.BlockSpec((outr, na_pad), lambda i: (i, 0)),
        compiler_params=pltpu.CompilerParams(
            dimension_semantics=("parallel",)),
    )(x1, *weights)

    out = out.reshape(nb, outr, na_pad)[:, :g, :n_actions]
    return out.reshape(b, n_actions)


# -------------------------------- parameters ---------------------------------

def init_params(key, input_shape, n_actions):
    c = input_shape[0]
    ks = jax.random.split(key, 10)
    f32 = jnp.float32

    def rnd(k, shape, scale=0.05):
        return (jax.random.normal(k, shape, f32) * scale).astype(f32)

    return {
        "c1w": rnd(ks[0], (C1, c, KH1, KH1)),  "c1b": rnd(ks[1], (C1,)),
        "c2w": rnd(ks[2], (C2, C1, KH2, KH2)), "c2b": rnd(ks[3], (C2,)),
        "c3w": rnd(ks[4], (C3, C2, KH3, KH3)), "c3b": rnd(ks[5], (C3,)),
        "f1w": rnd(ks[6], (FC1, conv_out_size(input_shape))),
        "f1b": rnd(ks[7], (FC1,)),
        "f2w": rnd(ks[8], (n_actions, FC1)),
        "f2b": rnd(ks[9], (n_actions,)),
    }


# ---------------------------- pure-JAX f32 reference --------------------------

def _ref_forward(params, x_nchw):
    hp = jax.lax.Precision.HIGHEST

    def conv(x, w, b, s):
        y = jax.lax.conv_general_dilated(
            x, w, (s, s), "VALID",
            dimension_numbers=("NCHW", "OIHW", "NCHW"), precision=hp)
        return jax.nn.relu(y + b[None, :, None, None])

    x = conv(x_nchw, params["c1w"], params["c1b"], S1)
    x = conv(x, params["c2w"], params["c2b"], S2)
    x = conv(x, params["c3w"], params["c3b"], S3)
    x = x.reshape(x.shape[0], -1)
    x = jax.nn.relu(jnp.dot(x, params["f1w"].T, precision=hp) + params["f1b"])
    return jnp.dot(x, params["f2w"].T, precision=hp) + params["f2b"]


# ----------------------------------- main -------------------------------------

if __name__ == "__main__":
    input_shape = (4, 36, 36)   # (C, H, W): spatial 36 -> 8 -> 3 -> 1
    n_actions = 6
    batch = 2

    key = jax.random.PRNGKey(0)
    kx, kp = jax.random.split(key)
    x = jax.random.normal(kx, (batch,) + input_shape, jnp.float32)
    params = init_params(kp, input_shape, n_actions)
    prepped = prepare_params(params, input_shape, n_actions)

    out = agent_nn_forward(prepped, x, n_actions=n_actions, batch_block=1)
    out = jax.block_until_ready(out)

    ref = jax.block_until_ready(_ref_forward(params, x))
    assert out.shape == (batch, n_actions), out.shape
    max_err = float(jnp.max(jnp.abs(out - ref)))
    # bf16 MXU vs. f32 reference -> relaxed tolerance.
    assert jnp.allclose(out, ref, atol=3e-2, rtol=3e-2), max_err

    print("KERNEL_OK")
</pallas_src>

<mosaic_0001>
module attributes {stable_mosaic.version = 11 : i64} {
  func.func @_fused_kernel(%arg0: i32, %arg1: memref<8x1152xbf16, #tpu.memory_space<vmem>>, %arg2: memref<1152x256xbf16, #tpu.memory_space<vmem>>, %arg3: memref<1x256xf32, #tpu.memory_space<vmem>>, %arg4: memref<4x256x192xbf16, #tpu.memory_space<vmem>>, %arg5: memref<1x192xf32, #tpu.memory_space<vmem>>, %arg6: memref<3x192x64xbf16, #tpu.memory_space<vmem>>, %arg7: memref<1x64xf32, #tpu.memory_space<vmem>>, %arg8: memref<64x512xbf16, #tpu.memory_space<vmem>>, %arg9: memref<1x512xf32, #tpu.memory_space<vmem>>, %arg10: memref<512x128xbf16, #tpu.memory_space<vmem>>, %arg11: memref<1x128xf32, #tpu.memory_space<vmem>>, %arg12: memref<8x128xf32, #tpu.memory_space<vmem>>) attributes {dimension_semantics = [#tpu.dimension_semantics<parallel>], iteration_bounds = array<i64: 2>, scalar_prefetch = 0 : i64, scratch_operands = 0 : i64, tpu.core_type = #tpu.core_type<tc>, window_params = [{transform_indices = @transform_0, window_bounds = array<i64: 8, 1152>}, {pipeline_mode = #tpu.pipeline_mode<synchronous>, transform_indices = @transform_1, window_bounds = array<i64: 1152, 256>}, {pipeline_mode = #tpu.pipeline_mode<synchronous>, transform_indices = @transform_2, window_bounds = array<i64: 1, 256>}, {pipeline_mode = #tpu.pipeline_mode<synchronous>, transform_indices = @transform_3, window_bounds = array<i64: 4, 256, 192>}, {pipeline_mode = #tpu.pipeline_mode<synchronous>, transform_indices = @transform_4, window_bounds = array<i64: 1, 192>}, {pipeline_mode = #tpu.pipeline_mode<synchronous>, transform_indices = @transform_5, window_bounds = array<i64: 3, 192, 64>}, {pipeline_mode = #tpu.pipeline_mode<synchronous>, transform_indices = @transform_6, window_bounds = array<i64: 1, 64>}, {pipeline_mode = #tpu.pipeline_mode<synchronous>, transform_indices = @transform_7, window_bounds = array<i64: 64, 512>}, {pipeline_mode = #tpu.pipeline_mode<synchronous>, transform_indices = @transform_8, window_bounds = array<i64: 1, 512>}, {pipeline_mode = #tpu.pipeline_mode<synchronous>, transform_indices = @transform_9, window_bounds = array<i64: 512, 128>}, {pipeline_mode = #tpu.pipeline_mode<synchronous>, transform_indices = @transform_10, window_bounds = array<i64: 1, 128>}, {transform_indices = @transform_11, window_bounds = array<i64: 8, 128>}]} {
    %c0 = arith.constant 0 : index
    %c0_0 = arith.constant 0 : index
    %0 = vector.load %arg1[%c0, %c0_0] : memref<8x1152xbf16, #tpu.memory_space<vmem>>, vector<8x1152xbf16>
    %c0_1 = arith.constant 0 : index
    %c0_2 = arith.constant 0 : index
    %1 = vector.load %arg2[%c0_1, %c0_2] : memref<1152x256xbf16, #tpu.memory_space<vmem>>, vector<1152x256xbf16>
    %cst = arith.constant dense<0.000000e+00> : vector<8x256xf32>
    %2 = tpu.matmul %0, %1, %cst {dimension_numbers = #tpu.dot_dimension_numbers<[1], [0], [0], [1], [0, 0, 1, 1], [], []>} : vector<8x1152xbf16>, vector<1152x256xbf16>, vector<8x256xf32> -> vector<8x256xf32>
    %c0_3 = arith.constant 0 : index
    %c0_4 = arith.constant 0 : index
    %3 = vector.load %arg3[%c0_3, %c0_4] : memref<1x256xf32, #tpu.memory_space<vmem>>, vector<1x256xf32>
    %4 = vector.broadcast %3 : vector<1x256xf32> to vector<8x256xf32>
    %5 = arith.addf %2, %4 : vector<8x256xf32>
    %cst_5 = arith.constant 0.000000e+00 : f32
    %6 = vector.broadcast %cst_5 : f32 to vector<8x256xf32>
    %7 = arith.maximumf %5, %6 : vector<8x256xf32>
    %cst_6 = arith.constant 0.000000e+00 : f32
    %8 = vector.broadcast %cst_6 : f32 to vector<1x192xf32>
    %9 = vector.extract_strided_slice %7 {offsets = [0, 0], sizes = [1, 256], strides = [1, 1]} : vector<8x256xf32> to vector<1x256xf32>
    %10 = arith.truncf %9 : vector<1x256xf32> to vector<1x256xbf16>
    %c0_7 = arith.constant 0 : index
    %c0_8 = arith.constant 0 : index
    %c0_9 = arith.constant 0 : index
    %11 = vector.load %arg4[%c0_7, %c0_8, %c0_9] : memref<4x256x192xbf16, #tpu.memory_space<vmem>>, vector<1x256x192xbf16>
    %12 = vector.shape_cast %11 : vector<1x256x192xbf16> to vector<256x192xbf16>
    %cst_10 = arith.constant dense<0.000000e+00> : vector<1x192xf32>
    %13 = tpu.matmul %10, %12, %cst_10 {dimension_numbers = #tpu.dot_dimension_numbers<[1], [0], [0], [1], [0, 0, 1, 1], [], []>} : vector<1x256xbf16>, vector<256x192xbf16>, vector<1x192xf32> -> vector<1x192xf32>
    %14 = arith.addf %8, %13 : vector<1x192xf32>
    %15 = vector.extract_strided_slice %7 {offsets = [1, 0], sizes = [1, 256], strides = [1, 1]} : vector<8x256xf32> to vector<1x256xf32>
    %16 = arith.truncf %15 : vector<1x256xf32> to vector<1x256xbf16>
    %c1 = arith.constant 1 : index
    %c0_11 = arith.constant 0 : index
    %c0_12 = arith.constant 0 : index
    %17 = vector.load %arg4[%c1, %c0_11, %c0_12] : memref<4x256x192xbf16, #tpu.memory_space<vmem>>, vector<1x256x192xbf16>
    %18 = vector.shape_cast %17 : vector<1x256x192xbf16> to vector<256x192xbf16>
    %cst_13 = arith.constant dense<0.000000e+00> : vector<1x192xf32>
    %19 = tpu.matmul %16, %18, %cst_13 {dimension_numbers = #tpu.dot_dimension_numbers<[1], [0], [0], [1], [0, 0, 1, 1], [], []>} : vector<1x256xbf16>, vector<256x192xbf16>, vector<1x192xf32> -> vector<1x192xf32>
    %20 = arith.addf %14, %19 : vector<1x192xf32>
    %21 = vector.extract_strided_slice %7 {offsets = [2, 0], sizes = [1, 256], strides = [1, 1]} : vector<8x256xf32> to vector<1x256xf32>
    %22 = arith.truncf %21 : vector<1x256xf32> to vector<1x256xbf16>
    %c2 = arith.constant 2 : index
    %c0_14 = arith.constant 0 : index
    %c0_15 = arith.constant 0 : index
    %23 = vector.load %arg4[%c2, %c0_14, %c0_15] : memref<4x256x192xbf16, #tpu.memory_space<vmem>>, vector<1x256x192xbf16>
    %24 = vector.shape_cast %23 : vector<1x256x192xbf16> to vector<256x192xbf16>
    %cst_16 = arith.constant dense<0.000000e+00> : vector<1x192xf32>
    %25 = tpu.matmul %22, %24, %cst_16 {dimension_numbers = #tpu.dot_dimension_numbers<[1], [0], [0], [1], [0, 0, 1, 1], [], []>} : vector<1x256xbf16>, vector<256x192xbf16>, vector<1x192xf32> -> vector<1x192xf32>
    %26 = arith.addf %20, %25 : vector<1x192xf32>
    %27 = vector.extract_strided_slice %7 {offsets = [3, 0], sizes = [1, 256], strides = [1, 1]} : vector<8x256xf32> to vector<1x256xf32>
    %28 = arith.truncf %27 : vector<1x256xf32> to vector<1x256xbf16>
    %c3 = arith.constant 3 : index
    %c0_17 = arith.constant 0 : index
    %c0_18 = arith.constant 0 : index
    %29 = vector.load %arg4[%c3, %c0_17, %c0_18] : memref<4x256x192xbf16, #tpu.memory_space<vmem>>, vector<1x256x192xbf16>
    %30 = vector.shape_cast %29 : vector<1x256x192xbf16> to vector<256x192xbf16>
    %cst_19 = arith.constant dense<0.000000e+00> : vector<1x192xf32>
    %31 = tpu.matmul %28, %30, %cst_19 {dimension_numbers = #tpu.dot_dimension_numbers<[1], [0], [0], [1], [0, 0, 1, 1], [], []>} : vector<1x256xbf16>, vector<256x192xbf16>, vector<1x192xf32> -> vector<1x192xf32>
    %32 = arith.addf %26, %31 : vector<1x192xf32>
    %c0_20 = arith.constant 0 : index
    %c0_21 = arith.constant 0 : index
    %33 = vector.load %arg5[%c0_20, %c0_21] : memref<1x192xf32, #tpu.memory_space<vmem>>, vector<1x192xf32>
    %34 = arith.addf %32, %33 : vector<1x192xf32>
    %cst_22 = arith.constant 0.000000e+00 : f32
    %35 = vector.broadcast %cst_22 : f32 to vector<1x192xf32>
    %36 = arith.maximumf %34, %35 : vector<1x192xf32>
    %37 = arith.truncf %36 : vector<1x192xf32> to vector<1x192xbf16>
    %cst_23 = arith.constant 0.000000e+00 : f32
    %38 = vector.broadcast %cst_23 : f32 to vector<1x192xf32>
    %39 = vector.extract_strided_slice %7 {offsets = [2, 0], sizes = [1, 256], strides = [1, 1]} : vector<8x256xf32> to vector<1x256xf32>
    %40 = arith.truncf %39 : vector<1x256xf32> to vector<1x256xbf16>
    %c0_24 = arith.constant 0 : index
    %c0_25 = arith.constant 0 : index
    %c0_26 = arith.constant 0 : index
    %41 = vector.load %arg4[%c0_24, %c0_25, %c0_26] : memref<4x256x192xbf16, #tpu.memory_space<vmem>>, vector<1x256x192xbf16>
    %42 = vector.shape_cast %41 : vector<1x256x192xbf16> to vector<256x192xbf16>
    %cst_27 = arith.constant dense<0.000000e+00> : vector<1x192xf32>
    %43 = tpu.matmul %40, %42, %cst_27 {dimension_numbers = #tpu.dot_dimension_numbers<[1], [0], [0], [1], [0, 0, 1, 1], [], []>} : vector<1x256xbf16>, vector<256x192xbf16>, vector<1x192xf32> -> vector<1x192xf32>
    %44 = arith.addf %38, %43 : vector<1x192xf32>
    %45 = vector.extract_strided_slice %7 {offsets = [3, 0], sizes = [1, 256], strides = [1, 1]} : vector<8x256xf32> to vector<1x256xf32>
    %46 = arith.truncf %45 : vector<1x256xf32> to vector<1x256xbf16>
    %c1_28 = arith.constant 1 : index
    %c0_29 = arith.constant 0 : index
    %c0_30 = arith.constant 0 : index
    %47 = vector.load %arg4[%c1_28, %c0_29, %c0_30] : memref<4x256x192xbf16, #tpu.memory_space<vmem>>, vector<1x256x192xbf16>
    %48 = vector.shape_cast %47 : vector<1x256x192xbf16> to vector<256x192xbf16>
    %cst_31 = arith.constant dense<0.000000e+00> : vector<1x192xf32>
    %49 = tpu.matmul %46, %48, %cst_31 {dimension_numbers = #tpu.dot_dimension_numbers<[1], [0], [0], [1], [0, 0, 1, 1], [], []>} : vector<1x256xbf16>, vector<256x192xbf16>, vector<1x192xf32> -> vector<1x192xf32>
    %50 = arith.addf %44, %49 : vector<1x192xf32>
    %51 = vector.extract_strided_slice %7 {offsets = [4, 0], sizes = [1, 256], strides = [1, 1]} : vector<8x256xf32> to vector<1x256xf32>
    %52 = arith.truncf %51 : vector<1x256xf32> to vector<1x256xbf16>
    %c2_32 = arith.constant 2 : index
    %c0_33 = arith.constant 0 : index
    %c0_34 = arith.constant 0 : index
    %53 = vector.load %arg4[%c2_32, %c0_33, %c0_34] : memref<4x256x192xbf16, #tpu.memory_space<vmem>>, vector<1x256x192xbf16>
    %54 = vector.shape_cast %53 : vector<1x256x192xbf16> to vector<256x192xbf16>
    %cst_35 = arith.constant dense<0.000000e+00> : vector<1x192xf32>
    %55 = tpu.matmul %52, %54, %cst_35 {dimension_numbers = #tpu.dot_dimension_numbers<[1], [0], [0], [1], [0, 0, 1, 1], [], []>} : vector<1x256xbf16>, vector<256x192xbf16>, vector<1x192xf32> -> vector<1x192xf32>
    %56 = arith.addf %50, %55 : vector<1x192xf32>
    %57 = vector.extract_strided_slice %7 {offsets = [5, 0], sizes = [1, 256], strides = [1, 1]} : vector<8x256xf32> to vector<1x256xf32>
    %58 = arith.truncf %57 : vector<1x256xf32> to vector<1x256xbf16>
    %c3_36 = arith.constant 3 : index
    %c0_37 = arith.constant 0 : index
    %c0_38 = arith.constant 0 : index
    %59 = vector.load %arg4[%c3_36, %c0_37, %c0_38] : memref<4x256x192xbf16, #tpu.memory_space<vmem>>, vector<1x256x192xbf16>
    %60 = vector.shape_cast %59 : vector<1x256x192xbf16> to vector<256x192xbf16>
    %cst_39 = arith.constant dense<0.000000e+00> : vector<1x192xf32>
    %61 = tpu.matmul %58, %60, %cst_39 {dimension_numbers = #tpu.dot_dimension_numbers<[1], [0], [0], [1], [0, 0, 1, 1], [], []>} : vector<1x256xbf16>, vector<256x192xbf16>, vector<1x192xf32> -> vector<1x192xf32>
    %62 = arith.addf %56, %61 : vector<1x192xf32>
    %c0_40 = arith.constant 0 : index
    %c0_41 = arith.constant 0 : index
    %63 = vector.load %arg5[%c0_40, %c0_41] : memref<1x192xf32, #tpu.memory_space<vmem>>, vector<1x192xf32>
    %64 = arith.addf %62, %63 : vector<1x192xf32>
    %cst_42 = arith.constant 0.000000e+00 : f32
    %65 = vector.broadcast %cst_42 : f32 to vector<1x192xf32>
    %66 = arith.maximumf %64, %65 : vector<1x192xf32>
    %67 = arith.truncf %66 : vector<1x192xf32> to vector<1x192xbf16>
    %cst_43 = arith.constant 0.000000e+00 : f32
    %68 = vector.broadcast %cst_43 : f32 to vector<1x192xf32>
    %69 = vector.extract_strided_slice %7 {offsets = [4, 0], sizes = [1, 256], strides = [1, 1]} : vector<8x256xf32> to vector<1x256xf32>
    %70 = arith.truncf %69 : vector<1x256xf32> to vector<1x256xbf16>
    %c0_44 = arith.constant 0 : index
    %c0_45 = arith.constant 0 : index
    %c0_46 = arith.constant 0 : index
    %71 = vector.load %arg4[%c0_44, %c0_45, %c0_46] : memref<4x256x192xbf16, #tpu.memory_space<vmem>>, vector<1x256x192xbf16>
    %72 = vector.shape_cast %71 : vector<1x256x192xbf16> to vector<256x192xbf16>
    %cst_47 = arith.constant dense<0.000000e+00> : vector<1x192xf32>
    %73 = tpu.matmul %70, %72, %cst_47 {dimension_numbers = #tpu.dot_dimension_numbers<[1], [0], [0], [1], [0, 0, 1, 1], [], []>} : vector<1x256xbf16>, vector<256x192xbf16>, vector<1x192xf32> -> vector<1x192xf32>
    %74 = arith.addf %68, %73 : vector<1x192xf32>
    %75 = vector.extract_strided_slice %7 {offsets = [5, 0], sizes = [1, 256], strides = [1, 1]} : vector<8x256xf32> to vector<1x256xf32>
    %76 = arith.truncf %75 : vector<1x256xf32> to vector<1x256xbf16>
    %c1_48 = arith.constant 1 : index
    %c0_49 = arith.constant 0 : index
    %c0_50 = arith.constant 0 : index
    %77 = vector.load %arg4[%c1_48, %c0_49, %c0_50] : memref<4x256x192xbf16, #tpu.memory_space<vmem>>, vector<1x256x192xbf16>
    %78 = vector.shape_cast %77 : vector<1x256x192xbf16> to vector<256x192xbf16>
    %cst_51 = arith.constant dense<0.000000e+00> : vector<1x192xf32>
    %79 = tpu.matmul %76, %78, %cst_51 {dimension_numbers = #tpu.dot_dimension_numbers<[1], [0], [0], [1], [0, 0, 1, 1], [], []>} : vector<1x256xbf16>, vector<256x192xbf16>, vector<1x192xf32> -> vector<1x192xf32>
    %80 = arith.addf %74, %79 : vector<1x192xf32>
    %81 = vector.extract_strided_slice %7 {offsets = [6, 0], sizes = [1, 256], strides = [1, 1]} : vector<8x256xf32> to vector<1x256xf32>
    %82 = arith.truncf %81 : vector<1x256xf32> to vector<1x256xbf16>
    %c2_52 = arith.constant 2 : index
    %c0_53 = arith.constant 0 : index
    %c0_54 = arith.constant 0 : index
    %83 = vector.load %arg4[%c2_52, %c0_53, %c0_54] : memref<4x256x192xbf16, #tpu.memory_space<vmem>>, vector<1x256x192xbf16>
    %84 = vector.shape_cast %83 : vector<1x256x192xbf16> to vector<256x192xbf16>
    %cst_55 = arith.constant dense<0.000000e+00> : vector<1x192xf32>
    %85 = tpu.matmul %82, %84, %cst_55 {dimension_numbers = #tpu.dot_dimension_numbers<[1], [0], [0], [1], [0, 0, 1, 1], [], []>} : vector<1x256xbf16>, vector<256x192xbf16>, vector<1x192xf32> -> vector<1x192xf32>
    %86 = arith.addf %80, %85 : vector<1x192xf32>
    %87 = vector.extract_strided_slice %7 {offsets = [7, 0], sizes = [1, 256], strides = [1, 1]} : vector<8x256xf32> to vector<1x256xf32>
    %88 = arith.truncf %87 : vector<1x256xf32> to vector<1x256xbf16>
    %c3_56 = arith.constant 3 : index
    %c0_57 = arith.constant 0 : index
    %c0_58 = arith.constant 0 : index
    %89 = vector.load %arg4[%c3_56, %c0_57, %c0_58] : memref<4x256x192xbf16, #tpu.memory_space<vmem>>, vector<1x256x192xbf16>
    %90 = vector.shape_cast %89 : vector<1x256x192xbf16> to vector<256x192xbf16>
    %cst_59 = arith.constant dense<0.000000e+00> : vector<1x192xf32>
    %91 = tpu.matmul %88, %90, %cst_59 {dimension_numbers = #tpu.dot_dimension_numbers<[1], [0], [0], [1], [0, 0, 1, 1], [], []>} : vector<1x256xbf16>, vector<256x192xbf16>, vector<1x192xf32> -> vector<1x192xf32>
    %92 = arith.addf %86, %91 : vector<1x192xf32>
    %c0_60 = arith.constant 0 : index
    %c0_61 = arith.constant 0 : index
    %93 = vector.load %arg5[%c0_60, %c0_61] : memref<1x192xf32, #tpu.memory_space<vmem>>, vector<1x192xf32>
    %94 = arith.addf %92, %93 : vector<1x192xf32>
    %cst_62 = arith.constant 0.000000e+00 : f32
    %95 = vector.broadcast %cst_62 : f32 to vector<1x192xf32>
    %96 = arith.maximumf %94, %95 : vector<1x192xf32>
    %97 = arith.truncf %96 : vector<1x192xf32> to vector<1x192xbf16>
    %cst_63 = arith.constant 0.000000e+00 : f32
    %98 = vector.broadcast %cst_63 : f32 to vector<1x64xf32>
    %c0_64 = arith.constant 0 : index
    %c0_65 = arith.constant 0 : index
    %c0_66 = arith.constant 0 : index
    %99 = vector.load %arg6[%c0_64, %c0_65, %c0_66] : memref<3x192x64xbf16, #tpu.memory_space<vmem>>, vector<1x192x64xbf16>
    %100 = vector.shape_cast %99 : vector<1x192x64xbf16> to vector<192x64xbf16>
    %cst_67 = arith.constant dense<0.000000e+00> : vector<1x64xf32>
    %101 = tpu.matmul %37, %100, %cst_67 {dimension_numbers = #tpu.dot_dimension_numbers<[1], [0], [0], [1], [0, 0, 1, 1], [], []>} : vector<1x192xbf16>, vector<192x64xbf16>, vector<1x64xf32> -> vector<1x64xf32>
    %102 = arith.addf %98, %101 : vector<1x64xf32>
    %c1_68 = arith.constant 1 : index
    %c0_69 = arith.constant 0 : index
    %c0_70 = arith.constant 0 : index
    %103 = vector.load %arg6[%c1_68, %c0_69, %c0_70] : memref<3x192x64xbf16, #tpu.memory_space<vmem>>, vector<1x192x64xbf16>
    %104 = vector.shape_cast %103 : vector<1x192x64xbf16> to vector<192x64xbf16>
    %cst_71 = arith.constant dense<0.000000e+00> : vector<1x64xf32>
    %105 = tpu.matmul %67, %104, %cst_71 {dimension_numbers = #tpu.dot_dimension_numbers<[1], [0], [0], [1], [0, 0, 1, 1], [], []>} : vector<1x192xbf16>, vector<192x64xbf16>, vector<1x64xf32> -> vector<1x64xf32>
    %106 = arith.addf %102, %105 : vector<1x64xf32>
    %c2_72 = arith.constant 2 : index
    %c0_73 = arith.constant 0 : index
    %c0_74 = arith.constant 0 : index
    %107 = vector.load %arg6[%c2_72, %c0_73, %c0_74] : memref<3x192x64xbf16, #tpu.memory_space<vmem>>, vector<1x192x64xbf16>
    %108 = vector.shape_cast %107 : vector<1x192x64xbf16> to vector<192x64xbf16>
    %cst_75 = arith.constant dense<0.000000e+00> : vector<1x64xf32>
    %109 = tpu.matmul %97, %108, %cst_75 {dimension_numbers = #tpu.dot_dimension_numbers<[1], [0], [0], [1], [0, 0, 1, 1], [], []>} : vector<1x192xbf16>, vector<192x64xbf16>, vector<1x64xf32> -> vector<1x64xf32>
    %110 = arith.addf %106, %109 : vector<1x64xf32>
    %c0_76 = arith.constant 0 : index
    %c0_77 = arith.constant 0 : index
    %111 = vector.load %arg7[%c0_76, %c0_77] : memref<1x64xf32, #tpu.memory_space<vmem>>, vector<1x64xf32>
    %112 = arith.addf %110, %111 : vector<1x64xf32>
    %cst_78 = arith.constant 0.000000e+00 : f32
    %113 = vector.broadcast %cst_78 : f32 to vector<1x64xf32>
    %114 = arith.maximumf %112, %113 : vector<1x64xf32>
    %115 = arith.truncf %114 : vector<1x64xf32> to vector<1x64xbf16>
    %c0_79 = arith.constant 0 : index
    %c0_80 = arith.constant 0 : index
    %116 = vector.load %arg8[%c0_79, %c0_80] : memref<64x512xbf16, #tpu.memory_space<vmem>>, vector<64x512xbf16>
    %cst_81 = arith.constant dense<0.000000e+00> : vector<1x512xf32>
    %117 = tpu.matmul %115, %116, %cst_81 {dimension_numbers = #tpu.dot_dimension_numbers<[1], [0], [0], [1], [0, 0, 1, 1], [], []>} : vector<1x64xbf16>, vector<64x512xbf16>, vector<1x512xf32> -> vector<1x512xf32>
    %c0_82 = arith.constant 0 : index
    %c0_83 = arith.constant 0 : index
    %118 = vector.load %arg9[%c0_82, %c0_83] : memref<1x512xf32, #tpu.memory_space<vmem>>, vector<1x512xf32>
    %119 = arith.addf %117, %118 : vector<1x512xf32>
    %cst_84 = arith.constant 0.000000e+00 : f32
    %120 = vector.broadcast %cst_84 : f32 to vector<1x512xf32>
    %121 = arith.maximumf %119, %120 : vector<1x512xf32>
    %122 = arith.truncf %121 : vector<1x512xf32> to vector<1x512xbf16>
    %c0_85 = arith.constant 0 : index
    %c0_86 = arith.constant 0 : index
    %123 = vector.load %arg10[%c0_85, %c0_86] : memref<512x128xbf16, #tpu.memory_space<vmem>>, vector<512x128xbf16>
    %cst_87 = arith.constant dense<0.000000e+00> : vector<1x128xf32>
    %124 = tpu.matmul %122, %123, %cst_87 {dimension_numbers = #tpu.dot_dimension_numbers<[1], [0], [0], [1], [0, 0, 1, 1], [], []>} : vector<1x512xbf16>, vector<512x128xbf16>, vector<1x128xf32> -> vector<1x128xf32>
    %c0_88 = arith.constant 0 : index
    %c0_89 = arith.constant 0 : index
    %125 = vector.load %arg11[%c0_88, %c0_89] : memref<1x128xf32, #tpu.memory_space<vmem>>, vector<1x128xf32>
    %126 = arith.addf %124, %125 : vector<1x128xf32>
    %127 = vector.shape_cast %126 : vector<1x128xf32> to vector<1x128xf32>
    %128 = vector.broadcast %127 : vector<1x128xf32> to vector<8x128xf32>
    %c0_90 = arith.constant 0 : index
    %c0_91 = arith.constant 0 : index
    %129 = vector.load %arg12[%c0_90, %c0_91] : memref<8x128xf32, #tpu.memory_space<vmem>>, vector<8x128xf32>
    tpu.vector_store %arg12[%c0_90, %c0_91], %128 {strides = array<i32>} : memref<8x128xf32, #tpu.memory_space<vmem>>, vector<8x128xf32>,
    return
  }
  func.func @transform_0(%arg0: i32) -> (i32, i32) {
    %c0_i32 = arith.constant 0 : i32
    %c0_i32_0 = arith.constant 0 : i32
    return %arg0, %c0_i32 : i32, i32
  }
  func.func @transform_1(%arg0: i32) -> (i32, i32) {
    %c0_i32 = arith.constant 0 : i32
    %c0_i32_0 = arith.constant 0 : i32
    %c0_i32_1 = arith.constant 0 : i32
    return %c0_i32, %c0_i32_0 : i32, i32
  }
  func.func @transform_2(%arg0: i32) -> (i32, i32) {
    %c0_i32 = arith.constant 0 : i32
    %c0_i32_0 = arith.constant 0 : i32
    %c0_i32_1 = arith.constant 0 : i32
    return %c0_i32, %c0_i32_0 : i32, i32
  }
  func.func @transform_3(%arg0: i32) -> (i32, i32, i32) {
    %c0_i32 = arith.constant 0 : i32
    %c0_i32_0 = arith.constant 0 : i32
    %c0_i32_1 = arith.constant 0 : i32
    %c0_i32_2 = arith.constant 0 : i32
    return %c0_i32, %c0_i32_0, %c0_i32_1 : i32, i32, i32
  }
  func.func @transform_4(%arg0: i32) -> (i32, i32) {
    %c0_i32 = arith.constant 0 : i32
    %c0_i32_0 = arith.constant 0 : i32
    %c0_i32_1 = arith.constant 0 : i32
    return %c0_i32, %c0_i32_0 : i32, i32
  }
  func.func @transform_5(%arg0: i32) -> (i32, i32, i32) {
    %c0_i32 = arith.constant 0 : i32
    %c0_i32_0 = arith.constant 0 : i32
    %c0_i32_1 = arith.constant 0 : i32
    %c0_i32_2 = arith.constant 0 : i32
    return %c0_i32, %c0_i32_0, %c0_i32_1 : i32, i32, i32
  }
  func.func @transform_6(%arg0: i32) -> (i32, i32) {
    %c0_i32 = arith.constant 0 : i32
    %c0_i32_0 = arith.constant 0 : i32
    %c0_i32_1 = arith.constant 0 : i32
    return %c0_i32, %c0_i32_0 : i32, i32
  }
  func.func @transform_7(%arg0: i32) -> (i32, i32) {
    %c0_i32 = arith.constant 0 : i32
    %c0_i32_0 = arith.constant 0 : i32
    %c0_i32_1 = arith.constant 0 : i32
    return %c0_i32, %c0_i32_0 : i32, i32
  }
  func.func @transform_8(%arg0: i32) -> (i32, i32) {
    %c0_i32 = arith.constant 0 : i32
    %c0_i32_0 = arith.constant 0 : i32
    %c0_i32_1 = arith.constant 0 : i32
    return %c0_i32, %c0_i32_0 : i32, i32
  }
  func.func @transform_9(%arg0: i32) -> (i32, i32) {
    %c0_i32 = arith.constant 0 : i32
    %c0_i32_0 = arith.constant 0 : i32
    %c0_i32_1 = arith.constant 0 : i32
    return %c0_i32, %c0_i32_0 : i32, i32
  }
  func.func @transform_10(%arg0: i32) -> (i32, i32) {
    %c0_i32 = arith.constant 0 : i32
    %c0_i32_0 = arith.constant 0 : i32
    %c0_i32_1 = arith.constant 0 : i32
    return %c0_i32, %c0_i32_0 : i32, i32
  }
  func.func @transform_11(%arg0: i32) -> (i32, i32) {
    %c0_i32 = arith.constant 0 : i32
    %c0_i32_0 = arith.constant 0 : i32
    return %arg0, %c0_i32 : i32, i32
  }
}

</mosaic_0001>

<llo_original>
// kernel: agent_nn_forward.1
$region0: #{agent_nn_forward.1}
  #allocation0 [shape = 'u32[]', space=smem, size = 0x4, offset = 0x4, fixed_abs, tag = 'smem constant byte address 0x4 - core index']
  #allocation1 [shape = 'u32[144,128]{1,0:T(1,128)}', space=vmem, size = 0x12000, scoped, tag = 'internal scratch']
  %s0 = inlined_call_operand.vmem [shape: bf16[16,1152], index: 0, kind: input, shape index: {}]
  %s1 = inlined_call_operand.vmem [shape: bf16[1152,256], index: 1, kind: input, shape index: {}]
  %s2 = inlined_call_operand.vmem [shape: f32[1,256], index: 2, kind: input, shape index: {}]
  %s3 = inlined_call_operand.vmem [shape: bf16[4,256,192], index: 3, kind: input, shape index: {}]
  %s4 = inlined_call_operand.vmem [shape: f32[1,192], index: 4, kind: input, shape index: {}]
  %s5 = inlined_call_operand.vmem [shape: bf16[3,192,64], index: 5, kind: input, shape index: {}]
  %s6 = inlined_call_operand.vmem [shape: f32[1,64], index: 6, kind: input, shape index: {}]
  %s7 = inlined_call_operand.vmem [shape: bf16[64,512], index: 7, kind: input, shape index: {}]
  %s8 = inlined_call_operand.vmem [shape: f32[1,512], index: 8, kind: input, shape index: {}]
  %s9 = inlined_call_operand.vmem [shape: bf16[512,128], index: 9, kind: input, shape index: {}]
  %s10 = inlined_call_operand.vmem [shape: f32[1,128], index: 10, kind: input, shape index: {}]
  %s11 = inlined_call_operand.vmem [shape: f32[16,128], index: 11, kind: output, shape index: {}]
  %s12 = sld [smem:[#allocation0]]
  $region77: #{agent_nn_forward.1} parent=0
    _
  %s14 = ssub.s32 1, %s12
  %s15 = scalar_select 0, %s14, %s12
  loop: start=0, step=1, limit=4
  $region2: #{agent_nn_forward.1} parent=0 // loop_pre_header
    _
  $region3: #{agent_nn_forward.1} parent=0 // loop_header
    %s17 = sphi 0, %s21
    %p18 = scmp.ge.s32.totalorder %s17, 4
    %s27 = sphi 0, %s29
    %s30 = sphi 0, %s27
    %s31 = sphi 0, %s30
    %s47 = sphi 0, %s31
    %s51 = sphi 0, %s51
    %s53 = sphi 0, %s51
    %s54 = sphi 0, %s53
    %s68 = sphi 0, %s54
    %s72 = sphi 0, %s72
    %s74 = sphi 0, %s72
    %s75 = sphi 0, %s74
    %s89 = sphi 0, %s75
    %s93 = sphi 0, %s93
    %s95 = sphi 0, %s93
    %s96 = sphi 0, %s95
    %s110 = sphi 0, %s96
    %s114 = sphi 0, %s114
    %s116 = sphi 0, %s114
    %s117 = sphi 0, %s116
    %s131 = sphi 0, %s117
    %s135 = sphi 0, %s135
    %s137 = sphi 0, %s135
    %s138 = sphi 0, %s137
    %s152 = sphi 0, %s138
    %s156 = sphi 0, %s156
    %s158 = sphi 0, %s156
    %s159 = sphi 0, %s158
    %s173 = sphi 0, %s159
    %s177 = sphi 0, %s177
    %s179 = sphi 0, %s177
    %s180 = sphi 0, %s179
    %s194 = sphi 0, %s180
    %s198 = sphi 0, %s198
    %s200 = sphi 0, %s198
    %s201 = sphi 0, %s200
    %s215 = sphi 0, %s201
    %s219 = sphi 0, %s219
    %s221 = sphi 0, %s219
    %s222 = sphi 0, %s221
    %s236 = sphi 0, %s222
    %s240 = sphi 0, %s240
    %s242 = sphi 0, %s240
    %s243 = sphi 0, %s242
    %s257 = sphi 0, %s243
    %s263 = sphi 0, %s265
    %s266 = sphi 0, %s263
    %s267 = sphi 0, %s266
    %s283 = sphi 0, %s267
  $region4: #{agent_nn_forward.1} parent=0 // loop_header_branch
    %20 = sbr.rel (%p18) target = $region8
  $region5: #{agent_nn_forward.1} parent=0 // loop_body
    %s22 = ssub.s32 %s17, 1
    %s23 = ssub.s32 %s17, 2
    %s24 = sadd.s32 %s17, 1
    %s25 = ssub.s32 %s17, %s24
    %p26 = scmp.eq.s32.totalorder %s25, 0
    %s28 = sadd.s32 %s27, 1
    %s29 = scalar_select %p26, %s27, %s28
    %p32 = pneg %p26
    %p33 = scmp.eq.s32.totalorder %s17, 1
    %p34 = por %p32, %p33
    %p35 = scmp.ne.s32.totalorder %s27, %s30
    %p36 = scmp.eq.s32.totalorder %s17, 0
    %p37 = por %p35, %p36
    %p38 = scmp.ne.s32.totalorder %s27, %s30
    %p39 = scmp.eq.s32.totalorder %s22, 1
    %p40 = por %p38, %p39
    %p41 = scmp.ne.s32.totalorder %s30, %s31
    %p42 = scmp.eq.s32.totalorder %s22, 0
    %p43 = por %p41, %p42
    %p44 = scmp.ne.s32.totalorder %s30, %s31
    %p45 = scmp.eq.s32.totalorder %s23, 1
    %p46 = por %p44, %p45
    %p48 = scmp.ne.s32.totalorder %s31, %s47
    %p49 = scmp.eq.s32.totalorder %s23, 0
    %p50 = por %p48, %p49
    %s52 = sadd.s32 %s51, 1
    %p55 = scmp.eq.s32.totalorder %s17, 1
    %p56 = scmp.ne.s32.totalorder %s51, %s53
    %p57 = scmp.eq.s32.totalorder %s17, 0
    %p58 = por %p56, %p57
    %p59 = scmp.ne.s32.totalorder %s51, %s53
    %p60 = scmp.eq.s32.totalorder %s22, 1
    %p61 = por %p59, %p60
    %p62 = scmp.ne.s32.totalorder %s53, %s54
    %p63 = scmp.eq.s32.totalorder %s22, 0
    %p64 = por %p62, %p63
    %p65 = scmp.ne.s32.totalorder %s53, %s54
    %p66 = scmp.eq.s32.totalorder %s23, 1
    %p67 = por %p65, %p66
    %p69 = scmp.ne.s32.totalorder %s54, %s68
    %p70 = scmp.eq.s32.totalorder %s23, 0
    %p71 = por %p69, %p70
    %s73 = sadd.s32 %s72, 1
    %p76 = scmp.eq.s32.totalorder %s17, 1
    %p77 = scmp.ne.s32.totalorder %s72, %s74
    %p78 = scmp.eq.s32.totalorder %s17, 0
    %p79 = por %p77, %p78
    %p80 = scmp.ne.s32.totalorder %s72, %s74
    %p81 = scmp.eq.s32.totalorder %s22, 1
    %p82 = por %p80, %p81
    %p83 = scmp.ne.s32.totalorder %s74, %s75
    %p84 = scmp.eq.s32.totalorder %s22, 0
    %p85 = por %p83, %p84
    %p86 = scmp.ne.s32.totalorder %s74, %s75
    %p87 = scmp.eq.s32.totalorder %s23, 1
    %p88 = por %p86, %p87
    %p90 = scmp.ne.s32.totalorder %s75, %s89
    %p91 = scmp.eq.s32.totalorder %s23, 0
    %p92 = por %p90, %p91
    %s94 = sadd.s32 %s93, 1
    %p97 = scmp.eq.s32.totalorder %s17, 1
    %p98 = scmp.ne.s32.totalorder %s93, %s95
    %p99 = scmp.eq.s32.totalorder %s17, 0
    %p100 = por %p98, %p99
    %p101 = scmp.ne.s32.totalorder %s93, %s95
    %p102 = scmp.eq.s32.totalorder %s22, 1
    %p103 = por %p101, %p102
    %p104 = scmp.ne.s32.totalorder %s95, %s96
    %p105 = scmp.eq.s32.totalorder %s22, 0
    %p106 = por %p104, %p105
    %p107 = scmp.ne.s32.totalorder %s95, %s96
    %p108 = scmp.eq.s32.totalorder %s23, 1
    %p109 = por %p107, %p108
    %p111 = scmp.ne.s32.totalorder %s96, %s110
    %p112 = scmp.eq.s32.totalorder %s23, 0
    %p113 = por %p111, %p112
    %s115 = sadd.s32 %s114, 1
    %p118 = scmp.eq.s32.totalorder %s17, 1
    %p119 = scmp.ne.s32.totalorder %s114, %s116
    %p120 = scmp.eq.s32.totalorder %s17, 0
    %p121 = por %p119, %p120
    %p122 = scmp.ne.s32.totalorder %s114, %s116
    %p123 = scmp.eq.s32.totalorder %s22, 1
    %p124 = por %p122, %p123
    %p125 = scmp.ne.s32.totalorder %s116, %s117
    %p126 = scmp.eq.s32.totalorder %s22, 0
    %p127 = por %p125, %p126
    %p128 = scmp.ne.s32.totalorder %s116, %s117
    %p129 = scmp.eq.s32.totalorder %s23, 1
    %p130 = por %p128, %p129
    %p132 = scmp.ne.s32.totalorder %s117, %s131
    %p133 = scmp.eq.s32.totalorder %s23, 0
    %p134 = por %p132, %p133
    %s136 = sadd.s32 %s135, 1
    %p139 = scmp.eq.s32.totalorder %s17, 1
    %p140 = scmp.ne.s32.totalorder %s135, %s137
    %p141 = scmp.eq.s32.totalorder %s17, 0
    %p142 = por %p140, %p141
    %p143 = scmp.ne.s32.totalorder %s135, %s137
    %p144 = scmp.eq.s32.totalorder %s22, 1
    %p145 = por %p143, %p144
    %p146 = scmp.ne.s32.totalorder %s137, %s138
    %p147 = scmp.eq.s32.totalorder %s22, 0
    %p148 = por %p146, %p147
    %p149 = scmp.ne.s32.totalorder %s137, %s138
    %p150 = scmp.eq.s32.totalorder %s23, 1
    %p151 = por %p149, %p150
    %p153 = scmp.ne.s32.totalorder %s138, %s152
    %p154 = scmp.eq.s32.totalorder %s23, 0
    %p155 = por %p153, %p154
    %s157 = sadd.s32 %s156, 1
    %p160 = scmp.eq.s32.totalorder %s17, 1
    %p161 = scmp.ne.s32.totalorder %s156, %s158
    %p162 = scmp.eq.s32.totalorder %s17, 0
    %p163 = por %p161, %p162
    %p164 = scmp.ne.s32.totalorder %s156, %s158
    %p165 = scmp.eq.s32.totalorder %s22, 1
    %p166 = por %p164, %p165
    %p167 = scmp.ne.s32.totalorder %s158, %s159
    %p168 = scmp.eq.s32.totalorder %s22, 0
    %p169 = por %p167, %p168
    %p170 = scmp.ne.s32.totalorder %s158, %s159
    %p171 = scmp.eq.s32.totalorder %s23, 1
    %p172 = por %p170, %p171
    %p174 = scmp.ne.s32.totalorder %s159, %s173
    %p175 = scmp.eq.s32.totalorder %s23, 0
    %p176 = por %p174, %p175
    %s178 = sadd.s32 %s177, 1
    %p181 = scmp.eq.s32.totalorder %s17, 1
    %p182 = scmp.ne.s32.totalorder %s177, %s179
    %p183 = scmp.eq.s32.totalorder %s17, 0
    %p184 = por %p182, %p183
    %p185 = scmp.ne.s32.totalorder %s177, %s179
    %p186 = scmp.eq.s32.totalorder %s22, 1
    %p187 = por %p185, %p186
    %p188 = scmp.ne.s32.totalorder %s179, %s180
    %p189 = scmp.eq.s32.totalorder %s22, 0
    %p190 = por %p188, %p189
    %p191 = scmp.ne.s32.totalorder %s179, %s180
    %p192 = scmp.eq.s32.totalorder %s23, 1
    %p193 = por %p191, %p192
    %p195 = scmp.ne.s32.totalorder %s180, %s194
    %p196 = scmp.eq.s32.totalorder %s23, 0
    %p197 = por %p195, %p196
    %s199 = sadd.s32 %s198, 1
    %p202 = scmp.eq.s32.totalorder %s17, 1
    %p203 = scmp.ne.s32.totalorder %s198, %s200
    %p204 = scmp.eq.s32.totalorder %s17, 0
    %p205 = por %p203, %p204
    %p206 = scmp.ne.s32.totalorder %s198, %s200
    %p207 = scmp.eq.s32.totalorder %s22, 1
    %p208 = por %p206, %p207
    %p209 = scmp.ne.s32.totalorder %s200, %s201
    %p210 = scmp.eq.s32.totalorder %s22, 0
    %p211 = por %p209, %p210
    %p212 = scmp.ne.s32.totalorder %s200, %s201
    %p213 = scmp.eq.s32.totalorder %s23, 1
    %p214 = por %p212, %p213
    %p216 = scmp.ne.s32.totalorder %s201, %s215
    %p217 = scmp.eq.s32.totalorder %s23, 0
    %p218 = por %p216, %p217
    %s220 = sadd.s32 %s219, 1
    %p223 = scmp.eq.s32.totalorder %s17, 1
    %p224 = scmp.ne.s32.totalorder %s219, %s221
    %p225 = scmp.eq.s32.totalorder %s17, 0
    %p226 = por %p224, %p225
    %p227 = scmp.ne.s32.totalorder %s219, %s221
    %p228 = scmp.eq.s32.totalorder %s22, 1
    %p229 = por %p227, %p228
    %p230 = scmp.ne.s32.totalorder %s221, %s222
    %p231 = scmp.eq.s32.totalorder %s22, 0
    %p232 = por %p230, %p231
    %p233 = scmp.ne.s32.totalorder %s221, %s222
    %p234 = scmp.eq.s32.totalorder %s23, 1
    %p235 = por %p233, %p234
    %p237 = scmp.ne.s32.totalorder %s222, %s236
    %p238 = scmp.eq.s32.totalorder %s23, 0
    %p239 = por %p237, %p238
    %s241 = sadd.s32 %s240, 1
    %p244 = scmp.eq.s32.totalorder %s17, 1
    %p245 = scmp.ne.s32.totalorder %s240, %s242
    %p246 = scmp.eq.s32.totalorder %s17, 0
    %p247 = por %p245, %p246
    %p248 = scmp.ne.s32.totalorder %s240, %s242
    %p249 = scmp.eq.s32.totalorder %s22, 1
    %p250 = por %p248, %p249
    %p251 = scmp.ne.s32.totalorder %s242, %s243
    %p252 = scmp.eq.s32.totalorder %s22, 0
    %p253 = por %p251, %p252
    %p254 = scmp.ne.s32.totalorder %s242, %s243
    %p255 = scmp.eq.s32.totalorder %s23, 1
    %p256 = por %p254, %p255
    %p258 = scmp.ne.s32.totalorder %s243, %s257
    %p259 = scmp.eq.s32.totalorder %s23, 0
    %p260 = por %p258, %p259
    %s261 = ssub.s32 %s17, %s24
    %p262 = scmp.eq.s32.totalorder %s261, 0
    %s264 = sadd.s32 %s263, 1
    %s265 = scalar_select %p262, %s263, %s264
    %p268 = pneg %p262
    %p269 = scmp.eq.s32.totalorder %s17, 1
    %p270 = por %p268, %p269
    %p271 = scmp.ne.s32.totalorder %s263, %s266
    %p272 = scmp.eq.s32.totalorder %s17, 0
    %p273 = por %p271, %p272
    %p274 = scmp.ne.s32.totalorder %s263, %s266
    %p275 = scmp.eq.s32.totalorder %s22, 1
    %p276 = por %p274, %p275
    %p277 = scmp.ne.s32.totalorder %s266, %s267
    %p278 = scmp.eq.s32.totalorder %s22, 0
    %p279 = por %p277, %p278
    %p280 = scmp.ne.s32.totalorder %s266, %s267
    %p281 = scmp.eq.s32.totalorder %s23, 1
    %p282 = por %p280, %p281
    %p284 = scmp.ne.s32.totalorder %s267, %s283
    %p285 = scmp.eq.s32.totalorder %s23, 0
    %p286 = por %p284, %p285
    %p287 = scmp.le.s32.totalorder 1, %s17
    %p288 = scmp.lt.s32.totalorder %s17, 3
    %p289 = pnand %p287, %p288
    %p290 = pneg %p289
    // Predicated region
    $region9: #{agent_nn_forward.1} parent=5 // pred_check
      _
    $region10: #{agent_nn_forward.1} parent=5 // pred_check_branch
      %292 = sbr.rel (%p289) target = $region12
    $region11: #{agent_nn_forward.1} parent=5 // pred_region
      %s293 = ssub.s32 %s17, 1
      // Predicated region
      $region13: #{agent_nn_forward.1} parent=11 // pred_check
        %p294 = pneg %p64
      $region14: #{agent_nn_forward.1} parent=11 // pred_check_branch
        %296 = sbr.rel (%p294) target = $region16
      $region15: #{agent_nn_forward.1} parent=11 // pred_region
        _
      $region16: #{agent_nn_forward.1} parent=11 // pred_fallthru
        _
      // Predicated region
      $region17: #{agent_nn_forward.1} parent=11 // pred_check
        %p297 = pneg %p85
      $region18: #{agent_nn_forward.1} parent=11 // pred_check_branch
        %299 = sbr.rel (%p297) target = $region20
      $region19: #{agent_nn_forward.1} parent=11 // pred_region
        _
      $region20: #{agent_nn_forward.1} parent=11 // pred_fallthru
        _
      // Predicated region
      $region21: #{agent_nn_forward.1} parent=11 // pred_check
        %p300 = pneg %p106
      $region22: #{agent_nn_forward.1} parent=11 // pred_check_branch
        %302 = sbr.rel (%p300) target = $region24
      $region23: #{agent_nn_forward.1} parent=11 // pred_region
        _
      $region24: #{agent_nn_forward.1} parent=11 // pred_fallthru
        _
      // Predicated region
      $region25: #{agent_nn_forward.1} parent=11 // pred_check
        %p303 = pneg %p127
      $region26: #{agent_nn_forward.1} parent=11 // pred_check_branch
        %305 = sbr.rel (%p303) target = $region28
      $region27: #{agent_nn_forward.1} parent=11 // pred_region
        _
      $region28: #{agent_nn_forward.1} parent=11 // pred_fallthru
        _
      // Predicated region
      $region29: #{agent_nn_forward.1} parent=11 // pred_check
        %p306 = pneg %p148
      $region30: #{agent_nn_forward.1} parent=11 // pred_check_branch
        %308 = sbr.rel (%p306) target = $region32
      $region31: #{agent_nn_forward.1} parent=11 // pred_region
        _
      $region32: #{agent_nn_forward.1} parent=11 // pred_fallthru
        _
      // Predicated region
      $region33: #{agent_nn_forward.1} parent=11 // pred_check
        %p309 = pneg %p169
      $region34: #{agent_nn_forward.1} parent=11 // pred_check_branch
        %311 = sbr.rel (%p309) target = $region36
      $region35: #{agent_nn_forward.1} parent=11 // pred_region
        _
      $region36: #{agent_nn_forward.1} parent=11 // pred_fallthru
        _
      // Predicated region
      $region37: #{agent_nn_forward.1} parent=11 // pred_check
        %p312 = pneg %p190
      $region38: #{agent_nn_forward.1} parent=11 // pred_check_branch
        %314 = sbr.rel (%p312) target = $region40
      $region39: #{agent_nn_forward.1} parent=11 // pred_region
        _
      $region40: #{agent_nn_forward.1} parent=11 // pred_fallthru
        _
      // Predicated region
      $region41: #{agent_nn_forward.1} parent=11 // pred_check
        %p315 = pneg %p211
      $region42: #{agent_nn_forward.1} parent=11 // pred_check_branch
        %317 = sbr.rel (%p315) target = $region44
      $region43: #{agent_nn_forward.1} parent=11 // pred_region
        _
      $region44: #{agent_nn_forward.1} parent=11 // pred_fallthru
        _
      // Predicated region
      $region45: #{agent_nn_forward.1} parent=11 // pred_check
        %p318 = pneg %p232
      $region46: #{agent_nn_forward.1} parent=11 // pred_check_branch
        %320 = sbr.rel (%p318) target = $region48
      $region47: #{agent_nn_forward.1} parent=11 // pred_region
        _
      $region48: #{agent_nn_forward.1} parent=11 // pred_fallthru
        _
      // Predicated region
      $region49: #{agent_nn_forward.1} parent=11 // pred_check
        %p321 = pneg %p253
      $region50: #{agent_nn_forward.1} parent=11 // pred_check_branch
        %323 = sbr.rel (%p321) target = $region52
      $region51: #{agent_nn_forward.1} parent=11 // pred_region
        _
      $region52: #{agent_nn_forward.1} parent=11 // pred_fallthru
        _
    $region12: #{agent_nn_forward.1} parent=5 // pred_fallthru
      _
    %p324 = scmp.lt.s32.totalorder %s17, 2
    // Predicated region
    $region53: #{agent_nn_forward.1} parent=5 // pred_check
      %p325 = pneg %p324
    $region54: #{agent_nn_forward.1} parent=5 // pred_check_branch
      %327 = sbr.rel (%p325) target = $region56
    $region55: #{agent_nn_forward.1} parent=5 // pred_region
      // Predicated region
      $region57: #{agent_nn_forward.1} parent=55 // pred_check
        %p328 = pneg %p37
      $region58: #{agent_nn_forward.1} parent=55 // pred_check_branch
        %330 = sbr.rel (%p328) target = $region60
      $region59: #{agent_nn_forward.1} parent=55 // pred_region
        %p331 = scmp.lt.s32.totalorder %s17, 1
        %s332 = scalar_select %p331, %s17, 1
        %s333 = smul.addr %s332, 9
        %s334 = smul.addr %s333, 4
        %s335 = scalar_lea.vmem %s0, %s334
      $region60: #{agent_nn_forward.1} parent=55 // pred_fallthru
        _
    $region56: #{agent_nn_forward.1} parent=5 // pred_fallthru
      _
    %p336 = scmp.le.s32.totalorder 1, %s17
    %p337 = scmp.lt.s32.totalorder %s17, 3
    %p338 = pnand %p336, %p337
    %p339 = pneg %p338
    // Predicated region
    $region61: #{agent_nn_forward.1} parent=5 // pred_check
      _
    $region62: #{agent_nn_forward.1} parent=5 // pred_check_branch
      %341 = sbr.rel (%p338) target = $region64
    $region63: #{agent_nn_forward.1} parent=5 // pred_region
      %s342 = ssub.s32 %s17, 1
      %p343 = scmp.lt.s32.totalorder %s22, 1
      %s344 = scalar_select %p343, %s22, 1
      %s345 = smul.addr %s344, 9
      %s346 = smul.addr %s345, 4
      %s347 = scalar_lea.vmem %s0, %s346
      %p348 = pneg %p43
      %p349 = pneg %p40
      %p350 = pneg %p64
      %p351 = pneg %p61
      %p352 = pneg %p85
      %p353 = pneg %p82
      %p354 = pneg %p106
      %p355 = pneg %p103
      %p356 = pneg %p127
      %p357 = pneg %p124
      %p358 = pneg %p148
      %p359 = pneg %p145
      %p360 = pneg %p169
      %p361 = pneg %p166
      %p362 = pneg %p190
      %p363 = pneg %p187
      %p364 = pneg %p211
      %p365 = pneg %p208
      %p366 = pneg %p232
      %p367 = pneg %p229
      %p368 = pneg %p253
      %p369 = pneg %p250
      %p370 = pneg %p279
      %p371 = pneg %p276
      %p372 = scmp.lt.s32.totalorder %s22, 1
      %s373 = scalar_select %p372, %s22, 1
      %s374 = smul.addr %s373, 8
      %s375 = scalar_lea.vmem %s11, %s374
      %p376 = scmp.lt.s32.totalorder %s22, 1
      %s377 = scalar_select %p376, %s22, 1
      %s378 = smul.addr %s377, 9
      %s379 = smul.addr %s378, 4
      %s380 = scalar_lea.vmem %s0, %s379
      %p381 = scmp.lt.s32.totalorder %s22, 1
      %s382 = scalar_select %p381, %s22, 1
      %s383 = smul.addr %s382, 8
      %s384 = scalar_lea.vmem %s11, %s383
      %v386 = vld [vmem:[%s380] sm:$0xff]
      %v387 = vld [vmem:[%s380 + $0x8] sm:$0xff]
      %v388 = vld [vmem:[%s380 + $0x10] sm:$0xff]
      %v389 = vld [vmem:[%s380 + $0x18] sm:$0xff]
      %v390 = vld [vmem:[%s380 + $0x20] sm:$0xf]
      %v391 = vld [vmem:[%s1] sm:$0xff]
      %v392 = vld [vmem:[%s1 + $0x8] sm:$0xff]
      %v393 = vld [vmem:[%s1 + $0x10] sm:$0xff]
      %v394 = vld [vmem:[%s1 + $0x18] sm:$0xff]
      %v395 = vld [vmem:[%s1 + $0x20] sm:$0xff]
      %v396 = vld [vmem:[%s1 + $0x28] sm:$0xff]
      %v397 = vld [vmem:[%s1 + $0x30] sm:$0xff]
      %v398 = vld [vmem:[%s1 + $0x38] sm:$0xff]
      %v399 = vld [vmem:[%s1 + $0x40] sm:$0xff]
      %v400 = vld [vmem:[%s1 + $0x48] sm:$0xff]
      %v401 = vld [vmem:[%s1 + $0x50] sm:$0xff]
      %v402 = vld [vmem:[%s1 + $0x58] sm:$0xff]
      %v403 = vld [vmem:[%s1 + $0x60] sm:$0xff]
      %v404 = vld [vmem:[%s1 + $0x68] sm:$0xff]
      %v405 = vld [vmem:[%s1 + $0x70] sm:$0xff]
      %v406 = vld [vmem:[%s1 + $0x78] sm:$0xff]
      %v407 = vld [vmem:[%s1 + $0x80] sm:$0xff]
      %v408 = vld [vmem:[%s1 + $0x88] sm:$0xff]
      %v409 = vld [vmem:[%s1 + $0x90] sm:$0xff]
      %v410 = vld [vmem:[%s1 + $0x98] sm:$0xff]
      %v411 = vld [vmem:[%s1 + $0xa0] sm:$0xff]
      %v412 = vld [vmem:[%s1 + $0xa8] sm:$0xff]
      %v413 = vld [vmem:[%s1 + $0xb0] sm:$0xff]
      %v414 = vld [vmem:[%s1 + $0xb8] sm:$0xff]
      %v415 = vld [vmem:[%s1 + $0xc0] sm:$0xff]
      %v416 = vld [vmem:[%s1 + $0xc8] sm:$0xff]
      %v417 = vld [vmem:[%s1 + $0xd0] sm:$0xff]
      %v418 = vld [vmem:[%s1 + $0xd8] sm:$0xff]
      %v419 = vld [vmem:[%s1 + $0xe0] sm:$0xff]
      %v420 = vld [vmem:[%s1 + $0xe8] sm:$0xff]
      %v421 = vld [vmem:[%s1 + $0xf0] sm:$0xff]
      %v422 = vld [vmem:[%s1 + $0xf8] sm:$0xff]
      %v423 = vld [vmem:[%s1 + $0x100] sm:$0xff]
      %v424 = vld [vmem:[%s1 + $0x108] sm:$0xff]
      %v425 = vld [vmem:[%s1 + $0x110] sm:$0xff]
      %v426 = vld [vmem:[%s1 + $0x118] sm:$0xff]
      %v427 = vld [vmem:[%s1 + $0x120] sm:$0xff]
      %v428 = vld [vmem:[%s1 + $0x128] sm:$0xff]
      %v429 = vld [vmem:[%s1 + $0x130] sm:$0xff]
      %v430 = vld [vmem:[%s1 + $0x138] sm:$0xff]
      %v431 = vld [vmem:[%s1 + $0x140] sm:$0xff]
      %v432 = vld [vmem:[%s1 + $0x148] sm:$0xff]
      %v433 = vld [vmem:[%s1 + $0x150] sm:$0xff]
      %v434 = vld [vmem:[%s1 + $0x158] sm:$0xff]
      %v435 = vld [vmem:[%s1 + $0x160] sm:$0xff]
      %v436 = vld [vmem:[%s1 + $0x168] sm:$0xff]
      %v437 = vld [vmem:[%s1 + $0x170] sm:$0xff]
      %v438 = vld [vmem:[%s1 + $0x178] sm:$0xff]
      %v439 = vld [vmem:[%s1 + $0x180] sm:$0xff]
      %v440 = vld [vmem:[%s1 + $0x188] sm:$0xff]
      %v441 = vld [vmem:[%s1 + $0x190] sm:$0xff]
      %v442 = vld [vmem:[%s1 + $0x198] sm:$0xff]
      %v443 = vld [vmem:[%s1 + $0x1a0] sm:$0xff]
      %v444 = vld [vmem:[%s1 + $0x1a8] sm:$0xff]
      %v445 = vld [vmem:[%s1 + $0x1b0] sm:$0xff]
      %v446 = vld [vmem:[%s1 + $0x1b8] sm:$0xff]
      %v447 = vld [vmem:[%s1 + $0x1c0] sm:$0xff]
      %v448 = vld [vmem:[%s1 + $0x1c8] sm:$0xff]
      %v449 = vld [vmem:[%s1 + $0x1d0] sm:$0xff]
      %v450 = vld [vmem:[%s1 + $0x1d8] sm:$0xff]
      %v451 = vld [vmem:[%s1 + $0x1e0] sm:$0xff]
      %v452 = vld [vmem:[%s1 + $0x1e8] sm:$0xff]
      %v453 = vld [vmem:[%s1 + $0x1f0] sm:$0xff]
      %v454 = vld [vmem:[%s1 + $0x1f8] sm:$0xff]
      %v455 = vld [vmem:[%s1 + $0x200] sm:$0xff]
      %v456 = vld [vmem:[%s1 + $0x208] sm:$0xff]
      %v457 = vld [vmem:[%s1 + $0x210] sm:$0xff]
      %v458 = vld [vmem:[%s1 + $0x218] sm:$0xff]
      %v459 = vld [vmem:[%s1 + $0x220] sm:$0xff]
      %v460 = vld [vmem:[%s1 + $0x228] sm:$0xff]
      %v461 = vld [vmem:[%s1 + $0x230] sm:$0xff]
      %v462 = vld [vmem:[%s1 + $0x238] sm:$0xff]
      %v463 = vld [vmem:[%s1 + $0x240] sm:$0xff]
      %v464 = vld [vmem:[%s1 + $0x248] sm:$0xff]
      %v465 = vld [vmem:[%s1 + $0x250] sm:$0xff]
      %v466 = vld [vmem:[%s1 + $0x258] sm:$0xff]
      %v467 = vld [vmem:[%s1 + $0x260] sm:$0xff]
      %v468 = vld [vmem:[%s1 + $0x268] sm:$0xff]
      %v469 = vld [vmem:[%s1 + $0x270] sm:$0xff]
      %v470 = vld [vmem:[%s1 + $0x278] sm:$0xff]
      %v471 = vld [vmem:[%s1 + $0x280] sm:$0xff]
      %v472 = vld [vmem:[%s1 + $0x288] sm:$0xff]
      %v473 = vld [vmem:[%s1 + $0x290] sm:$0xff]
      %v474 = vld [vmem:[%s1 + $0x298] sm:$0xff]
      %v475 = vld [vmem:[%s1 + $0x2a0] sm:$0xff]
      %v476 = vld [vmem:[%s1 + $0x2a8] sm:$0xff]
      %v477 = vld [vmem:[%s1 + $0x2b0] sm:$0xff]
      %v478 = vld [vmem:[%s1 + $0x2b8] sm:$0xff]
      %v479 = vld [vmem:[%s1 + $0x2c0] sm:$0xff]
      %v480 = vld [vmem:[%s1 + $0x2c8] sm:$0xff]
      %v481 = vld [vmem:[%s1 + $0x2d0] sm:$0xff]
      %v482 = vld [vmem:[%s1 + $0x2d8] sm:$0xff]
      %v483 = vld [vmem:[%s1 + $0x2e0] sm:$0xff]
      %v484 = vld [vmem:[%s1 + $0x2e8] sm:$0xff]
      %v485 = vld [vmem:[%s1 + $0x2f0] sm:$0xff]
      %v486 = vld [vmem:[%s1 + $0x2f8] sm:$0xff]
      %v487 = vld [vmem:[%s1 + $0x300] sm:$0xff]
      %v488 = vld [vmem:[%s1 + $0x308] sm:$0xff]
      %v489 = vld [vmem:[%s1 + $0x310] sm:$0xff]
      %v490 = vld [vmem:[%s1 + $0x318] sm:$0xff]
      %v491 = vld [vmem:[%s1 + $0x320] sm:$0xff]
      %v492 = vld [vmem:[%s1 + $0x328] sm:$0xff]
      %v493 = vld [vmem:[%s1 + $0x330] sm:$0xff]
      %v494 = vld [vmem:[%s1 + $0x338] sm:$0xff]
      %v495 = vld [vmem:[%s1 + $0x340] sm:$0xff]
      %v496 = vld [vmem:[%s1 + $0x348] sm:$0xff]
      %v497 = vld [vmem:[%s1 + $0x350] sm:$0xff]
      %v498 = vld [vmem:[%s1 + $0x358] sm:$0xff]
      %v499 = vld [vmem:[%s1 + $0x360] sm:$0xff]
      %v500 = vld [vmem:[%s1 + $0x368] sm:$0xff]
      %v501 = vld [vmem:[%s1 + $0x370] sm:$0xff]
      %v502 = vld [vmem:[%s1 + $0x378] sm:$0xff]
      %v503 = vld [vmem:[%s1 + $0x380] sm:$0xff]
      %v504 = vld [vmem:[%s1 + $0x388] sm:$0xff]
      %v505 = vld [vmem:[%s1 + $0x390] sm:$0xff]
      %v506 = vld [vmem:[%s1 + $0x398] sm:$0xff]
      %v507 = vld [vmem:[%s1 + $0x3a0] sm:$0xff]
      %v508 = vld [vmem:[%s1 + $0x3a8] sm:$0xff]
      %v509 = vld [vmem:[%s1 + $0x3b0] sm:$0xff]
      %v510 = vld [vmem:[%s1 + $0x3b8] sm:$0xff]
      %v511 = vld [vmem:[%s1 + $0x3c0] sm:$0xff]
      %v512 = vld [vmem:[%s1 + $0x3c8] sm:$0xff]
      %v513 = vld [vmem:[%s1 + $0x3d0] sm:$0xff]
      %v514 = vld [vmem:[%s1 + $0x3d8] sm:$0xff]
      %v515 = vld [vmem:[%s1 + $0x3e0] sm:$0xff]
      %v516 = vld [vmem:[%s1 + $0x3e8] sm:$0xff]
      %v517 = vld [vmem:[%s1 + $0x3f0] sm:$0xff]
      %v518 = vld [vmem:[%s1 + $0x3f8] sm:$0xff]
      %v519 = vld [vmem:[%s1 + $0x400] sm:$0xff]
      %v520 = vld [vmem:[%s1 + $0x408] sm:$0xff]
      %v521 = vld [vmem:[%s1 + $0x410] sm:$0xff]
      %v522 = vld [vmem:[%s1 + $0x418] sm:$0xff]
      %v523 = vld [vmem:[%s1 + $0x420] sm:$0xff]
      %v524 = vld [vmem:[%s1 + $0x428] sm:$0xff]
      %v525 = vld [vmem:[%s1 + $0x430] sm:$0xff]
      %v526 = vld [vmem:[%s1 + $0x438] sm:$0xff]
      %v527 = vld [vmem:[%s1 + $0x440] sm:$0xff]
      %v528 = vld [vmem:[%s1 + $0x448] sm:$0xff]
      %v529 = vld [vmem:[%s1 + $0x450] sm:$0xff]
      %v530 = vld [vmem:[%s1 + $0x458] sm:$0xff]
      %v531 = vld [vmem:[%s1 + $0x460] sm:$0xff]
      %v532 = vld [vmem:[%s1 + $0x468] sm:$0xff]
      %v533 = vld [vmem:[%s1 + $0x470] sm:$0xff]
      %v534 = vld [vmem:[%s1 + $0x478] sm:$0xff]
      %v535 = vld [vmem:[%s2] sm:$0x3]
      %v537 = vlaneseq
      %v538 = vshrl.u32 %v537, 7
      %v539 = vsub.s32 0, %v538
      %v540 = vrot.slane %v535, %v539
      %v541 = vlaneseq
      %v542 = vshrl.u32 %v541, 7
      %v543 = vsub.s32 1, %v542
      %v544 = vrot.slane %v535, %v543
      %v552 = vunpack.c.l.b16 %v386
      %v553 = vunpack.c.h.b16 %v386
      %v554 = vunpack.c.l.b16 %v387
      %v555 = vunpack.c.h.b16 %v387
      %v556 = vunpack.c.l.b16 %v388
      %v557 = vunpack.c.h.b16 %v388
      %v558 = vunpack.c.l.b16 %v389
      %v559 = vunpack.c.h.b16 %v389
      %v560 = vunpack.c.l.b16 %v390
      %v561 = vpack.c.b16 %v552, %v552
      %v562 = vpack.c.b16 %v553, %v553
      %v563 = vpack.c.b16 %v554, %v554
      %v564 = vpack.c.b16 %v555, %v555
      %v565 = vpack.c.b16 %v556, %v556
      %v566 = vpack.c.b16 %v557, %v557
      %v567 = vpack.c.b16 %v558, %v558
      %v568 = vpack.c.b16 %v559, %v559
      %v569 = vpack.c.b16 %v560, %v560
      %v723 = vunpack.c.l.b16 %v391
      %v724 = vunpack.c.h.b16 %v391
      %v725 = vunpack.c.l.b16 %v392
      %v726 = vunpack.c.h.b16 %v392
      %v727 = vunpack.c.l.b16 %v393
      %v728 = vunpack.c.h.b16 %v393
      %v729 = vunpack.c.l.b16 %v394
      %v730 = vunpack.c.h.b16 %v394
      %v731 = vunpack.c.l.b16 %v395
      %v732 = vunpack.c.h.b16 %v395
      %v733 = vunpack.c.l.b16 %v396
      %v734 = vunpack.c.h.b16 %v396
      %v735 = vunpack.c.l.b16 %v397
      %v736 = vunpack.c.h.b16 %v397
      %v737 = vunpack.c.l.b16 %v398
      %v738 = vunpack.c.h.b16 %v398
      %v739 = vunpack.c.l.b16 %v399
      %v740 = vunpack.c.h.b16 %v399
      %v741 = vunpack.c.l.b16 %v400
      %v742 = vunpack.c.h.b16 %v400
      %v743 = vunpack.c.l.b16 %v401
      %v744 = vunpack.c.h.b16 %v401
      %v745 = vunpack.c.l.b16 %v402
      %v746 = vunpack.c.h.b16 %v402
      %v747 = vunpack.c.l.b16 %v403
      %v748 = vunpack.c.h.b16 %v403
      %v749 = vunpack.c.l.b16 %v404
      %v750 = vunpack.c.h.b16 %v404
      %v751 = vunpack.c.l.b16 %v405
      %v752 = vunpack.c.h.b16 %v405
      %v753 = vunpack.c.l.b16 %v406
      %v754 = vunpack.c.h.b16 %v406
      %v755 = vunpack.c.l.b16 %v407
      %v756 = vunpack.c.h.b16 %v407
      %v757 = vunpack.c.l.b16 %v408
      %v758 = vunpack.c.h.b16 %v408
      %v759 = vunpack.c.l.b16 %v409
      %v760 = vunpack.c.h.b16 %v409
      %v761 = vunpack.c.l.b16 %v410
      %v762 = vunpack.c.h.b16 %v410
      %v763 = vunpack.c.l.b16 %v411
      %v764 = vunpack.c.h.b16 %v411
      %v765 = vunpack.c.l.b16 %v412
      %v766 = vunpack.c.h.b16 %v412
      %v767 = vunpack.c.l.b16 %v413
      %v768 = vunpack.c.h.b16 %v413
      %v769 = vunpack.c.l.b16 %v414
      %v770 = vunpack.c.h.b16 %v414
      %v771 = vunpack.c.l.b16 %v415
      %v772 = vunpack.c.h.b16 %v415
      %v773 = vunpack.c.l.b16 %v416
      %v774 = vunpack.c.h.b16 %v416
      %v775 = vunpack.c.l.b16 %v417
      %v776 = vunpack.c.h.b16 %v417
      %v777 = vunpack.c.l.b16 %v418
      %v778 = vunpack.c.h.b16 %v418
      %v779 = vunpack.c.l.b16 %v419
      %v780 = vunpack.c.h.b16 %v419
      %v781 = vunpack.c.l.b16 %v420
      %v782 = vunpack.c.h.b16 %v420
      %v783 = vunpack.c.l.b16 %v421
      %v784 = vunpack.c.h.b16 %v421
      %v785 = vunpack.c.l.b16 %v422
      %v786 = vunpack.c.h.b16 %v422
      %v787 = vunpack.c.l.b16 %v423
      %v788 = vunpack.c.h.b16 %v423
      %v789 = vunpack.c.l.b16 %v424
      %v790 = vunpack.c.h.b16 %v424
      %v791 = vunpack.c.l.b16 %v425
      %v792 = vunpack.c.h.b16 %v425
      %v793 = vunpack.c.l.b16 %v426
      %v794 = vunpack.c.h.b16 %v426
      %v795 = vunpack.c.l.b16 %v427
      %v796 = vunpack.c.h.b16 %v427
      %v797 = vunpack.c.l.b16 %v428
      %v798 = vunpack.c.h.b16 %v428
      %v799 = vunpack.c.l.b16 %v429
      %v800 = vunpack.c.h.b16 %v429
      %v801 = vunpack.c.l.b16 %v430
      %v802 = vunpack.c.h.b16 %v430
      %v803 = vunpack.c.l.b16 %v431
      %v804 = vunpack.c.h.b16 %v431
      %v805 = vunpack.c.l.b16 %v432
      %v806 = vunpack.c.h.b16 %v432
      %v807 = vunpack.c.l.b16 %v433
      %v808 = vunpack.c.h.b16 %v433
      %v809 = vunpack.c.l.b16 %v434
      %v810 = vunpack.c.h.b16 %v434
      %v811 = vunpack.c.l.b16 %v435
      %v812 = vunpack.c.h.b16 %v435
      %v813 = vunpack.c.l.b16 %v436
      %v814 = vunpack.c.h.b16 %v436
      %v815 = vunpack.c.l.b16 %v437
      %v816 = vunpack.c.h.b16 %v437
      %v817 = vunpack.c.l.b16 %v438
      %v818 = vunpack.c.h.b16 %v438
      %v819 = vunpack.c.l.b16 %v439
      %v820 = vunpack.c.h.b16 %v439
      %v821 = vunpack.c.l.b16 %v440
      %v822 = vunpack.c.h.b16 %v440
      %v823 = vunpack.c.l.b16 %v441
      %v824 = vunpack.c.h.b16 %v441
      %v825 = vunpack.c.l.b16 %v442
      %v826 = vunpack.c.h.b16 %v442
      %v827 = vunpack.c.l.b16 %v443
      %v828 = vunpack.c.h.b16 %v443
      %v829 = vunpack.c.l.b16 %v444
      %v830 = vunpack.c.h.b16 %v444
      %v831 = vunpack.c.l.b16 %v445
      %v832 = vunpack.c.h.b16 %v445
      %v833 = vunpack.c.l.b16 %v446
      %v834 = vunpack.c.h.b16 %v446
      %v835 = vunpack.c.l.b16 %v447
      %v836 = vunpack.c.h.b16 %v447
      %v837 = vunpack.c.l.b16 %v448
      %v838 = vunpack.c.h.b16 %v448
      %v839 = vunpack.c.l.b16 %v449
      %v840 = vunpack.c.h.b16 %v449
      %v841 = vunpack.c.l.b16 %v450
      %v842 = vunpack.c.h.b16 %v450
      %v843 = vunpack.c.l.b16 %v451
      %v844 = vunpack.c.h.b16 %v451
      %v845 = vunpack.c.l.b16 %v452
      %v846 = vunpack.c.h.b16 %v452
      %v847 = vunpack.c.l.b16 %v453
      %v848 = vunpack.c.h.b16 %v453
      %v849 = vunpack.c.l.b16 %v454
      %v850 = vunpack.c.h.b16 %v454
      %v851 = vunpack.c.l.b16 %v455
      %v852 = vunpack.c.h.b16 %v455
      %v853 = vunpack.c.l.b16 %v456
      %v854 = vunpack.c.h.b16 %v456
      %v855 = vunpack.c.l.b16 %v457
      %v856 = vunpack.c.h.b16 %v457
      %v857 = vunpack.c.l.b16 %v458
      %v858 = vunpack.c.h.b16 %v458
      %v859 = vunpack.c.l.b16 %v459
      %v860 = vunpack.c.h.b16 %v459
      %v861 = vunpack.c.l.b16 %v460
      %v862 = vunpack.c.h.b16 %v460
      %v863 = vunpack.c.l.b16 %v461
      %v864 = vunpack.c.h.b16 %v461
      %v865 = vunpack.c.l.b16 %v462
      %v866 = vunpack.c.h.b16 %v462
      %v867 = vunpack.c.l.b16 %v463
      %v868 = vunpack.c.h.b16 %v463
      %v869 = vunpack.c.l.b16 %v464
      %v870 = vunpack.c.h.b16 %v464
      %v871 = vunpack.c.l.b16 %v465
      %v872 = vunpack.c.h.b16 %v465
      %v873 = vunpack.c.l.b16 %v466
      %v874 = vunpack.c.h.b16 %v466
      %v875 = vunpack.c.l.b16 %v467
      %v876 = vunpack.c.h.b16 %v467
      %v877 = vunpack.c.l.b16 %v468
      %v878 = vunpack.c.h.b16 %v468
      %v879 = vunpack.c.l.b16 %v469
      %v880 = vunpack.c.h.b16 %v469
      %v881 = vunpack.c.l.b16 %v470
      %v882 = vunpack.c.h.b16 %v470
      %v883 = vunpack.c.l.b16 %v471
      %v884 = vunpack.c.h.b16 %v471
      %v885 = vunpack.c.l.b16 %v472
      %v886 = vunpack.c.h.b16 %v472
      %v887 = vunpack.c.l.b16 %v473
      %v888 = vunpack.c.h.b16 %v473
      %v889 = vunpack.c.l.b16 %v474
      %v890 = vunpack.c.h.b16 %v474
      %v891 = vunpack.c.l.b16 %v475
      %v892 = vunpack.c.h.b16 %v475
      %v893 = vunpack.c.l.b16 %v476
      %v894 = vunpack.c.h.b16 %v476
      %v895 = vunpack.c.l.b16 %v477
      %v896 = vunpack.c.h.b16 %v477
      %v897 = vunpack.c.l.b16 %v478
      %v898 = vunpack.c.h.b16 %v478
      %v899 = vunpack.c.l.b16 %v479
      %v900 = vunpack.c.h.b16 %v479
      %v901 = vunpack.c.l.b16 %v480
      %v902 = vunpack.c.h.b16 %v480
      %v903 = vunpack.c.l.b16 %v481
      %v904 = vunpack.c.h.b16 %v481
      %v905 = vunpack.c.l.b16 %v482
      %v906 = vunpack.c.h.b16 %v482
      %v907 = vunpack.c.l.b16 %v483
      %v908 = vunpack.c.h.b16 %v483
      %v909 = vunpack.c.l.b16 %v484
      %v910 = vunpack.c.h.b16 %v484
      %v911 = vunpack.c.l.b16 %v485
      %v912 = vunpack.c.h.b16 %v485
      %v913 = vunpack.c.l.b16 %v486
      %v914 = vunpack.c.h.b16 %v486
      %v915 = vunpack.c.l.b16 %v487
      %v916 = vunpack.c.h.b16 %v487
      %v917 = vunpack.c.l.b16 %v488
      %v918 = vunpack.c.h.b16 %v488
      %v919 = vunpack.c.l.b16 %v489
      %v920 = vunpack.c.h.b16 %v489
      %v921 = vunpack.c.l.b16 %v490
      %v922 = vunpack.c.h.b16 %v490
      %v923 = vunpack.c.l.b16 %v491
      %v924 = vunpack.c.h.b16 %v491
      %v925 = vunpack.c.l.b16 %v492
      %v926 = vunpack.c.h.b16 %v492
      %v927 = vunpack.c.l.b16 %v493
      %v928 = vunpack.c.h.b16 %v493
      %v929 = vunpack.c.l.b16 %v494
      %v930 = vunpack.c.h.b16 %v494
      %v931 = vunpack.c.l.b16 %v495
      %v932 = vunpack.c.h.b16 %v495
      %v933 = vunpack.c.l.b16 %v496
      %v934 = vunpack.c.h.b16 %v496
      %v935 = vunpack.c.l.b16 %v497
      %v936 = vunpack.c.h.b16 %v497
      %v937 = vunpack.c.l.b16 %v498
      %v938 = vunpack.c.h.b16 %v498
      %v939 = vunpack.c.l.b16 %v499
      %v940 = vunpack.c.h.b16 %v499
      %v941 = vunpack.c.l.b16 %v500
      %v942 = vunpack.c.h.b16 %v500
      %v943 = vunpack.c.l.b16 %v501
      %v944 = vunpack.c.h.b16 %v501
      %v945 = vunpack.c.l.b16 %v502
      %v946 = vunpack.c.h.b16 %v502
      %v947 = vunpack.c.l.b16 %v503
      %v948 = vunpack.c.h.b16 %v503
      %v949 = vunpack.c.l.b16 %v504
      %v950 = vunpack.c.h.b16 %v504
      %v951 = vunpack.c.l.b16 %v505
      %v952 = vunpack.c.h.b16 %v505
      %v953 = vunpack.c.l.b16 %v506
      %v954 = vunpack.c.h.b16 %v506
      %v955 = vunpack.c.l.b16 %v507
      %v956 = vunpack.c.h.b16 %v507
      %v957 = vunpack.c.l.b16 %v508
      %v958 = vunpack.c.h.b16 %v508
      %v959 = vunpack.c.l.b16 %v509
      %v960 = vunpack.c.h.b16 %v509
      %v961 = vunpack.c.l.b16 %v510
      %v962 = vunpack.c.h.b16 %v510
      %v963 = vunpack.c.l.b16 %v511
      %v964 = vunpack.c.h.b16 %v511
      %v965 = vunpack.c.l.b16 %v512
      %v966 = vunpack.c.h.b16 %v512
      %v967 = vunpack.c.l.b16 %v513
      %v968 = vunpack.c.h.b16 %v513
      %v969 = vunpack.c.l.b16 %v514
      %v970 = vunpack.c.h.b16 %v514
      %v971 = vunpack.c.l.b16 %v515
      %v972 = vunpack.c.h.b16 %v515
      %v973 = vunpack.c.l.b16 %v516
      %v974 = vunpack.c.h.b16 %v516
      %v975 = vunpack.c.l.b16 %v517
      %v976 = vunpack.c.h.b16 %v517
      %v977 = vunpack.c.l.b16 %v518
      %v978 = vunpack.c.h.b16 %v518
      %v979 = vunpack.c.l.b16 %v519
      %v980 = vunpack.c.h.b16 %v519
      %v981 = vunpack.c.l.b16 %v520
      %v982 = vunpack.c.h.b16 %v520
      %v983 = vunpack.c.l.b16 %v521
      %v984 = vunpack.c.h.b16 %v521
      %v985 = vunpack.c.l.b16 %v522
      %v986 = vunpack.c.h.b16 %v522
      %v987 = vunpack.c.l.b16 %v523
      %v988 = vunpack.c.h.b16 %v523
      %v989 = vunpack.c.l.b16 %v524
      %v990 = vunpack.c.h.b16 %v524
      %v991 = vunpack.c.l.b16 %v525
      %v992 = vunpack.c.h.b16 %v525
      %v993 = vunpack.c.l.b16 %v526
      %v994 = vunpack.c.h.b16 %v526
      %v995 = vunpack.c.l.b16 %v527
      %v996 = vunpack.c.h.b16 %v527
      %v997 = vunpack.c.l.b16 %v528
      %v998 = vunpack.c.h.b16 %v528
      %v999 = vunpack.c.l.b16 %v529
      %v1000 = vunpack.c.h.b16 %v529
      %v1001 = vunpack.c.l.b16 %v530
      %v1002 = vunpack.c.h.b16 %v530
      %v1003 = vunpack.c.l.b16 %v531
      %v1004 = vunpack.c.h.b16 %v531
      %v1005 = vunpack.c.l.b16 %v532
      %v1006 = vunpack.c.h.b16 %v532
      %v1007 = vunpack.c.l.b16 %v533
      %v1008 = vunpack.c.h.b16 %v533
      %v1009 = vunpack.c.l.b16 %v534
      %v1010 = vunpack.c.h.b16 %v534
      %v1011 = vpack.c.b16 %v725, %v723
      %v1012 = vpack.c.b16 %v726, %v724
      %v1013 = vpack.c.b16 %v729, %v727
      %v1014 = vpack.c.b16 %v730, %v728
      %v1015 = vpack.c.b16 %v733, %v731
      %v1016 = vpack.c.b16 %v734, %v732
      %v1017 = vpack.c.b16 %v737, %v735
      %v1018 = vpack.c.b16 %v738, %v736
      %v1019 = vpack.c.b16 %v741, %v739
      %v1020 = vpack.c.b16 %v742, %v740
      %v1021 = vpack.c.b16 %v745, %v743
      %v1022 = vpack.c.b16 %v746, %v744
      %v1023 = vpack.c.b16 %v749, %v747
      %v1024 = vpack.c.b16 %v750, %v748
      %v1025 = vpack.c.b16 %v753, %v751
      %v1026 = vpack.c.b16 %v754, %v752
      %v1027 = vpack.c.b16 %v757, %v755
      %v1028 = vpack.c.b16 %v758, %v756
      %v1029 = vpack.c.b16 %v761, %v759
      %v1030 = vpack.c.b16 %v762, %v760
      %v1031 = vpack.c.b16 %v765, %v763
      %v1032 = vpack.c.b16 %v766, %v764
      %v1033 = vpack.c.b16 %v769, %v767
      %v1034 = vpack.c.b16 %v770, %v768
      %v1035 = vpack.c.b16 %v773, %v771
      %v1036 = vpack.c.b16 %v774, %v772
      %v1037 = vpack.c.b16 %v777, %v775
      %v1038 = vpack.c.b16 %v778, %v776
      %v1039 = vpack.c.b16 %v781, %v779
      %v1040 = vpack.c.b16 %v782, %v780
      %v1041 = vpack.c.b16 %v785, %v783
      %v1042 = vpack.c.b16 %v786, %v784
      %v1043 = vpack.c.b16 %v789, %v787
      %v1044 = vpack.c.b16 %v790, %v788
      %v1045 = vpack.c.b16 %v793, %v791
      %v1046 = vpack.c.b16 %v794, %v792
      %v1047 = vpack.c.b16 %v797, %v795
      %v1048 = vpack.c.b16 %v798, %v796
      %v1049 = vpack.c.b16 %v801, %v799
      %v1050 = vpack.c.b16 %v802, %v800
      %v1051 = vpack.c.b16 %v805, %v803
      %v1052 = vpack.c.b16 %v806, %v804
      %v1053 = vpack.c.b16 %v809, %v807
      %v1054 = vpack.c.b16 %v810, %v808
      %v1055 = vpack.c.b16 %v813, %v811
      %v1056 = vpack.c.b16 %v814, %v812
      %v1057 = vpack.c.b16 %v817, %v815
      %v1058 = vpack.c.b16 %v818, %v816
      %v1059 = vpack.c.b16 %v821, %v819
      %v1060 = vpack.c.b16 %v822, %v820
      %v1061 = vpack.c.b16 %v825, %v823
      %v1062 = vpack.c.b16 %v826, %v824
      %v1063 = vpack.c.b16 %v829, %v827
      %v1064 = vpack.c.b16 %v830, %v828
      %v1065 = vpack.c.b16 %v833, %v831
      %v1066 = vpack.c.b16 %v834, %v832
      %v1067 = vpack.c.b16 %v837, %v835
      %v1068 = vpack.c.b16 %v838, %v836
      %v1069 = vpack.c.b16 %v841, %v839
      %v1070 = vpack.c.b16 %v842, %v840
      %v1071 = vpack.c.b16 %v845, %v843
      %v1072 = vpack.c.b16 %v846, %v844
      %v1073 = vpack.c.b16 %v849, %v847
      %v1074 = vpack.c.b16 %v850, %v848
      %v1075 = vpack.c.b16 %v853, %v851
      %v1076 = vpack.c.b16 %v854, %v852
      %v1077 = vpack.c.b16 %v857, %v855
      %v1078 = vpack.c.b16 %v858, %v856
      %v1079 = vpack.c.b16 %v861, %v859
      %v1080 = vpack.c.b16 %v862, %v860
      %v1081 = vpack.c.b16 %v865, %v863
      %v1082 = vpack.c.b16 %v866, %v864
      %v1083 = vpack.c.b16 %v869, %v867
      %v1084 = vpack.c.b16 %v870, %v868
      %v1085 = vpack.c.b16 %v873, %v871
      %v1086 = vpack.c.b16 %v874, %v872
      %v1087 = vpack.c.b16 %v877, %v875
      %v1088 = vpack.c.b16 %v878, %v876
      %v1089 = vpack.c.b16 %v881, %v879
      %v1090 = vpack.c.b16 %v882, %v880
      %v1091 = vpack.c.b16 %v885, %v883
      %v1092 = vpack.c.b16 %v886, %v884
      %v1093 = vpack.c.b16 %v889, %v887
      %v1094 = vpack.c.b16 %v890, %v888
      %v1095 = vpack.c.b16 %v893, %v891
      %v1096 = vpack.c.b16 %v894, %v892
      %v1097 = vpack.c.b16 %v897, %v895
      %v1098 = vpack.c.b16 %v898, %v896
      %v1099 = vpack.c.b16 %v901, %v899
      %v1100 = vpack.c.b16 %v902, %v900
      %v1101 = vpack.c.b16 %v905, %v903
      %v1102 = vpack.c.b16 %v906, %v904
      %v1103 = vpack.c.b16 %v909, %v907
      %v1104 = vpack.c.b16 %v910, %v908
      %v1105 = vpack.c.b16 %v913, %v911
      %v1106 = vpack.c.b16 %v914, %v912
      %v1107 = vpack.c.b16 %v917, %v915
      %v1108 = vpack.c.b16 %v918, %v916
      %v1109 = vpack.c.b16 %v921, %v919
      %v1110 = vpack.c.b16 %v922, %v920
      %v1111 = vpack.c.b16 %v925, %v923
      %v1112 = vpack.c.b16 %v926, %v924
      %v1113 = vpack.c.b16 %v929, %v927
      %v1114 = vpack.c.b16 %v930, %v928
      %v1115 = vpack.c.b16 %v933, %v931
      %v1116 = vpack.c.b16 %v934, %v932
      %v1117 = vpack.c.b16 %v937, %v935
      %v1118 = vpack.c.b16 %v938, %v936
      %v1119 = vpack.c.b16 %v941, %v939
      %v1120 = vpack.c.b16 %v942, %v940
      %v1121 = vpack.c.b16 %v945, %v943
      %v1122 = vpack.c.b16 %v946, %v944
      %v1123 = vpack.c.b16 %v949, %v947
      %v1124 = vpack.c.b16 %v950, %v948
      %v1125 = vpack.c.b16 %v953, %v951
      %v1126 = vpack.c.b16 %v954, %v952
      %v1127 = vpack.c.b16 %v957, %v955
      %v1128 = vpack.c.b16 %v958, %v956
      %v1129 = vpack.c.b16 %v961, %v959
      %v1130 = vpack.c.b16 %v962, %v960
      %v1131 = vpack.c.b16 %v965, %v963
      %v1132 = vpack.c.b16 %v966, %v964
      %v1133 = vpack.c.b16 %v969, %v967
      %v1134 = vpack.c.b16 %v970, %v968
      %v1135 = vpack.c.b16 %v973, %v971
      %v1136 = vpack.c.b16 %v974, %v972
      %v1137 = vpack.c.b16 %v977, %v975
      %v1138 = vpack.c.b16 %v978, %v976
      %v1139 = vpack.c.b16 %v981, %v979
      %v1140 = vpack.c.b16 %v982, %v980
      %v1141 = vpack.c.b16 %v985, %v983
      %v1142 = vpack.c.b16 %v986, %v984
      %v1143 = vpack.c.b16 %v989, %v987
      %v1144 = vpack.c.b16 %v990, %v988
      %v1145 = vpack.c.b16 %v993, %v991
      %v1146 = vpack.c.b16 %v994, %v992
      %v1147 = vpack.c.b16 %v997, %v995
      %v1148 = vpack.c.b16 %v998, %v996
      %v1149 = vpack.c.b16 %v1001, %v999
      %v1150 = vpack.c.b16 %v1002, %v1000
      %v1151 = vpack.c.b16 %v1005, %v1003
      %v1152 = vpack.c.b16 %v1006, %v1004
      %v1153 = vpack.c.b16 %v1009, %v1007
      %v1154 = vpack.c.b16 %v1010, %v1008
      %1299 = vmatprep.subr.bf16.mxu0 %v1012
      %1300 = vmatpush1.bf16.msra.mxu0 %v1011
      %1301 = vmatprep.subr.bf16.mxu0 %v1014
      %1302 = vmatpush1.bf16.msra.mxu0 %v1013
      %1303 = vmatprep.subr.bf16.mxu0 %v1016
      %1304 = vmatpush1.bf16.msra.mxu0 %v1015
      %1305 = vmatprep.subr.bf16.mxu0 %v1018
      %1306 = vmatpush1.bf16.msra.mxu0 %v1017
      %1307 = vmatprep.subr.bf16.mxu0 %v1020
      %1308 = vmatpush1.bf16.msra.mxu0 %v1019
      %1309 = vmatprep.subr.bf16.mxu0 %v1022
      %1310 = vmatpush1.bf16.msra.mxu0 %v1021
      %1311 = vmatprep.subr.bf16.mxu0 %v1024
      %1312 = vmatpush1.bf16.msra.mxu0 %v1023
      %1313 = vmatprep.subr.bf16.mxu0 %v1026
      %1314 = vmatpush1.bf16.msra.mxu0 %v1025
      %1315 = vmatprep.subr.bf16.mxu0 %v1028
      %1316 = vmatpush1.bf16.msra.mxu0 %v1027
      %1317 = vmatprep.subr.bf16.mxu0 %v1030
      %1318 = vmatpush1.bf16.msra.mxu0 %v1029
      %1319 = vmatprep.subr.bf16.mxu0 %v1032
      %1320 = vmatpush1.bf16.msra.mxu0 %v1031
      %1321 = vmatprep.subr.bf16.mxu0 %v1034
      %1322 = vmatpush1.bf16.msra.mxu0 %v1033
      %1323 = vmatprep.subr.bf16.mxu0 %v1036
      %1324 = vmatpush1.bf16.msra.mxu0 %v1035
      %1325 = vmatprep.subr.bf16.mxu0 %v1038
      %1326 = vmatpush1.bf16.msra.mxu0 %v1037
      %1327 = vmatprep.subr.bf16.mxu0 %v1040
      %1328 = vmatpush1.bf16.msra.mxu0 %v1039
      %1329 = vmatprep.subr.bf16.mxu0 %v1042
      %1330 = vmatpush1.bf16.msra.mxu0 %v1041
      %1331 = vmatprep.mubr.bf16.mxu0 %v562
      %1332 = vmatmul.mubr.bf16.gmra.mrb[0].mxu0 %v561
      %v1333 = vpop.f32.mrb[0].mxu0
      %v1334 = vadd.f32 %v540, %v1333
      %v1335 = vpop.f32.mrb[0].mxu0
      %v1336 = vadd.f32 %v544, %v1335
      %v1337 = vpop.f32.mrb[0].mxu0
      %v1338 = vpop.f32.mrb[0].mxu0
      %1339 = vdwg.mxu0
      %1340 = vmatprep.subr.bf16.mxu0 %v1044
      %1341 = vmatpush1.bf16.msra.mxu0 %v1043
      %1342 = vmatprep.subr.bf16.mxu0 %v1046
      %1343 = vmatpush1.bf16.msra.mxu0 %v1045
      %1344 = vmatprep.subr.bf16.mxu0 %v1048
      %1345 = vmatpush1.bf16.msra.mxu0 %v1047
      %1346 = vmatprep.subr.bf16.mxu0 %v1050
      %1347 = vmatpush1.bf16.msra.mxu0 %v1049
      %1348 = vmatprep.subr.bf16.mxu0 %v1052
      %1349 = vmatpush1.bf16.msra.mxu0 %v1051
      %1350 = vmatprep.subr.bf16.mxu0 %v1054
      %1351 = vmatpush1.bf16.msra.mxu0 %v1053
      %1352 = vmatprep.subr.bf16.mxu0 %v1056
      %1353 = vmatpush1.bf16.msra.mxu0 %v1055
      %1354 = vmatprep.subr.bf16.mxu0 %v1058
      %1355 = vmatpush1.bf16.msra.mxu0 %v1057
      %1356 = vmatprep.subr.bf16.mxu0 %v1060
      %1357 = vmatpush1.bf16.msra.mxu0 %v1059
      %1358 = vmatprep.subr.bf16.mxu0 %v1062
      %1359 = vmatpush1.bf16.msra.mxu0 %v1061
      %1360 = vmatprep.subr.bf16.mxu0 %v1064
      %1361 = vmatpush1.bf16.msra.mxu0 %v1063
      %1362 = vmatprep.subr.bf16.mxu0 %v1066
      %1363 = vmatpush1.bf16.msra.mxu0 %v1065
      %1364 = vmatprep.subr.bf16.mxu0 %v1068
      %1365 = vmatpush1.bf16.msra.mxu0 %v1067
      %1366 = vmatprep.subr.bf16.mxu0 %v1070
      %1367 = vmatpush1.bf16.msra.mxu0 %v1069
      %1368 = vmatprep.subr.bf16.mxu0 %v1072
      %1369 = vmatpush1.bf16.msra.mxu0 %v1071
      %1370 = vmatprep.subr.bf16.mxu0 %v1074
      %1371 = vmatpush1.bf16.msra.mxu0 %v1073
      %1372 = vmatprep.mubr.bf16.mxu0 %v564
      %1373 = vmatmul.mubr.bf16.gmra.mrb[0].mxu0 %v563
      %v1374 = vpop.f32.mrb[0].mxu0
      %v1375 = vadd.f32 %v1334, %v1374
      %v1376 = vpop.f32.mrb[0].mxu0
      %v1377 = vadd.f32 %v1336, %v1376
      %v1378 = vpop.f32.mrb[0].mxu0
      %v1379 = vpop.f32.mrb[0].mxu0
      %1380 = vdwg.mxu0
      %1381 = vmatprep.subr.bf16.mxu0 %v1076
      %1382 = vmatpush1.bf16.msra.mxu0 %v1075
      %1383 = vmatprep.subr.bf16.mxu0 %v1078
      %1384 = vmatpush1.bf16.msra.mxu0 %v1077
      %1385 = vmatprep.subr.bf16.mxu0 %v1080
      %1386 = vmatpush1.bf16.msra.mxu0 %v1079
      %1387 = vmatprep.subr.bf16.mxu0 %v1082
      %1388 = vmatpush1.bf16.msra.mxu0 %v1081
      %1389 = vmatprep.subr.bf16.mxu0 %v1084
      %1390 = vmatpush1.bf16.msra.mxu0 %v1083
      %1391 = vmatprep.subr.bf16.mxu0 %v1086
      %1392 = vmatpush1.bf16.msra.mxu0 %v1085
      %1393 = vmatprep.subr.bf16.mxu0 %v1088
      %1394 = vmatpush1.bf16.msra.mxu0 %v1087
      %1395 = vmatprep.subr.bf16.mxu0 %v1090
      %1396 = vmatpush1.bf16.msra.mxu0 %v1089
      %1397 = vmatprep.subr.bf16.mxu0 %v1092
      %1398 = vmatpush1.bf16.msra.mxu0 %v1091
      %1399 = vmatprep.subr.bf16.mxu0 %v1094
      %1400 = vmatpush1.bf16.msra.mxu0 %v1093
      %1401 = vmatprep.subr.bf16.mxu0 %v1096
      %1402 = vmatpush1.bf16.msra.mxu0 %v1095
      %1403 = vmatprep.subr.bf16.mxu0 %v1098
      %1404 = vmatpush1.bf16.msra.mxu0 %v1097
      %1405 = vmatprep.subr.bf16.mxu0 %v1100
      %1406 = vmatpush1.bf16.msra.mxu0 %v1099
      %1407 = vmatprep.subr.bf16.mxu0 %v1102
      %1408 = vmatpush1.bf16.msra.mxu0 %v1101
      %1409 = vmatprep.subr.bf16.mxu0 %v1104
      %1410 = vmatpush1.bf16.msra.mxu0 %v1103
      %1411 = vmatprep.subr.bf16.mxu0 %v1106
      %1412 = vmatpush1.bf16.msra.mxu0 %v1105
      %1413 = vmatprep.mubr.bf16.mxu0 %v566
      %1414 = vmatmul.mubr.bf16.gmra.mrb[0].mxu0 %v565
      %v1415 = vpop.f32.mrb[0].mxu0
      %v1416 = vadd.f32 %v1375, %v1415
      %v1417 = vpop.f32.mrb[0].mxu0
      %v1418 = vadd.f32 %v1377, %v1417
      %v1419 = vpop.f32.mrb[0].mxu0
      %v1420 = vpop.f32.mrb[0].mxu0
      %1421 = vdwg.mxu0
      %1422 = vmatprep.subr.bf16.mxu0 %v1108
      %1423 = vmatpush1.bf16.msra.mxu0 %v1107
      %1424 = vmatprep.subr.bf16.mxu0 %v1110
      %1425 = vmatpush1.bf16.msra.mxu0 %v1109
      %1426 = vmatprep.subr.bf16.mxu0 %v1112
      %1427 = vmatpush1.bf16.msra.mxu0 %v1111
      %1428 = vmatprep.subr.bf16.mxu0 %v1114
      %1429 = vmatpush1.bf16.msra.mxu0 %v1113
      %1430 = vmatprep.subr.bf16.mxu0 %v1116
      %1431 = vmatpush1.bf16.msra.mxu0 %v1115
      %1432 = vmatprep.subr.bf16.mxu0 %v1118
      %1433 = vmatpush1.bf16.msra.mxu0 %v1117
      %1434 = vmatprep.subr.bf16.mxu0 %v1120
      %1435 = vmatpush1.bf16.msra.mxu0 %v1119
      %1436 = vmatprep.subr.bf16.mxu0 %v1122
      %1437 = vmatpush1.bf16.msra.mxu0 %v1121
      %1438 = vmatprep.subr.bf16.mxu0 %v1124
      %1439 = vmatpush1.bf16.msra.mxu0 %v1123
      %1440 = vmatprep.subr.bf16.mxu0 %v1126
      %1441 = vmatpush1.bf16.msra.mxu0 %v1125
      %1442 = vmatprep.subr.bf16.mxu0 %v1128
      %1443 = vmatpush1.bf16.msra.mxu0 %v1127
      %1444 = vmatprep.subr.bf16.mxu0 %v1130
      %1445 = vmatpush1.bf16.msra.mxu0 %v1129
      %1446 = vmatprep.subr.bf16.mxu0 %v1132
      %1447 = vmatpush1.bf16.msra.mxu0 %v1131
      %1448 = vmatprep.subr.bf16.mxu0 %v1134
      %1449 = vmatpush1.bf16.msra.mxu0 %v1133
      %1450 = vmatprep.subr.bf16.mxu0 %v1136
      %1451 = vmatpush1.bf16.msra.mxu0 %v1135
      %1452 = vmatprep.subr.bf16.mxu0 %v1138
      %1453 = vmatpush1.bf16.msra.mxu0 %v1137
      %1454 = vmatprep.mubr.bf16.mxu0 %v568
      %1455 = vmatmul.mubr.bf16.gmra.mrb[0].mxu0 %v567
      %v1456 = vpop.f32.mrb[0].mxu0
      %v1457 = vadd.f32 %v1416, %v1456
      %v1458 = vpop.f32.mrb[0].mxu0
      %v1459 = vadd.f32 %v1418, %v1458
      %v1460 = vpop.f32.mrb[0].mxu0
      %v1461 = vpop.f32.mrb[0].mxu0
      %1462 = vdwg.mxu0
      %1463 = vmatprep.subr.bf16.mxu0 %v1140
      %1464 = vmatpush1.bf16.msra.mxu0 %v1139
      %1465 = vmatprep.subr.bf16.mxu0 %v1142
      %1466 = vmatpush1.bf16.msra.mxu0 %v1141
      %1467 = vmatprep.subr.bf16.mxu0 %v1144
      %1468 = vmatpush1.bf16.msra.mxu0 %v1143
      %1469 = vmatprep.subr.bf16.mxu0 %v1146
      %1470 = vmatpush1.bf16.msra.mxu0 %v1145
      %1471 = vmatprep.subr.bf16.mxu0 %v1148
      %1472 = vmatpush1.bf16.msra.mxu0 %v1147
      %1473 = vmatprep.subr.bf16.mxu0 %v1150
      %1474 = vmatpush1.bf16.msra.mxu0 %v1149
      %1475 = vmatprep.subr.bf16.mxu0 %v1152
      %1476 = vmatpush1.bf16.msra.mxu0 %v1151
      %1477 = vmatprep.subr.bf16.mxu0 %v1154
      %1478 = vmatpush1.bf16.msra.mxu0 %v1153
      %1479 = vmatprep.subr.bf16.mxu0 0
      %1480 = vmatpush1.bf16.msra.mxu0 0
      %1481 = vmatprep.subr.bf16.mxu0 0
      %1482 = vmatpush1.bf16.msra.mxu0 0
      %1483 = vmatprep.subr.bf16.mxu0 0
      %1484 = vmatpush1.bf16.msra.mxu0 0
      %1485 = vmatprep.subr.bf16.mxu0 0
      %1486 = vmatpush1.bf16.msra.mxu0 0
      %1487 = vmatprep.subr.bf16.mxu0 0
      %1488 = vmatpush1.bf16.msra.mxu0 0
      %1489 = vmatprep.subr.bf16.mxu0 0
      %1490 = vmatpush1.bf16.msra.mxu0 0
      %1491 = vmatprep.subr.bf16.mxu0 0
      %1492 = vmatpush1.bf16.msra.mxu0 0
      %1493 = vmatprep.subr.bf16.mxu0 0
      %1494 = vmatpush1.bf16.msra.mxu0 0
      %1495 = vmatprep.mubr.bf16.mxu0 0
      %1496 = vmatmul.mubr.bf16.gmra.mrb[0].mxu0 %v569
      %v1497 = vpop.f32.mrb[0].mxu0
      %v1498 = vadd.f32 %v1457, %v1497
      %v1499 = vpop.f32.mrb[0].mxu0
      %v1500 = vadd.f32 %v1459, %v1499
      %v1501 = vpop.f32.mrb[0].mxu0
      %v1502 = vpop.f32.mrb[0].mxu0
      %1503 = vdwg.mxu0
      %v1504 = vmax.f32 %v1498, 0.0
      %v1505 = vmax.f32 %v1500, 0.0
      %v1506 = vpack.c.bf16 %v1504, %v1504
      %v1507 = vpack.c.bf16 %v1505, %v1505
      %v1508 = vld [vmem:[%s3] sm:$0xff]
      %v1509 = vld [vmem:[%s3 + $0x8] sm:$0xff]
      %v1510 = vld [vmem:[%s3 + $0x10] sm:$0xff]
      %v1511 = vld [vmem:[%s3 + $0x18] sm:$0xff]
      %v1512 = vld [vmem:[%s3 + $0x20] sm:$0xff]
      %v1513 = vld [vmem:[%s3 + $0x28] sm:$0xff]
      %v1514 = vld [vmem:[%s3 + $0x30] sm:$0xff]
      %v1515 = vld [vmem:[%s3 + $0x38] sm:$0xff]
      %v1516 = vld [vmem:[%s3 + $0x40] sm:$0xff]
      %v1517 = vld [vmem:[%s3 + $0x48] sm:$0xff]
      %v1518 = vld [vmem:[%s3 + $0x50] sm:$0xff]
      %v1519 = vld [vmem:[%s3 + $0x58] sm:$0xff]
      %v1520 = vld [vmem:[%s3 + $0x60] sm:$0xff]
      %v1521 = vld [vmem:[%s3 + $0x68] sm:$0xff]
      %v1522 = vld [vmem:[%s3 + $0x70] sm:$0xff]
      %v1523 = vld [vmem:[%s3 + $0x78] sm:$0xff]
      %v1524 = vld [vmem:[%s3 + $0x80] sm:$0xff]
      %v1525 = vld [vmem:[%s3 + $0x88] sm:$0xff]
      %v1526 = vld [vmem:[%s3 + $0x90] sm:$0xff]
      %v1527 = vld [vmem:[%s3 + $0x98] sm:$0xff]
      %v1528 = vld [vmem:[%s3 + $0xa0] sm:$0xff]
      %v1529 = vld [vmem:[%s3 + $0xa8] sm:$0xff]
      %v1530 = vld [vmem:[%s3 + $0xb0] sm:$0xff]
      %v1531 = vld [vmem:[%s3 + $0xb8] sm:$0xff]
      %v1532 = vld [vmem:[%s3 + $0xc0] sm:$0xff]
      %v1533 = vld [vmem:[%s3 + $0xc8] sm:$0xff]
      %v1534 = vld [vmem:[%s3 + $0xd0] sm:$0xff]
      %v1535 = vld [vmem:[%s3 + $0xd8] sm:$0xff]
      %v1536 = vld [vmem:[%s3 + $0xe0] sm:$0xff]
      %v1537 = vld [vmem:[%s3 + $0xe8] sm:$0xff]
      %v1538 = vld [vmem:[%s3 + $0xf0] sm:$0xff]
      %v1539 = vld [vmem:[%s3 + $0xf8] sm:$0xff]
      %s1540 = scalar_lea.vmem %s3, 256
      %v1541 = vld [vmem:[%s1540] sm:$0xff]
      %v1542 = vld [vmem:[%s1540 + $0x8] sm:$0xff]
      %v1543 = vld [vmem:[%s1540 + $0x10] sm:$0xff]
      %v1544 = vld [vmem:[%s1540 + $0x18] sm:$0xff]
      %v1545 = vld [vmem:[%s1540 + $0x20] sm:$0xff]
      %v1546 = vld [vmem:[%s1540 + $0x28] sm:$0xff]
      %v1547 = vld [vmem:[%s1540 + $0x30] sm:$0xff]
      %v1548 = vld [vmem:[%s1540 + $0x38] sm:$0xff]
      %v1549 = vld [vmem:[%s1540 + $0x40] sm:$0xff]
      %v1550 = vld [vmem:[%s1540 + $0x48] sm:$0xff]
      %v1551 = vld [vmem:[%s1540 + $0x50] sm:$0xff]
      %v1552 = vld [vmem:[%s1540 + $0x58] sm:$0xff]
      %v1553 = vld [vmem:[%s1540 + $0x60] sm:$0xff]
      %v1554 = vld [vmem:[%s1540 + $0x68] sm:$0xff]
      %v1555 = vld [vmem:[%s1540 + $0x70] sm:$0xff]
      %v1556 = vld [vmem:[%s1540 + $0x78] sm:$0xff]
      %v1557 = vld [vmem:[%s1540 + $0x80] sm:$0xff]
      %v1558 = vld [vmem:[%s1540 + $0x88] sm:$0xff]
      %v1559 = vld [vmem:[%s1540 + $0x90] sm:$0xff]
      %v1560 = vld [vmem:[%s1540 + $0x98] sm:$0xff]
      %v1561 = vld [vmem:[%s1540 + $0xa0] sm:$0xff]
      %v1562 = vld [vmem:[%s1540 + $0xa8] sm:$0xff]
      %v1563 = vld [vmem:[%s1540 + $0xb0] sm:$0xff]
      %v1564 = vld [vmem:[%s1540 + $0xb8] sm:$0xff]
      %v1565 = vld [vmem:[%s1540 + $0xc0] sm:$0xff]
      %v1566 = vld [vmem:[%s1540 + $0xc8] sm:$0xff]
      %v1567 = vld [vmem:[%s1540 + $0xd0] sm:$0xff]
      %v1568 = vld [vmem:[%s1540 + $0xd8] sm:$0xff]
      %v1569 = vld [vmem:[%s1540 + $0xe0] sm:$0xff]
      %v1570 = vld [vmem:[%s1540 + $0xe8] sm:$0xff]
      %v1571 = vld [vmem:[%s1540 + $0xf0] sm:$0xff]
      %v1572 = vld [vmem:[%s1540 + $0xf8] sm:$0xff]
      %v1574 = vshrl.u32 %v1506, 16
      %v1577 = vshrl.u32 %v1507, 16
      %v1613 = vunpack.c.l.b16 %v1541
      %v1614 = vunpack.c.h.b16 %v1541
      %v1615 = vunpack.c.l.b16 %v1542
      %v1616 = vunpack.c.h.b16 %v1542
      %v1617 = vunpack.c.l.b16 %v1543
      %v1618 = vunpack.c.h.b16 %v1543
      %v1619 = vunpack.c.l.b16 %v1544
      %v1620 = vunpack.c.h.b16 %v1544
      %v1621 = vunpack.c.l.b16 %v1545
      %v1622 = vunpack.c.h.b16 %v1545
      %v1623 = vunpack.c.l.b16 %v1546
      %v1624 = vunpack.c.h.b16 %v1546
      %v1625 = vunpack.c.l.b16 %v1547
      %v1626 = vunpack.c.h.b16 %v1547
      %v1627 = vunpack.c.l.b16 %v1548
      %v1628 = vunpack.c.h.b16 %v1548
      %v1629 = vunpack.c.l.b16 %v1549
      %v1630 = vunpack.c.h.b16 %v1549
      %v1631 = vunpack.c.l.b16 %v1550
      %v1632 = vunpack.c.h.b16 %v1550
      %v1633 = vunpack.c.l.b16 %v1551
      %v1634 = vunpack.c.h.b16 %v1551
      %v1635 = vunpack.c.l.b16 %v1552
      %v1636 = vunpack.c.h.b16 %v1552
      %v1637 = vunpack.c.l.b16 %v1553
      %v1638 = vunpack.c.h.b16 %v1553
      %v1639 = vunpack.c.l.b16 %v1554
      %v1640 = vunpack.c.h.b16 %v1554
      %v1641 = vunpack.c.l.b16 %v1555
      %v1642 = vunpack.c.h.b16 %v1555
      %v1643 = vunpack.c.l.b16 %v1556
      %v1644 = vunpack.c.h.b16 %v1556
      %v1645 = vunpack.c.l.b16 %v1557
      %v1646 = vunpack.c.h.b16 %v1557
      %v1647 = vunpack.c.l.b16 %v1558
      %v1648 = vunpack.c.h.b16 %v1558
      %v1649 = vunpack.c.l.b16 %v1559
      %v1650 = vunpack.c.h.b16 %v1559
      %v1651 = vunpack.c.l.b16 %v1560
      %v1652 = vunpack.c.h.b16 %v1560
      %v1653 = vunpack.c.l.b16 %v1561
      %v1654 = vunpack.c.h.b16 %v1561
      %v1655 = vunpack.c.l.b16 %v1562
      %v1656 = vunpack.c.h.b16 %v1562
      %v1657 = vunpack.c.l.b16 %v1563
      %v1658 = vunpack.c.h.b16 %v1563
      %v1659 = vunpack.c.l.b16 %v1564
      %v1660 = vunpack.c.h.b16 %v1564
      %v1661 = vunpack.c.l.b16 %v1565
      %v1662 = vunpack.c.h.b16 %v1565
      %v1663 = vunpack.c.l.b16 %v1566
      %v1664 = vunpack.c.h.b16 %v1566
      %v1665 = vunpack.c.l.b16 %v1567
      %v1666 = vunpack.c.h.b16 %v1567
      %v1667 = vunpack.c.l.b16 %v1568
      %v1668 = vunpack.c.h.b16 %v1568
      %v1669 = vunpack.c.l.b16 %v1569
      %v1670 = vunpack.c.h.b16 %v1569
      %v1671 = vunpack.c.l.b16 %v1570
      %v1672 = vunpack.c.h.b16 %v1570
      %v1673 = vunpack.c.l.b16 %v1571
      %v1674 = vunpack.c.h.b16 %v1571
      %v1675 = vunpack.c.l.b16 %v1572
      %v1676 = vunpack.c.h.b16 %v1572
      %v1677 = vpack.c.b16 %v1615, %v1613
      %v1678 = vpack.c.b16 %v1616, %v1614
      %v1679 = vpack.c.b16 %v1619, %v1617
      %v1680 = vpack.c.b16 %v1620, %v1618
      %v1681 = vpack.c.b16 %v1623, %v1621
      %v1682 = vpack.c.b16 %v1624, %v1622
      %v1683 = vpack.c.b16 %v1627, %v1625
      %v1684 = vpack.c.b16 %v1628, %v1626
      %v1685 = vpack.c.b16 %v1631, %v1629
      %v1686 = vpack.c.b16 %v1632, %v1630
      %v1687 = vpack.c.b16 %v1635, %v1633
      %v1688 = vpack.c.b16 %v1636, %v1634
      %v1689 = vpack.c.b16 %v1639, %v1637
      %v1690 = vpack.c.b16 %v1640, %v1638
      %v1691 = vpack.c.b16 %v1643, %v1641
      %v1692 = vpack.c.b16 %v1644, %v1642
      %v1693 = vpack.c.b16 %v1647, %v1645
      %v1694 = vpack.c.b16 %v1648, %v1646
      %v1695 = vpack.c.b16 %v1651, %v1649
      %v1696 = vpack.c.b16 %v1652, %v1650
      %v1697 = vpack.c.b16 %v1655, %v1653
      %v1698 = vpack.c.b16 %v1656, %v1654
      %v1699 = vpack.c.b16 %v1659, %v1657
      %v1700 = vpack.c.b16 %v1660, %v1658
      %v1701 = vpack.c.b16 %v1663, %v1661
      %v1702 = vpack.c.b16 %v1664, %v1662
      %v1703 = vpack.c.b16 %v1667, %v1665
      %v1704 = vpack.c.b16 %v1668, %v1666
      %v1705 = vpack.c.b16 %v1671, %v1669
      %v1706 = vpack.c.b16 %v1672, %v1670
      %v1707 = vpack.c.b16 %v1675, %v1673
      %v1708 = vpack.c.b16 %v1676, %v1674
      %1741 = vmatprep.subr.bf16.mxu0 %v1678
      %1742 = vmatpush1.bf16.msra.mxu0 %v1677
      %1743 = vmatprep.subr.bf16.mxu0 %v1680
      %1744 = vmatpush1.bf16.msra.mxu0 %v1679
      %1745 = vmatprep.subr.bf16.mxu0 %v1682
      %1746 = vmatpush1.bf16.msra.mxu0 %v1681
      %1747 = vmatprep.subr.bf16.mxu0 %v1684
      %1748 = vmatpush1.bf16.msra.mxu0 %v1683
      %1749 = vmatprep.subr.bf16.mxu0 %v1686
      %1750 = vmatpush1.bf16.msra.mxu0 %v1685
      %1751 = vmatprep.subr.bf16.mxu0 %v1688
      %1752 = vmatpush1.bf16.msra.mxu0 %v1687
      %1753 = vmatprep.subr.bf16.mxu0 %v1690
      %1754 = vmatpush1.bf16.msra.mxu0 %v1689
      %1755 = vmatprep.subr.bf16.mxu0 %v1692
      %1756 = vmatpush1.bf16.msra.mxu0 %v1691
      %1757 = vmatprep.subr.bf16.mxu0 %v1694
      %1758 = vmatpush1.bf16.msra.mxu0 %v1693
      %1759 = vmatprep.subr.bf16.mxu0 %v1696
      %1760 = vmatpush1.bf16.msra.mxu0 %v1695
      %1761 = vmatprep.subr.bf16.mxu0 %v1698
      %1762 = vmatpush1.bf16.msra.mxu0 %v1697
      %1763 = vmatprep.subr.bf16.mxu0 %v1700
      %1764 = vmatpush1.bf16.msra.mxu0 %v1699
      %1765 = vmatprep.subr.bf16.mxu0 %v1702
      %1766 = vmatpush1.bf16.msra.mxu0 %v1701
      %1767 = vmatprep.subr.bf16.mxu0 %v1704
      %1768 = vmatpush1.bf16.msra.mxu0 %v1703
      %1769 = vmatprep.subr.bf16.mxu0 %v1706
      %1770 = vmatpush1.bf16.msra.mxu0 %v1705
      %1771 = vmatprep.subr.bf16.mxu0 %v1708
      %1772 = vmatpush1.bf16.msra.mxu0 %v1707
      %1773 = vmatprep.mubr.bf16.mxu0 %v1577
      %1774 = vmatmul.mubr.bf16.gmra.mrb[0].mxu0 %v1574
      %v1775 = vpop.f32.mrb[0].mxu0
      %v1776 = vadd.f32 0.0, %v1775
      %v1777 = vpop.f32.mrb[0].mxu0
      %v1778 = vadd.f32 0.0, %v1777
      %v1779 = vpop.f32.mrb[0].mxu0
      %v1780 = vpop.f32.mrb[0].mxu0
      %1781 = vdwg.mxu0
      %v1814 = vunpack.c.l.b16 %v1508
      %v1815 = vunpack.c.h.b16 %v1508
      %v1816 = vunpack.c.l.b16 %v1509
      %v1817 = vunpack.c.h.b16 %v1509
      %v1818 = vunpack.c.l.b16 %v1510
      %v1819 = vunpack.c.h.b16 %v1510
      %v1820 = vunpack.c.l.b16 %v1511
      %v1821 = vunpack.c.h.b16 %v1511
      %v1822 = vunpack.c.l.b16 %v1512
      %v1823 = vunpack.c.h.b16 %v1512
      %v1824 = vunpack.c.l.b16 %v1513
      %v1825 = vunpack.c.h.b16 %v1513
      %v1826 = vunpack.c.l.b16 %v1514
      %v1827 = vunpack.c.h.b16 %v1514
      %v1828 = vunpack.c.l.b16 %v1515
      %v1829 = vunpack.c.h.b16 %v1515
      %v1830 = vunpack.c.l.b16 %v1516
      %v1831 = vunpack.c.h.b16 %v1516
      %v1832 = vunpack.c.l.b16 %v1517
      %v1833 = vunpack.c.h.b16 %v1517
      %v1834 = vunpack.c.l.b16 %v1518
      %v1835 = vunpack.c.h.b16 %v1518
      %v1836 = vunpack.c.l.b16 %v1519
      %v1837 = vunpack.c.h.b16 %v1519
      %v1838 = vunpack.c.l.b16 %v1520
      %v1839 = vunpack.c.h.b16 %v1520
      %v1840 = vunpack.c.l.b16 %v1521
      %v1841 = vunpack.c.h.b16 %v1521
      %v1842 = vunpack.c.l.b16 %v1522
      %v1843 = vunpack.c.h.b16 %v1522
      %v1844 = vunpack.c.l.b16 %v1523
      %v1845 = vunpack.c.h.b16 %v1523
      %v1846 = vunpack.c.l.b16 %v1524
      %v1847 = vunpack.c.h.b16 %v1524
      %v1848 = vunpack.c.l.b16 %v1525
      %v1849 = vunpack.c.h.b16 %v1525
      %v1850 = vunpack.c.l.b16 %v1526
      %v1851 = vunpack.c.h.b16 %v1526
      %v1852 = vunpack.c.l.b16 %v1527
      %v1853 = vunpack.c.h.b16 %v1527
      %v1854 = vunpack.c.l.b16 %v1528
      %v1855 = vunpack.c.h.b16 %v1528
      %v1856 = vunpack.c.l.b16 %v1529
      %v1857 = vunpack.c.h.b16 %v1529
      %v1858 = vunpack.c.l.b16 %v1530
      %v1859 = vunpack.c.h.b16 %v1530
      %v1860 = vunpack.c.l.b16 %v1531
      %v1861 = vunpack.c.h.b16 %v1531
      %v1862 = vunpack.c.l.b16 %v1532
      %v1863 = vunpack.c.h.b16 %v1532
      %v1864 = vunpack.c.l.b16 %v1533
      %v1865 = vunpack.c.h.b16 %v1533
      %v1866 = vunpack.c.l.b16 %v1534
      %v1867 = vunpack.c.h.b16 %v1534
      %v1868 = vunpack.c.l.b16 %v1535
      %v1869 = vunpack.c.h.b16 %v1535
      %v1870 = vunpack.c.l.b16 %v1536
      %v1871 = vunpack.c.h.b16 %v1536
      %v1872 = vunpack.c.l.b16 %v1537
      %v1873 = vunpack.c.h.b16 %v1537
      %v1874 = vunpack.c.l.b16 %v1538
      %v1875 = vunpack.c.h.b16 %v1538
      %v1876 = vunpack.c.l.b16 %v1539
      %v1877 = vunpack.c.h.b16 %v1539
      %v1878 = vpack.c.b16 %v1816, %v1814
      %v1879 = vpack.c.b16 %v1817, %v1815
      %v1880 = vpack.c.b16 %v1820, %v1818
      %v1881 = vpack.c.b16 %v1821, %v1819
      %v1882 = vpack.c.b16 %v1824, %v1822
      %v1883 = vpack.c.b16 %v1825, %v1823
      %v1884 = vpack.c.b16 %v1828, %v1826
      %v1885 = vpack.c.b16 %v1829, %v1827
      %v1886 = vpack.c.b16 %v1832, %v1830
      %v1887 = vpack.c.b16 %v1833, %v1831
      %v1888 = vpack.c.b16 %v1836, %v1834
      %v1889 = vpack.c.b16 %v1837, %v1835
      %v1890 = vpack.c.b16 %v1840, %v1838
      %v1891 = vpack.c.b16 %v1841, %v1839
      %v1892 = vpack.c.b16 %v1844, %v1842
      %v1893 = vpack.c.b16 %v1845, %v1843
      %v1894 = vpack.c.b16 %v1848, %v1846
      %v1895 = vpack.c.b16 %v1849, %v1847
      %v1896 = vpack.c.b16 %v1852, %v1850
      %v1897 = vpack.c.b16 %v1853, %v1851
      %v1898 = vpack.c.b16 %v1856, %v1854
      %v1899 = vpack.c.b16 %v1857, %v1855
      %v1900 = vpack.c.b16 %v1860, %v1858
      %v1901 = vpack.c.b16 %v1861, %v1859
      %v1902 = vpack.c.b16 %v1864, %v1862
      %v1903 = vpack.c.b16 %v1865, %v1863
      %v1904 = vpack.c.b16 %v1868, %v1866
      %v1905 = vpack.c.b16 %v1869, %v1867
      %v1906 = vpack.c.b16 %v1872, %v1870
      %v1907 = vpack.c.b16 %v1873, %v1871
      %v1908 = vpack.c.b16 %v1876, %v1874
      %v1909 = vpack.c.b16 %v1877, %v1875
      %1942 = vmatprep.subr.bf16.mxu0 %v1879
      %1943 = vmatpush1.bf16.msra.mxu0 %v1878
      %1944 = vmatprep.subr.bf16.mxu0 %v1881
      %1945 = vmatpush1.bf16.msra.mxu0 %v1880
      %1946 = vmatprep.subr.bf16.mxu0 %v1883
      %1947 = vmatpush1.bf16.msra.mxu0 %v1882
      %1948 = vmatprep.subr.bf16.mxu0 %v1885
      %1949 = vmatpush1.bf16.msra.mxu0 %v1884
      %1950 = vmatprep.subr.bf16.mxu0 %v1887
      %1951 = vmatpush1.bf16.msra.mxu0 %v1886
      %1952 = vmatprep.subr.bf16.mxu0 %v1889
      %1953 = vmatpush1.bf16.msra.mxu0 %v1888
      %1954 = vmatprep.subr.bf16.mxu0 %v1891
      %1955 = vmatpush1.bf16.msra.mxu0 %v1890
      %1956 = vmatprep.subr.bf16.mxu0 %v1893
      %1957 = vmatpush1.bf16.msra.mxu0 %v1892
      %1958 = vmatprep.subr.bf16.mxu0 %v1895
      %1959 = vmatpush1.bf16.msra.mxu0 %v1894
      %1960 = vmatprep.subr.bf16.mxu0 %v1897
      %1961 = vmatpush1.bf16.msra.mxu0 %v1896
      %1962 = vmatprep.subr.bf16.mxu0 %v1899
      %1963 = vmatpush1.bf16.msra.mxu0 %v1898
      %1964 = vmatprep.subr.bf16.mxu0 %v1901
      %1965 = vmatpush1.bf16.msra.mxu0 %v1900
      %1966 = vmatprep.subr.bf16.mxu0 %v1903
      %1967 = vmatpush1.bf16.msra.mxu0 %v1902
      %1968 = vmatprep.subr.bf16.mxu0 %v1905
      %1969 = vmatpush1.bf16.msra.mxu0 %v1904
      %1970 = vmatprep.subr.bf16.mxu0 %v1907
      %1971 = vmatpush1.bf16.msra.mxu0 %v1906
      %1972 = vmatprep.subr.bf16.mxu0 %v1909
      %1973 = vmatpush1.bf16.msra.mxu0 %v1908
      %1974 = vmatprep.mubr.bf16.mxu0 %v1507
      %1975 = vmatmul.mubr.bf16.gmra.mrb[0].mxu0 %v1506
      %v1976 = vpop.f32.mrb[0].mxu0
      %v1977 = vadd.f32 %v1776, %v1976
      %v1978 = vpop.f32.mrb[0].mxu0
      %v1979 = vadd.f32 %v1778, %v1978
      %v1980 = vpop.f32.mrb[0].mxu0
      %v1981 = vpop.f32.mrb[0].mxu0
      %1982 = vdwg.mxu0
      %s1983 = scalar_lea.vmem %s3, 512
      %v1984 = vld [vmem:[%s1983] sm:$0xff]
      %v1985 = vld [vmem:[%s1983 + $0x8] sm:$0xff]
      %v1986 = vld [vmem:[%s1983 + $0x10] sm:$0xff]
      %v1987 = vld [vmem:[%s1983 + $0x18] sm:$0xff]
      %v1988 = vld [vmem:[%s1983 + $0x20] sm:$0xff]
      %v1989 = vld [vmem:[%s1983 + $0x28] sm:$0xff]
      %v1990 = vld [vmem:[%s1983 + $0x30] sm:$0xff]
      %v1991 = vld [vmem:[%s1983 + $0x38] sm:$0xff]
      %v1992 = vld [vmem:[%s1983 + $0x40] sm:$0xff]
      %v1993 = vld [vmem:[%s1983 + $0x48] sm:$0xff]
      %v1994 = vld [vmem:[%s1983 + $0x50] sm:$0xff]
      %v1995 = vld [vmem:[%s1983 + $0x58] sm:$0xff]
      %v1996 = vld [vmem:[%s1983 + $0x60] sm:$0xff]
      %v1997 = vld [vmem:[%s1983 + $0x68] sm:$0xff]
      %v1998 = vld [vmem:[%s1983 + $0x70] sm:$0xff]
      %v1999 = vld [vmem:[%s1983 + $0x78] sm:$0xff]
      %v2000 = vld [vmem:[%s1983 + $0x80] sm:$0xff]
      %v2001 = vld [vmem:[%s1983 + $0x88] sm:$0xff]
      %v2002 = vld [vmem:[%s1983 + $0x90] sm:$0xff]
      %v2003 = vld [vmem:[%s1983 + $0x98] sm:$0xff]
      %v2004 = vld [vmem:[%s1983 + $0xa0] sm:$0xff]
      %v2005 = vld [vmem:[%s1983 + $0xa8] sm:$0xff]
      %v2006 = vld [vmem:[%s1983 + $0xb0] sm:$0xff]
      %v2007 = vld [vmem:[%s1983 + $0xb8] sm:$0xff]
      %v2008 = vld [vmem:[%s1983 + $0xc0] sm:$0xff]
      %v2009 = vld [vmem:[%s1983 + $0xc8] sm:$0xff]
      %v2010 = vld [vmem:[%s1983 + $0xd0] sm:$0xff]
      %v2011 = vld [vmem:[%s1983 + $0xd8] sm:$0xff]
      %v2012 = vld [vmem:[%s1983 + $0xe0] sm:$0xff]
      %v2013 = vld [vmem:[%s1983 + $0xe8] sm:$0xff]
      %v2014 = vld [vmem:[%s1983 + $0xf0] sm:$0xff]
      %v2015 = vld [vmem:[%s1983 + $0xf8] sm:$0xff]
      %v2018 = vrot.slane %v1506, 1
      %v2019 = vrot.slane %v1507, 1
      %v2054 = vunpack.c.l.b16 %v1984
      %v2055 = vunpack.c.h.b16 %v1984
      %v2056 = vunpack.c.l.b16 %v1985
      %v2057 = vunpack.c.h.b16 %v1985
      %v2058 = vunpack.c.l.b16 %v1986
      %v2059 = vunpack.c.h.b16 %v1986
      %v2060 = vunpack.c.l.b16 %v1987
      %v2061 = vunpack.c.h.b16 %v1987
      %v2062 = vunpack.c.l.b16 %v1988
      %v2063 = vunpack.c.h.b16 %v1988
      %v2064 = vunpack.c.l.b16 %v1989
      %v2065 = vunpack.c.h.b16 %v1989
      %v2066 = vunpack.c.l.b16 %v1990
      %v2067 = vunpack.c.h.b16 %v1990
      %v2068 = vunpack.c.l.b16 %v1991
      %v2069 = vunpack.c.h.b16 %v1991
      %v2070 = vunpack.c.l.b16 %v1992
      %v2071 = vunpack.c.h.b16 %v1992
      %v2072 = vunpack.c.l.b16 %v1993
      %v2073 = vunpack.c.h.b16 %v1993
      %v2074 = vunpack.c.l.b16 %v1994
      %v2075 = vunpack.c.h.b16 %v1994
      %v2076 = vunpack.c.l.b16 %v1995
      %v2077 = vunpack.c.h.b16 %v1995
      %v2078 = vunpack.c.l.b16 %v1996
      %v2079 = vunpack.c.h.b16 %v1996
      %v2080 = vunpack.c.l.b16 %v1997
      %v2081 = vunpack.c.h.b16 %v1997
      %v2082 = vunpack.c.l.b16 %v1998
      %v2083 = vunpack.c.h.b16 %v1998
      %v2084 = vunpack.c.l.b16 %v1999
      %v2085 = vunpack.c.h.b16 %v1999
      %v2086 = vunpack.c.l.b16 %v2000
      %v2087 = vunpack.c.h.b16 %v2000
      %v2088 = vunpack.c.l.b16 %v2001
      %v2089 = vunpack.c.h.b16 %v2001
      %v2090 = vunpack.c.l.b16 %v2002
      %v2091 = vunpack.c.h.b16 %v2002
      %v2092 = vunpack.c.l.b16 %v2003
      %v2093 = vunpack.c.h.b16 %v2003
      %v2094 = vunpack.c.l.b16 %v2004
      %v2095 = vunpack.c.h.b16 %v2004
      %v2096 = vunpack.c.l.b16 %v2005
      %v2097 = vunpack.c.h.b16 %v2005
      %v2098 = vunpack.c.l.b16 %v2006
      %v2099 = vunpack.c.h.b16 %v2006
      %v2100 = vunpack.c.l.b16 %v2007
      %v2101 = vunpack.c.h.b16 %v2007
      %v2102 = vunpack.c.l.b16 %v2008
      %v2103 = vunpack.c.h.b16 %v2008
      %v2104 = vunpack.c.l.b16 %v2009
      %v2105 = vunpack.c.h.b16 %v2009
      %v2106 = vunpack.c.l.b16 %v2010
      %v2107 = vunpack.c.h.b16 %v2010
      %v2108 = vunpack.c.l.b16 %v2011
      %v2109 = vunpack.c.h.b16 %v2011
      %v2110 = vunpack.c.l.b16 %v2012
      %v2111 = vunpack.c.h.b16 %v2012
      %v2112 = vunpack.c.l.b16 %v2013
      %v2113 = vunpack.c.h.b16 %v2013
      %v2114 = vunpack.c.l.b16 %v2014
      %v2115 = vunpack.c.h.b16 %v2014
      %v2116 = vunpack.c.l.b16 %v2015
      %v2117 = vunpack.c.h.b16 %v2015
      %v2118 = vpack.c.b16 %v2056, %v2054
      %v2119 = vpack.c.b16 %v2057, %v2055
      %v2120 = vpack.c.b16 %v2060, %v2058
      %v2121 = vpack.c.b16 %v2061, %v2059
      %v2122 = vpack.c.b16 %v2064, %v2062
      %v2123 = vpack.c.b16 %v2065, %v2063
      %v2124 = vpack.c.b16 %v2068, %v2066
      %v2125 = vpack.c.b16 %v2069, %v2067
      %v2126 = vpack.c.b16 %v2072, %v2070
      %v2127 = vpack.c.b16 %v2073, %v2071
      %v2128 = vpack.c.b16 %v2076, %v2074
      %v2129 = vpack.c.b16 %v2077, %v2075
      %v2130 = vpack.c.b16 %v2080, %v2078
      %v2131 = vpack.c.b16 %v2081, %v2079
      %v2132 = vpack.c.b16 %v2084, %v2082
      %v2133 = vpack.c.b16 %v2085, %v2083
      %v2134 = vpack.c.b16 %v2088, %v2086
      %v2135 = vpack.c.b16 %v2089, %v2087
      %v2136 = vpack.c.b16 %v2092, %v2090
      %v2137 = vpack.c.b16 %v2093, %v2091
      %v2138 = vpack.c.b16 %v2096, %v2094
      %v2139 = vpack.c.b16 %v2097, %v2095
      %v2140 = vpack.c.b16 %v2100, %v2098
      %v2141 = vpack.c.b16 %v2101, %v2099
      %v2142 = vpack.c.b16 %v2104, %v2102
      %v2143 = vpack.c.b16 %v2105, %v2103
      %v2144 = vpack.c.b16 %v2108, %v2106
      %v2145 = vpack.c.b16 %v2109, %v2107
      %v2146 = vpack.c.b16 %v2112, %v2110
      %v2147 = vpack.c.b16 %v2113, %v2111
      %v2148 = vpack.c.b16 %v2116, %v2114
      %v2149 = vpack.c.b16 %v2117, %v2115
      %2182 = vmatprep.subr.bf16.mxu0 %v2119
      %2183 = vmatpush1.bf16.msra.mxu0 %v2118
      %2184 = vmatprep.subr.bf16.mxu0 %v2121
      %2185 = vmatpush1.bf16.msra.mxu0 %v2120
      %2186 = vmatprep.subr.bf16.mxu0 %v2123
      %2187 = vmatpush1.bf16.msra.mxu0 %v2122
      %2188 = vmatprep.subr.bf16.mxu0 %v2125
      %2189 = vmatpush1.bf16.msra.mxu0 %v2124
      %2190 = vmatprep.subr.bf16.mxu0 %v2127
      %2191 = vmatpush1.bf16.msra.mxu0 %v2126
      %2192 = vmatprep.subr.bf16.mxu0 %v2129
      %2193 = vmatpush1.bf16.msra.mxu0 %v2128
      %2194 = vmatprep.subr.bf16.mxu0 %v2131
      %2195 = vmatpush1.bf16.msra.mxu0 %v2130
      %2196 = vmatprep.subr.bf16.mxu0 %v2133
      %2197 = vmatpush1.bf16.msra.mxu0 %v2132
      %2198 = vmatprep.subr.bf16.mxu0 %v2135
      %2199 = vmatpush1.bf16.msra.mxu0 %v2134
      %2200 = vmatprep.subr.bf16.mxu0 %v2137
      %2201 = vmatpush1.bf16.msra.mxu0 %v2136
      %2202 = vmatprep.subr.bf16.mxu0 %v2139
      %2203 = vmatpush1.bf16.msra.mxu0 %v2138
      %2204 = vmatprep.subr.bf16.mxu0 %v2141
      %2205 = vmatpush1.bf16.msra.mxu0 %v2140
      %2206 = vmatprep.subr.bf16.mxu0 %v2143
      %2207 = vmatpush1.bf16.msra.mxu0 %v2142
      %2208 = vmatprep.subr.bf16.mxu0 %v2145
      %2209 = vmatpush1.bf16.msra.mxu0 %v2144
      %2210 = vmatprep.subr.bf16.mxu0 %v2147
      %2211 = vmatpush1.bf16.msra.mxu0 %v2146
      %2212 = vmatprep.subr.bf16.mxu0 %v2149
      %2213 = vmatpush1.bf16.msra.mxu0 %v2148
      %2214 = vmatprep.mubr.bf16.mxu0 %v2019
      %2215 = vmatmul.mubr.bf16.gmra.mrb[0].mxu0 %v2018
      %v2216 = vpop.f32.mrb[0].mxu0
      %v2217 = vadd.f32 0.0, %v2216
      %v2218 = vpop.f32.mrb[0].mxu0
      %v2219 = vadd.f32 0.0, %v2218
      %v2220 = vpop.f32.mrb[0].mxu0
      %v2221 = vpop.f32.mrb[0].mxu0
      %2222 = vdwg.mxu0
      %v2223 = vadd.f32 %v1977, %v2217
      %v2224 = vadd.f32 %v1979, %v2219
      %s2225 = scalar_lea.vmem %s3, 768
      %v2226 = vld [vmem:[%s2225] sm:$0xff]
      %v2227 = vld [vmem:[%s2225 + $0x8] sm:$0xff]
      %v2228 = vld [vmem:[%s2225 + $0x10] sm:$0xff]
      %v2229 = vld [vmem:[%s2225 + $0x18] sm:$0xff]
      %v2230 = vld [vmem:[%s2225 + $0x20] sm:$0xff]
      %v2231 = vld [vmem:[%s2225 + $0x28] sm:$0xff]
      %v2232 = vld [vmem:[%s2225 + $0x30] sm:$0xff]
      %v2233 = vld [vmem:[%s2225 + $0x38] sm:$0xff]
      %v2234 = vld [vmem:[%s2225 + $0x40] sm:$0xff]
      %v2235 = vld [vmem:[%s2225 + $0x48] sm:$0xff]
      %v2236 = vld [vmem:[%s2225 + $0x50] sm:$0xff]
      %v2237 = vld [vmem:[%s2225 + $0x58] sm:$0xff]
      %v2238 = vld [vmem:[%s2225 + $0x60] sm:$0xff]
      %v2239 = vld [vmem:[%s2225 + $0x68] sm:$0xff]
      %v2240 = vld [vmem:[%s2225 + $0x70] sm:$0xff]
      %v2241 = vld [vmem:[%s2225 + $0x78] sm:$0xff]
      %v2242 = vld [vmem:[%s2225 + $0x80] sm:$0xff]
      %v2243 = vld [vmem:[%s2225 + $0x88] sm:$0xff]
      %v2244 = vld [vmem:[%s2225 + $0x90] sm:$0xff]
      %v2245 = vld [vmem:[%s2225 + $0x98] sm:$0xff]
      %v2246 = vld [vmem:[%s2225 + $0xa0] sm:$0xff]
      %v2247 = vld [vmem:[%s2225 + $0xa8] sm:$0xff]
      %v2248 = vld [vmem:[%s2225 + $0xb0] sm:$0xff]
      %v2249 = vld [vmem:[%s2225 + $0xb8] sm:$0xff]
      %v2250 = vld [vmem:[%s2225 + $0xc0] sm:$0xff]
      %v2251 = vld [vmem:[%s2225 + $0xc8] sm:$0xff]
      %v2252 = vld [vmem:[%s2225 + $0xd0] sm:$0xff]
      %v2253 = vld [vmem:[%s2225 + $0xd8] sm:$0xff]
      %v2254 = vld [vmem:[%s2225 + $0xe0] sm:$0xff]
      %v2255 = vld [vmem:[%s2225 + $0xe8] sm:$0xff]
      %v2256 = vld [vmem:[%s2225 + $0xf0] sm:$0xff]
      %v2257 = vld [vmem:[%s2225 + $0xf8] sm:$0xff]
      %v2258 = vrot.slane %v1574, 1
      %v2259 = vrot.slane %v1577, 1
      %v2294 = vunpack.c.l.b16 %v2226
      %v2295 = vunpack.c.h.b16 %v2226
      %v2296 = vunpack.c.l.b16 %v2227
      %v2297 = vunpack.c.h.b16 %v2227
      %v2298 = vunpack.c.l.b16 %v2228
      %v2299 = vunpack.c.h.b16 %v2228
      %v2300 = vunpack.c.l.b16 %v2229
      %v2301 = vunpack.c.h.b16 %v2229
      %v2302 = vunpack.c.l.b16 %v2230
      %v2303 = vunpack.c.h.b16 %v2230
      %v2304 = vunpack.c.l.b16 %v2231
      %v2305 = vunpack.c.h.b16 %v2231
      %v2306 = vunpack.c.l.b16 %v2232
      %v2307 = vunpack.c.h.b16 %v2232
      %v2308 = vunpack.c.l.b16 %v2233
      %v2309 = vunpack.c.h.b16 %v2233
      %v2310 = vunpack.c.l.b16 %v2234
      %v2311 = vunpack.c.h.b16 %v2234
      %v2312 = vunpack.c.l.b16 %v2235
      %v2313 = vunpack.c.h.b16 %v2235
      %v2314 = vunpack.c.l.b16 %v2236
      %v2315 = vunpack.c.h.b16 %v2236
      %v2316 = vunpack.c.l.b16 %v2237
      %v2317 = vunpack.c.h.b16 %v2237
      %v2318 = vunpack.c.l.b16 %v2238
      %v2319 = vunpack.c.h.b16 %v2238
      %v2320 = vunpack.c.l.b16 %v2239
      %v2321 = vunpack.c.h.b16 %v2239
      %v2322 = vunpack.c.l.b16 %v2240
      %v2323 = vunpack.c.h.b16 %v2240
      %v2324 = vunpack.c.l.b16 %v2241
      %v2325 = vunpack.c.h.b16 %v2241
      %v2326 = vunpack.c.l.b16 %v2242
      %v2327 = vunpack.c.h.b16 %v2242
      %v2328 = vunpack.c.l.b16 %v2243
      %v2329 = vunpack.c.h.b16 %v2243
      %v2330 = vunpack.c.l.b16 %v2244
      %v2331 = vunpack.c.h.b16 %v2244
      %v2332 = vunpack.c.l.b16 %v2245
      %v2333 = vunpack.c.h.b16 %v2245
      %v2334 = vunpack.c.l.b16 %v2246
      %v2335 = vunpack.c.h.b16 %v2246
      %v2336 = vunpack.c.l.b16 %v2247
      %v2337 = vunpack.c.h.b16 %v2247
      %v2338 = vunpack.c.l.b16 %v2248
      %v2339 = vunpack.c.h.b16 %v2248
      %v2340 = vunpack.c.l.b16 %v2249
      %v2341 = vunpack.c.h.b16 %v2249
      %v2342 = vunpack.c.l.b16 %v2250
      %v2343 = vunpack.c.h.b16 %v2250
      %v2344 = vunpack.c.l.b16 %v2251
      %v2345 = vunpack.c.h.b16 %v2251
      %v2346 = vunpack.c.l.b16 %v2252
      %v2347 = vunpack.c.h.b16 %v2252
      %v2348 = vunpack.c.l.b16 %v2253
      %v2349 = vunpack.c.h.b16 %v2253
      %v2350 = vunpack.c.l.b16 %v2254
      %v2351 = vunpack.c.h.b16 %v2254
      %v2352 = vunpack.c.l.b16 %v2255
      %v2353 = vunpack.c.h.b16 %v2255
      %v2354 = vunpack.c.l.b16 %v2256
      %v2355 = vunpack.c.h.b16 %v2256
      %v2356 = vunpack.c.l.b16 %v2257
      %v2357 = vunpack.c.h.b16 %v2257
      %v2358 = vpack.c.b16 %v2296, %v2294
      %v2359 = vpack.c.b16 %v2297, %v2295
      %v2360 = vpack.c.b16 %v2300, %v2298
      %v2361 = vpack.c.b16 %v2301, %v2299
      %v2362 = vpack.c.b16 %v2304, %v2302
      %v2363 = vpack.c.b16 %v2305, %v2303
      %v2364 = vpack.c.b16 %v2308, %v2306
      %v2365 = vpack.c.b16 %v2309, %v2307
      %v2366 = vpack.c.b16 %v2312, %v2310
      %v2367 = vpack.c.b16 %v2313, %v2311
      %v2368 = vpack.c.b16 %v2316, %v2314
      %v2369 = vpack.c.b16 %v2317, %v2315
      %v2370 = vpack.c.b16 %v2320, %v2318
      %v2371 = vpack.c.b16 %v2321, %v2319
      %v2372 = vpack.c.b16 %v2324, %v2322
      %v2373 = vpack.c.b16 %v2325, %v2323
      %v2374 = vpack.c.b16 %v2328, %v2326
      %v2375 = vpack.c.b16 %v2329, %v2327
      %v2376 = vpack.c.b16 %v2332, %v2330
      %v2377 = vpack.c.b16 %v2333, %v2331
      %v2378 = vpack.c.b16 %v2336, %v2334
      %v2379 = vpack.c.b16 %v2337, %v2335
      %v2380 = vpack.c.b16 %v2340, %v2338
      %v2381 = vpack.c.b16 %v2341, %v2339
      %v2382 = vpack.c.b16 %v2344, %v2342
      %v2383 = vpack.c.b16 %v2345, %v2343
      %v2384 = vpack.c.b16 %v2348, %v2346
      %v2385 = vpack.c.b16 %v2349, %v2347
      %v2386 = vpack.c.b16 %v2352, %v2350
      %v2387 = vpack.c.b16 %v2353, %v2351
      %v2388 = vpack.c.b16 %v2356, %v2354
      %v2389 = vpack.c.b16 %v2357, %v2355
      %2422 = vmatprep.subr.bf16.mxu0 %v2359
      %2423 = vmatpush1.bf16.msra.mxu0 %v2358
      %2424 = vmatprep.subr.bf16.mxu0 %v2361
      %2425 = vmatpush1.bf16.msra.mxu0 %v2360
      %2426 = vmatprep.subr.bf16.mxu0 %v2363
      %2427 = vmatpush1.bf16.msra.mxu0 %v2362
      %2428 = vmatprep.subr.bf16.mxu0 %v2365
      %2429 = vmatpush1.bf16.msra.mxu0 %v2364
      %2430 = vmatprep.subr.bf16.mxu0 %v2367
      %2431 = vmatpush1.bf16.msra.mxu0 %v2366
      %2432 = vmatprep.subr.bf16.mxu0 %v2369
      %2433 = vmatpush1.bf16.msra.mxu0 %v2368
      %2434 = vmatprep.subr.bf16.mxu0 %v2371
      %2435 = vmatpush1.bf16.msra.mxu0 %v2370
      %2436 = vmatprep.subr.bf16.mxu0 %v2373
      %2437 = vmatpush1.bf16.msra.mxu0 %v2372
      %2438 = vmatprep.subr.bf16.mxu0 %v2375
      %2439 = vmatpush1.bf16.msra.mxu0 %v2374
      %2440 = vmatprep.subr.bf16.mxu0 %v2377
      %2441 = vmatpush1.bf16.msra.mxu0 %v2376
      %2442 = vmatprep.subr.bf16.mxu0 %v2379
      %2443 = vmatpush1.bf16.msra.mxu0 %v2378
      %2444 = vmatprep.subr.bf16.mxu0 %v2381
      %2445 = vmatpush1.bf16.msra.mxu0 %v2380
      %2446 = vmatprep.subr.bf16.mxu0 %v2383
      %2447 = vmatpush1.bf16.msra.mxu0 %v2382
      %2448 = vmatprep.subr.bf16.mxu0 %v2385
      %2449 = vmatpush1.bf16.msra.mxu0 %v2384
      %2450 = vmatprep.subr.bf16.mxu0 %v2387
      %2451 = vmatpush1.bf16.msra.mxu0 %v2386
      %2452 = vmatprep.subr.bf16.mxu0 %v2389
      %2453 = vmatpush1.bf16.msra.mxu0 %v2388
      %2454 = vmatprep.mubr.bf16.mxu0 %v2259
      %2455 = vmatmul.mubr.bf16.gmra.mrb[0].mxu0 %v2258
      %v2456 = vpop.f32.mrb[0].mxu0
      %v2457 = vadd.f32 0.0, %v2456
      %v2458 = vpop.f32.mrb[0].mxu0
      %v2459 = vadd.f32 0.0, %v2458
      %v2460 = vpop.f32.mrb[0].mxu0
      %v2461 = vpop.f32.mrb[0].mxu0
      %2462 = vdwg.mxu0
      %v2463 = vadd.f32 %v2223, %v2457
      %v2464 = vadd.f32 %v2224, %v2459
      %v2465 = vld [vmem:[%s4] sm:$0x3]
      %v2467 = vlaneseq
      %v2468 = vshrl.u32 %v2467, 7
      %v2469 = vsub.s32 0, %v2468
      %v2470 = vrot.slane %v2465, %v2469
      %v2471 = vlaneseq
      %v2472 = vshrl.u32 %v2471, 7
      %v2473 = vsub.s32 1, %v2472
      %v2474 = vrot.slane %v2465, %v2473
      %v2477 = vadd.f32 %v2463, %v2470
      %v2478 = vadd.f32 %v2464, %v2474
      %v2479 = vmax.f32 %v2477, 0.0
      %v2480 = vmax.f32 %v2478, 0.0
      %v2481 = vpack.c.bf16 %v2479, %v2479
      %v2482 = vpack.c.bf16 %v2480, %v2480
      %2483 = vmatprep.subr.bf16.mxu0 %v1678
      %2484 = vmatpush1.bf16.msra.mxu0 %v1677
      %2485 = vmatprep.subr.bf16.mxu0 %v1680
      %2486 = vmatpush1.bf16.msra.mxu0 %v1679
      %2487 = vmatprep.subr.bf16.mxu0 %v1682
      %2488 = vmatpush1.bf16.msra.mxu0 %v1681
      %2489 = vmatprep.subr.bf16.mxu0 %v1684
      %2490 = vmatpush1.bf16.msra.mxu0 %v1683
      %2491 = vmatprep.subr.bf16.mxu0 %v1686
      %2492 = vmatpush1.bf16.msra.mxu0 %v1685
      %2493 = vmatprep.subr.bf16.mxu0 %v1688
      %2494 = vmatpush1.bf16.msra.mxu0 %v1687
      %2495 = vmatprep.subr.bf16.mxu0 %v1690
      %2496 = vmatpush1.bf16.msra.mxu0 %v1689
      %2497 = vmatprep.subr.bf16.mxu0 %v1692
      %2498 = vmatpush1.bf16.msra.mxu0 %v1691
      %2499 = vmatprep.subr.bf16.mxu0 %v1694
      %2500 = vmatpush1.bf16.msra.mxu0 %v1693
      %2501 = vmatprep.subr.bf16.mxu0 %v1696
      %2502 = vmatpush1.bf16.msra.mxu0 %v1695
      %2503 = vmatprep.subr.bf16.mxu0 %v1698
      %2504 = vmatpush1.bf16.msra.mxu0 %v1697
      %2505 = vmatprep.subr.bf16.mxu0 %v1700
      %2506 = vmatpush1.bf16.msra.mxu0 %v1699
      %2507 = vmatprep.subr.bf16.mxu0 %v1702
      %2508 = vmatpush1.bf16.msra.mxu0 %v1701
      %2509 = vmatprep.subr.bf16.mxu0 %v1704
      %2510 = vmatpush1.bf16.msra.mxu0 %v1703
      %2511 = vmatprep.subr.bf16.mxu0 %v1706
      %2512 = vmatpush1.bf16.msra.mxu0 %v1705
      %2513 = vmatprep.subr.bf16.mxu0 %v1708
      %2514 = vmatpush1.bf16.msra.mxu0 %v1707
      %2515 = vmatprep.mubr.bf16.mxu0 %v2259
      %2516 = vmatmul.mubr.bf16.gmra.mrb[0].mxu0 %v2258
      %v2517 = vpop.f32.mrb[0].mxu0
      %v2518 = vadd.f32 0.0, %v2517
      %v2519 = vpop.f32.mrb[0].mxu0
      %v2520 = vadd.f32 0.0, %v2519
      %v2521 = vpop.f32.mrb[0].mxu0
      %v2522 = vpop.f32.mrb[0].mxu0
      %2523 = vdwg.mxu0
      %2524 = vmatprep.subr.bf16.mxu0 %v1879
      %2525 = vmatpush1.bf16.msra.mxu0 %v1878
      %2526 = vmatprep.subr.bf16.mxu0 %v1881
      %2527 = vmatpush1.bf16.msra.mxu0 %v1880
      %2528 = vmatprep.subr.bf16.mxu0 %v1883
      %2529 = vmatpush1.bf16.msra.mxu0 %v1882
      %2530 = vmatprep.subr.bf16.mxu0 %v1885
      %2531 = vmatpush1.bf16.msra.mxu0 %v1884
      %2532 = vmatprep.subr.bf16.mxu0 %v1887
      %2533 = vmatpush1.bf16.msra.mxu0 %v1886
      %2534 = vmatprep.subr.bf16.mxu0 %v1889
      %2535 = vmatpush1.bf16.msra.mxu0 %v1888
      %2536 = vmatprep.subr.bf16.mxu0 %v1891
      %2537 = vmatpush1.bf16.msra.mxu0 %v1890
      %2538 = vmatprep.subr.bf16.mxu0 %v1893
      %2539 = vmatpush1.bf16.msra.mxu0 %v1892
      %2540 = vmatprep.subr.bf16.mxu0 %v1895
      %2541 = vmatpush1.bf16.msra.mxu0 %v1894
      %2542 = vmatprep.subr.bf16.mxu0 %v1897
      %2543 = vmatpush1.bf16.msra.mxu0 %v1896
      %2544 = vmatprep.subr.bf16.mxu0 %v1899
      %2545 = vmatpush1.bf16.msra.mxu0 %v1898
      %2546 = vmatprep.subr.bf16.mxu0 %v1901
      %2547 = vmatpush1.bf16.msra.mxu0 %v1900
      %2548 = vmatprep.subr.bf16.mxu0 %v1903
      %2549 = vmatpush1.bf16.msra.mxu0 %v1902
      %2550 = vmatprep.subr.bf16.mxu0 %v1905
      %2551 = vmatpush1.bf16.msra.mxu0 %v1904
      %2552 = vmatprep.subr.bf16.mxu0 %v1907
      %2553 = vmatpush1.bf16.msra.mxu0 %v1906
      %2554 = vmatprep.subr.bf16.mxu0 %v1909
      %2555 = vmatpush1.bf16.msra.mxu0 %v1908
      %2556 = vmatprep.mubr.bf16.mxu0 %v2019
      %2557 = vmatmul.mubr.bf16.gmra.mrb[0].mxu0 %v2018
      %v2558 = vpop.f32.mrb[0].mxu0
      %v2559 = vadd.f32 %v2518, %v2558
      %v2560 = vpop.f32.mrb[0].mxu0
      %v2561 = vadd.f32 %v2520, %v2560
      %v2562 = vpop.f32.mrb[0].mxu0
      %v2563 = vpop.f32.mrb[0].mxu0
      %2564 = vdwg.mxu0
      %v2565 = vrot.slane %v1506, 2
      %v2566 = vrot.slane %v1507, 2
      %2569 = vmatprep.subr.bf16.mxu0 %v2119
      %2570 = vmatpush1.bf16.msra.mxu0 %v2118
      %2571 = vmatprep.subr.bf16.mxu0 %v2121
      %2572 = vmatpush1.bf16.msra.mxu0 %v2120
      %2573 = vmatprep.subr.bf16.mxu0 %v2123
      %2574 = vmatpush1.bf16.msra.mxu0 %v2122
      %2575 = vmatprep.subr.bf16.mxu0 %v2125
      %2576 = vmatpush1.bf16.msra.mxu0 %v2124
      %2577 = vmatprep.subr.bf16.mxu0 %v2127
      %2578 = vmatpush1.bf16.msra.mxu0 %v2126
      %2579 = vmatprep.subr.bf16.mxu0 %v2129
      %2580 = vmatpush1.bf16.msra.mxu0 %v2128
      %2581 = vmatprep.subr.bf16.mxu0 %v2131
      %2582 = vmatpush1.bf16.msra.mxu0 %v2130
      %2583 = vmatprep.subr.bf16.mxu0 %v2133
      %2584 = vmatpush1.bf16.msra.mxu0 %v2132
      %2585 = vmatprep.subr.bf16.mxu0 %v2135
      %2586 = vmatpush1.bf16.msra.mxu0 %v2134
      %2587 = vmatprep.subr.bf16.mxu0 %v2137
      %2588 = vmatpush1.bf16.msra.mxu0 %v2136
      %2589 = vmatprep.subr.bf16.mxu0 %v2139
      %2590 = vmatpush1.bf16.msra.mxu0 %v2138
      %2591 = vmatprep.subr.bf16.mxu0 %v2141
      %2592 = vmatpush1.bf16.msra.mxu0 %v2140
      %2593 = vmatprep.subr.bf16.mxu0 %v2143
      %2594 = vmatpush1.bf16.msra.mxu0 %v2142
      %2595 = vmatprep.subr.bf16.mxu0 %v2145
      %2596 = vmatpush1.bf16.msra.mxu0 %v2144
      %2597 = vmatprep.subr.bf16.mxu0 %v2147
      %2598 = vmatpush1.bf16.msra.mxu0 %v2146
      %2599 = vmatprep.subr.bf16.mxu0 %v2149
      %2600 = vmatpush1.bf16.msra.mxu0 %v2148
      %2601 = vmatprep.mubr.bf16.mxu0 %v2566
      %2602 = vmatmul.mubr.bf16.gmra.mrb[0].mxu0 %v2565
      %v2603 = vpop.f32.mrb[0].mxu0
      %v2604 = vadd.f32 0.0, %v2603
      %v2605 = vpop.f32.mrb[0].mxu0
      %v2606 = vadd.f32 0.0, %v2605
      %v2607 = vpop.f32.mrb[0].mxu0
      %v2608 = vpop.f32.mrb[0].mxu0
      %2609 = vdwg.mxu0
      %v2610 = vadd.f32 %v2559, %v2604
      %v2611 = vadd.f32 %v2561, %v2606
      %v2612 = vrot.slane %v1574, 2
      %v2613 = vrot.slane %v1577, 2
      %2616 = vmatprep.subr.bf16.mxu0 %v2359
      %2617 = vmatpush1.bf16.msra.mxu0 %v2358
      %2618 = vmatprep.subr.bf16.mxu0 %v2361
      %2619 = vmatpush1.bf16.msra.mxu0 %v2360
      %2620 = vmatprep.subr.bf16.mxu0 %v2363
      %2621 = vmatpush1.bf16.msra.mxu0 %v2362
      %2622 = vmatprep.subr.bf16.mxu0 %v2365
      %2623 = vmatpush1.bf16.msra.mxu0 %v2364
      %2624 = vmatprep.subr.bf16.mxu0 %v2367
      %2625 = vmatpush1.bf16.msra.mxu0 %v2366
      %2626 = vmatprep.subr.bf16.mxu0 %v2369
      %2627 = vmatpush1.bf16.msra.mxu0 %v2368
      %2628 = vmatprep.subr.bf16.mxu0 %v2371
      %2629 = vmatpush1.bf16.msra.mxu0 %v2370
      %2630 = vmatprep.subr.bf16.mxu0 %v2373
      %2631 = vmatpush1.bf16.msra.mxu0 %v2372
      %2632 = vmatprep.subr.bf16.mxu0 %v2375
      %2633 = vmatpush1.bf16.msra.mxu0 %v2374
      %2634 = vmatprep.subr.bf16.mxu0 %v2377
      %2635 = vmatpush1.bf16.msra.mxu0 %v2376
      %2636 = vmatprep.subr.bf16.mxu0 %v2379
      %2637 = vmatpush1.bf16.msra.mxu0 %v2378
      %2638 = vmatprep.subr.bf16.mxu0 %v2381
      %2639 = vmatpush1.bf16.msra.mxu0 %v2380
      %2640 = vmatprep.subr.bf16.mxu0 %v2383
      %2641 = vmatpush1.bf16.msra.mxu0 %v2382
      %2642 = vmatprep.subr.bf16.mxu0 %v2385
      %2643 = vmatpush1.bf16.msra.mxu0 %v2384
      %2644 = vmatprep.subr.bf16.mxu0 %v2387
      %2645 = vmatpush1.bf16.msra.mxu0 %v2386
      %2646 = vmatprep.subr.bf16.mxu0 %v2389
      %2647 = vmatpush1.bf16.msra.mxu0 %v2388
      %2648 = vmatprep.mubr.bf16.mxu0 %v2613
      %2649 = vmatmul.mubr.bf16.gmra.mrb[0].mxu0 %v2612
      %v2650 = vpop.f32.mrb[0].mxu0
      %v2651 = vadd.f32 0.0, %v2650
      %v2652 = vpop.f32.mrb[0].mxu0
      %v2653 = vadd.f32 0.0, %v2652
      %v2654 = vpop.f32.mrb[0].mxu0
      %v2655 = vpop.f32.mrb[0].mxu0
      %2656 = vdwg.mxu0
      %v2657 = vadd.f32 %v2610, %v2651
      %v2658 = vadd.f32 %v2611, %v2653
      %v2659 = vadd.f32 %v2657, %v2470
      %v2660 = vadd.f32 %v2658, %v2474
      %v2661 = vmax.f32 %v2659, 0.0
      %v2662 = vmax.f32 %v2660, 0.0
      %v2663 = vpack.c.bf16 %v2661, %v2661
      %v2664 = vpack.c.bf16 %v2662, %v2662
      %2665 = vmatprep.subr.bf16.mxu0 %v1678
      %2666 = vmatpush1.bf16.msra.mxu0 %v1677
      %2667 = vmatprep.subr.bf16.mxu0 %v1680
      %2668 = vmatpush1.bf16.msra.mxu0 %v1679
      %2669 = vmatprep.subr.bf16.mxu0 %v1682
      %2670 = vmatpush1.bf16.msra.mxu0 %v1681
      %2671 = vmatprep.subr.bf16.mxu0 %v1684
      %2672 = vmatpush1.bf16.msra.mxu0 %v1683
      %2673 = vmatprep.subr.bf16.mxu0 %v1686
      %2674 = vmatpush1.bf16.msra.mxu0 %v1685
      %2675 = vmatprep.subr.bf16.mxu0 %v1688
      %2676 = vmatpush1.bf16.msra.mxu0 %v1687
      %2677 = vmatprep.subr.bf16.mxu0 %v1690
      %2678 = vmatpush1.bf16.msra.mxu0 %v1689
      %2679 = vmatprep.subr.bf16.mxu0 %v1692
      %2680 = vmatpush1.bf16.msra.mxu0 %v1691
      %2681 = vmatprep.subr.bf16.mxu0 %v1694
      %2682 = vmatpush1.bf16.msra.mxu0 %v1693
      %2683 = vmatprep.subr.bf16.mxu0 %v1696
      %2684 = vmatpush1.bf16.msra.mxu0 %v1695
      %2685 = vmatprep.subr.bf16.mxu0 %v1698
      %2686 = vmatpush1.bf16.msra.mxu0 %v1697
      %2687 = vmatprep.subr.bf16.mxu0 %v1700
      %2688 = vmatpush1.bf16.msra.mxu0 %v1699
      %2689 = vmatprep.subr.bf16.mxu0 %v1702
      %2690 = vmatpush1.bf16.msra.mxu0 %v1701
      %2691 = vmatprep.subr.bf16.mxu0 %v1704
      %2692 = vmatpush1.bf16.msra.mxu0 %v1703
      %2693 = vmatprep.subr.bf16.mxu0 %v1706
      %2694 = vmatpush1.bf16.msra.mxu0 %v1705
      %2695 = vmatprep.subr.bf16.mxu0 %v1708
      %2696 = vmatpush1.bf16.msra.mxu0 %v1707
      %2697 = vmatprep.mubr.bf16.mxu0 %v2613
      %2698 = vmatmul.mubr.bf16.gmra.mrb[0].mxu0 %v2612
      %v2699 = vpop.f32.mrb[0].mxu0
      %v2700 = vadd.f32 0.0, %v2699
      %v2701 = vpop.f32.mrb[0].mxu0
      %v2702 = vadd.f32 0.0, %v2701
      %v2703 = vpop.f32.mrb[0].mxu0
      %v2704 = vpop.f32.mrb[0].mxu0
      %2705 = vdwg.mxu0
      %2706 = vmatprep.subr.bf16.mxu0 %v1879
      %2707 = vmatpush1.bf16.msra.mxu0 %v1878
      %2708 = vmatprep.subr.bf16.mxu0 %v1881
      %2709 = vmatpush1.bf16.msra.mxu0 %v1880
      %2710 = vmatprep.subr.bf16.mxu0 %v1883
      %2711 = vmatpush1.bf16.msra.mxu0 %v1882
      %2712 = vmatprep.subr.bf16.mxu0 %v1885
      %2713 = vmatpush1.bf16.msra.mxu0 %v1884
      %2714 = vmatprep.subr.bf16.mxu0 %v1887
      %2715 = vmatpush1.bf16.msra.mxu0 %v1886
      %2716 = vmatprep.subr.bf16.mxu0 %v1889
      %2717 = vmatpush1.bf16.msra.mxu0 %v1888
      %2718 = vmatprep.subr.bf16.mxu0 %v1891
      %2719 = vmatpush1.bf16.msra.mxu0 %v1890
      %2720 = vmatprep.subr.bf16.mxu0 %v1893
      %2721 = vmatpush1.bf16.msra.mxu0 %v1892
      %2722 = vmatprep.subr.bf16.mxu0 %v1895
      %2723 = vmatpush1.bf16.msra.mxu0 %v1894
      %2724 = vmatprep.subr.bf16.mxu0 %v1897
      %2725 = vmatpush1.bf16.msra.mxu0 %v1896
      %2726 = vmatprep.subr.bf16.mxu0 %v1899
      %2727 = vmatpush1.bf16.msra.mxu0 %v1898
      %2728 = vmatprep.subr.bf16.mxu0 %v1901
      %2729 = vmatpush1.bf16.msra.mxu0 %v1900
      %2730 = vmatprep.subr.bf16.mxu0 %v1903
      %2731 = vmatpush1.bf16.msra.mxu0 %v1902
      %2732 = vmatprep.subr.bf16.mxu0 %v1905
      %2733 = vmatpush1.bf16.msra.mxu0 %v1904
      %2734 = vmatprep.subr.bf16.mxu0 %v1907
      %2735 = vmatpush1.bf16.msra.mxu0 %v1906
      %2736 = vmatprep.subr.bf16.mxu0 %v1909
      %2737 = vmatpush1.bf16.msra.mxu0 %v1908
      %2738 = vmatprep.mubr.bf16.mxu0 %v2566
      %2739 = vmatmul.mubr.bf16.gmra.mrb[0].mxu0 %v2565
      %v2740 = vpop.f32.mrb[0].mxu0
      %v2741 = vadd.f32 %v2700, %v2740
      %v2742 = vpop.f32.mrb[0].mxu0
      %v2743 = vadd.f32 %v2702, %v2742
      %v2744 = vpop.f32.mrb[0].mxu0
      %v2745 = vpop.f32.mrb[0].mxu0
      %2746 = vdwg.mxu0
      %v2747 = vrot.slane %v1506, 3
      %v2748 = vrot.slane %v1507, 3
      %2751 = vmatprep.subr.bf16.mxu0 %v2119
      %2752 = vmatpush1.bf16.msra.mxu0 %v2118
      %2753 = vmatprep.subr.bf16.mxu0 %v2121
      %2754 = vmatpush1.bf16.msra.mxu0 %v2120
      %2755 = vmatprep.subr.bf16.mxu0 %v2123
      %2756 = vmatpush1.bf16.msra.mxu0 %v2122
      %2757 = vmatprep.subr.bf16.mxu0 %v2125
      %2758 = vmatpush1.bf16.msra.mxu0 %v2124
      %2759 = vmatprep.subr.bf16.mxu0 %v2127
      %2760 = vmatpush1.bf16.msra.mxu0 %v2126
      %2761 = vmatprep.subr.bf16.mxu0 %v2129
      %2762 = vmatpush1.bf16.msra.mxu0 %v2128
      %2763 = vmatprep.subr.bf16.mxu0 %v2131
      %2764 = vmatpush1.bf16.msra.mxu0 %v2130
      %2765 = vmatprep.subr.bf16.mxu0 %v2133
      %2766 = vmatpush1.bf16.msra.mxu0 %v2132
      %2767 = vmatprep.subr.bf16.mxu0 %v2135
      %2768 = vmatpush1.bf16.msra.mxu0 %v2134
      %2769 = vmatprep.subr.bf16.mxu0 %v2137
      %2770 = vmatpush1.bf16.msra.mxu0 %v2136
      %2771 = vmatprep.subr.bf16.mxu0 %v2139
      %2772 = vmatpush1.bf16.msra.mxu0 %v2138
      %2773 = vmatprep.subr.bf16.mxu0 %v2141
      %2774 = vmatpush1.bf16.msra.mxu0 %v2140
      %2775 = vmatprep.subr.bf16.mxu0 %v2143
      %2776 = vmatpush1.bf16.msra.mxu0 %v2142
      %2777 = vmatprep.subr.bf16.mxu0 %v2145
      %2778 = vmatpush1.bf16.msra.mxu0 %v2144
      %2779 = vmatprep.subr.bf16.mxu0 %v2147
      %2780 = vmatpush1.bf16.msra.mxu0 %v2146
      %2781 = vmatprep.subr.bf16.mxu0 %v2149
      %2782 = vmatpush1.bf16.msra.mxu0 %v2148
      %2783 = vmatprep.mubr.bf16.mxu0 %v2748
      %2784 = vmatmul.mubr.bf16.gmra.mrb[0].mxu0 %v2747
      %v2785 = vpop.f32.mrb[0].mxu0
      %v2786 = vadd.f32 0.0, %v2785
      %v2787 = vpop.f32.mrb[0].mxu0
      %v2788 = vadd.f32 0.0, %v2787
      %v2789 = vpop.f32.mrb[0].mxu0
      %v2790 = vpop.f32.mrb[0].mxu0
      %2791 = vdwg.mxu0
      %v2792 = vadd.f32 %v2741, %v2786
      %v2793 = vadd.f32 %v2743, %v2788
      %v2794 = vrot.slane %v1574, 3
      %v2795 = vrot.slane %v1577, 3
      %2798 = vmatprep.subr.bf16.mxu0 %v2359
      %2799 = vmatpush1.bf16.msra.mxu0 %v2358
      %2800 = vmatprep.subr.bf16.mxu0 %v2361
      %2801 = vmatpush1.bf16.msra.mxu0 %v2360
      %2802 = vmatprep.subr.bf16.mxu0 %v2363
      %2803 = vmatpush1.bf16.msra.mxu0 %v2362
      %2804 = vmatprep.subr.bf16.mxu0 %v2365
      %2805 = vmatpush1.bf16.msra.mxu0 %v2364
      %2806 = vmatprep.subr.bf16.mxu0 %v2367
      %2807 = vmatpush1.bf16.msra.mxu0 %v2366
      %2808 = vmatprep.subr.bf16.mxu0 %v2369
      %2809 = vmatpush1.bf16.msra.mxu0 %v2368
      %2810 = vmatprep.subr.bf16.mxu0 %v2371
      %2811 = vmatpush1.bf16.msra.mxu0 %v2370
      %2812 = vmatprep.subr.bf16.mxu0 %v2373
      %2813 = vmatpush1.bf16.msra.mxu0 %v2372
      %2814 = vmatprep.subr.bf16.mxu0 %v2375
      %2815 = vmatpush1.bf16.msra.mxu0 %v2374
      %2816 = vmatprep.subr.bf16.mxu0 %v2377
      %2817 = vmatpush1.bf16.msra.mxu0 %v2376
      %2818 = vmatprep.subr.bf16.mxu0 %v2379
      %2819 = vmatpush1.bf16.msra.mxu0 %v2378
      %2820 = vmatprep.subr.bf16.mxu0 %v2381
      %2821 = vmatpush1.bf16.msra.mxu0 %v2380
      %2822 = vmatprep.subr.bf16.mxu0 %v2383
      %2823 = vmatpush1.bf16.msra.mxu0 %v2382
      %2824 = vmatprep.subr.bf16.mxu0 %v2385
      %2825 = vmatpush1.bf16.msra.mxu0 %v2384
      %2826 = vmatprep.subr.bf16.mxu0 %v2387
      %2827 = vmatpush1.bf16.msra.mxu0 %v2386
      %2828 = vmatprep.subr.bf16.mxu0 %v2389
      %2829 = vmatpush1.bf16.msra.mxu0 %v2388
      %2830 = vmatprep.mubr.bf16.mxu0 %v2795
      %2831 = vmatmul.mubr.bf16.gmra.mrb[0].mxu0 %v2794
      %v2832 = vpop.f32.mrb[0].mxu0
      %v2833 = vadd.f32 0.0, %v2832
      %v2834 = vpop.f32.mrb[0].mxu0
      %v2835 = vadd.f32 0.0, %v2834
      %v2836 = vpop.f32.mrb[0].mxu0
      %v2837 = vpop.f32.mrb[0].mxu0
      %2838 = vdwg.mxu0
      %v2839 = vadd.f32 %v2792, %v2833
      %v2840 = vadd.f32 %v2793, %v2835
      %v2841 = vadd.f32 %v2839, %v2470
      %v2842 = vadd.f32 %v2840, %v2474
      %v2843 = vmax.f32 %v2841, 0.0
      %v2844 = vmax.f32 %v2842, 0.0
      %v2845 = vpack.c.bf16 %v2843, %v2843
      %v2846 = vpack.c.bf16 %v2844, %v2844
      %v2847 = vld [vmem:[%s5] sm:$0xf]
      %v2848 = vld [vmem:[%s5 + $0x4] sm:$0xf]
      %v2849 = vld [vmem:[%s5 + $0x8] sm:$0xf]
      %v2850 = vld [vmem:[%s5 + $0xc] sm:$0xf]
      %v2851 = vld [vmem:[%s5 + $0x10] sm:$0xf]
      %v2852 = vld [vmem:[%s5 + $0x14] sm:$0xf]
      %v2853 = vld [vmem:[%s5 + $0x18] sm:$0xf]
      %v2854 = vld [vmem:[%s5 + $0x1c] sm:$0xf]
      %v2855 = vld [vmem:[%s5 + $0x20] sm:$0xf]
      %v2856 = vld [vmem:[%s5 + $0x24] sm:$0xf]
      %v2857 = vld [vmem:[%s5 + $0x28] sm:$0xf]
      %v2858 = vld [vmem:[%s5 + $0x2c] sm:$0xf]
      %v2859 = vld [vmem:[%s5 + $0x30] sm:$0xf]
      %v2860 = vld [vmem:[%s5 + $0x34] sm:$0xf]
      %v2861 = vld [vmem:[%s5 + $0x38] sm:$0xf]
      %v2862 = vld [vmem:[%s5 + $0x3c] sm:$0xf]
      %v2863 = vld [vmem:[%s5 + $0x40] sm:$0xf]
      %v2864 = vld [vmem:[%s5 + $0x44] sm:$0xf]
      %v2865 = vld [vmem:[%s5 + $0x48] sm:$0xf]
      %v2866 = vld [vmem:[%s5 + $0x4c] sm:$0xf]
      %v2867 = vld [vmem:[%s5 + $0x50] sm:$0xf]
      %v2868 = vld [vmem:[%s5 + $0x54] sm:$0xf]
      %v2869 = vld [vmem:[%s5 + $0x58] sm:$0xf]
      %v2870 = vld [vmem:[%s5 + $0x5c] sm:$0xf]
      %s2871 = scalar_lea.vmem %s5, 96
      %v2872 = vld [vmem:[%s2871] sm:$0xf]
      %v2873 = vld [vmem:[%s2871 + $0x4] sm:$0xf]
      %v2874 = vld [vmem:[%s2871 + $0x8] sm:$0xf]
      %v2875 = vld [vmem:[%s2871 + $0xc] sm:$0xf]
      %v2876 = vld [vmem:[%s2871 + $0x10] sm:$0xf]
      %v2877 = vld [vmem:[%s2871 + $0x14] sm:$0xf]
      %v2878 = vld [vmem:[%s2871 + $0x18] sm:$0xf]
      %v2879 = vld [vmem:[%s2871 + $0x1c] sm:$0xf]
      %v2880 = vld [vmem:[%s2871 + $0x20] sm:$0xf]
      %v2881 = vld [vmem:[%s2871 + $0x24] sm:$0xf]
      %v2882 = vld [vmem:[%s2871 + $0x28] sm:$0xf]
      %v2883 = vld [vmem:[%s2871 + $0x2c] sm:$0xf]
      %v2884 = vld [vmem:[%s2871 + $0x30] sm:$0xf]
      %v2885 = vld [vmem:[%s2871 + $0x34] sm:$0xf]
      %v2886 = vld [vmem:[%s2871 + $0x38] sm:$0xf]
      %v2887 = vld [vmem:[%s2871 + $0x3c] sm:$0xf]
      %v2888 = vld [vmem:[%s2871 + $0x40] sm:$0xf]
      %v2889 = vld [vmem:[%s2871 + $0x44] sm:$0xf]
      %v2890 = vld [vmem:[%s2871 + $0x48] sm:$0xf]
      %v2891 = vld [vmem:[%s2871 + $0x4c] sm:$0xf]
      %v2892 = vld [vmem:[%s2871 + $0x50] sm:$0xf]
      %v2893 = vld [vmem:[%s2871 + $0x54] sm:$0xf]
      %v2894 = vld [vmem:[%s2871 + $0x58] sm:$0xf]
      %v2895 = vld [vmem:[%s2871 + $0x5c] sm:$0xf]
      %v2920 = vunpack.c.l.b16 %v2872
      %v2921 = vunpack.c.l.b16 %v2873
      %v2922 = vunpack.c.l.b16 %v2874
      %v2923 = vunpack.c.l.b16 %v2875
      %v2924 = vunpack.c.l.b16 %v2876
      %v2925 = vunpack.c.l.b16 %v2877
      %v2926 = vunpack.c.l.b16 %v2878
      %v2927 = vunpack.c.l.b16 %v2879
      %v2928 = vunpack.c.l.b16 %v2880
      %v2929 = vunpack.c.l.b16 %v2881
      %v2930 = vunpack.c.l.b16 %v2882
      %v2931 = vunpack.c.l.b16 %v2883
      %v2932 = vunpack.c.l.b16 %v2884
      %v2933 = vunpack.c.l.b16 %v2885
      %v2934 = vunpack.c.l.b16 %v2886
      %v2935 = vunpack.c.l.b16 %v2887
      %v2936 = vunpack.c.l.b16 %v2888
      %v2937 = vunpack.c.l.b16 %v2889
      %v2938 = vunpack.c.l.b16 %v2890
      %v2939 = vunpack.c.l.b16 %v2891
      %v2940 = vunpack.c.l.b16 %v2892
      %v2941 = vunpack.c.l.b16 %v2893
      %v2942 = vunpack.c.l.b16 %v2894
      %v2943 = vunpack.c.l.b16 %v2895
      %v2944 = vpack.c.b16 %v2921, %v2920
      %v2945 = vpack.c.b16 %v2923, %v2922
      %v2946 = vpack.c.b16 %v2925, %v2924
      %v2947 = vpack.c.b16 %v2927, %v2926
      %v2948 = vpack.c.b16 %v2929, %v2928
      %v2949 = vpack.c.b16 %v2931, %v2930
      %v2950 = vpack.c.b16 %v2933, %v2932
      %v2951 = vpack.c.b16 %v2935, %v2934
      %v2952 = vpack.c.b16 %v2937, %v2936
      %v2953 = vpack.c.b16 %v2939, %v2938
      %v2954 = vpack.c.b16 %v2941, %v2940
      %v2955 = vpack.c.b16 %v2943, %v2942
      %vm2968 = vcmask 523264
      %v2970 = vsel %vm2968, %v2664, 0
      %2972 = vmatprep.subr.bf16.mxu0 0
      %2973 = vmatpush1.bf16.msra.mxu0 %v2944
      %2974 = vmatprep.subr.bf16.mxu0 0
      %2975 = vmatpush1.bf16.msra.mxu0 %v2945
      %2976 = vmatprep.subr.bf16.mxu0 0
      %2977 = vmatpush1.bf16.msra.mxu0 %v2946
      %2978 = vmatprep.subr.bf16.mxu0 0
      %2979 = vmatpush1.bf16.msra.mxu0 %v2947
      %2980 = vmatprep.subr.bf16.mxu0 0
      %2981 = vmatpush1.bf16.msra.mxu0 %v2948
      %2982 = vmatprep.subr.bf16.mxu0 0
      %2983 = vmatpush1.bf16.msra.mxu0 %v2949
      %2984 = vmatprep.subr.bf16.mxu0 0
      %2985 = vmatpush1.bf16.msra.mxu0 %v2950
      %2986 = vmatprep.subr.bf16.mxu0 0
      %2987 = vmatpush1.bf16.msra.mxu0 %v2951
      %2988 = vmatprep.subr.bf16.mxu0 0
      %2989 = vmatpush1.bf16.msra.mxu0 %v2952
      %2990 = vmatprep.subr.bf16.mxu0 0
      %2991 = vmatpush1.bf16.msra.mxu0 %v2953
      %2992 = vmatprep.subr.bf16.mxu0 0
      %2993 = vmatpush1.bf16.msra.mxu0 %v2954
      %2994 = vmatprep.subr.bf16.mxu0 0
      %2995 = vmatpush1.bf16.msra.mxu0 %v2955
      %2996 = vmatprep.subr.bf16.mxu0 0
      %2997 = vmatpush1.bf16.msra.mxu0 0
      %2998 = vmatprep.subr.bf16.mxu0 0
      %2999 = vmatpush1.bf16.msra.mxu0 0
      %3000 = vmatprep.subr.bf16.mxu0 0
      %3001 = vmatpush1.bf16.msra.mxu0 0
      %3002 = vmatprep.subr.bf16.mxu0 0
      %3003 = vmatpush1.bf16.msra.mxu0 0
      %3004 = vmatprep.mubr.bf16.mxu0 %v2970
      %3005 = vmatmul.mubr.bf16.gmra.mrb[0].mxu0 %v2663
      %v3006 = vpop.f32.mrb[0].mxu0
      %v3007 = vadd.f32 0.0, %v3006
      %v3008 = vpop.f32.mrb[0].mxu0
      %v3009 = vpop.f32.mrb[0].mxu0
      %v3010 = vpop.f32.mrb[0].mxu0
      %3011 = vdwg.mxu0
      %v3036 = vunpack.c.l.b16 %v2847
      %v3037 = vunpack.c.l.b16 %v2848
      %v3038 = vunpack.c.l.b16 %v2849
      %v3039 = vunpack.c.l.b16 %v2850
      %v3040 = vunpack.c.l.b16 %v2851
      %v3041 = vunpack.c.l.b16 %v2852
      %v3042 = vunpack.c.l.b16 %v2853
      %v3043 = vunpack.c.l.b16 %v2854
      %v3044 = vunpack.c.l.b16 %v2855
      %v3045 = vunpack.c.l.b16 %v2856
      %v3046 = vunpack.c.l.b16 %v2857
      %v3047 = vunpack.c.l.b16 %v2858
      %v3048 = vunpack.c.l.b16 %v2859
      %v3049 = vunpack.c.l.b16 %v2860
      %v3050 = vunpack.c.l.b16 %v2861
      %v3051 = vunpack.c.l.b16 %v2862
      %v3052 = vunpack.c.l.b16 %v2863
      %v3053 = vunpack.c.l.b16 %v2864
      %v3054 = vunpack.c.l.b16 %v2865
      %v3055 = vunpack.c.l.b16 %v2866
      %v3056 = vunpack.c.l.b16 %v2867
      %v3057 = vunpack.c.l.b16 %v2868
      %v3058 = vunpack.c.l.b16 %v2869
      %v3059 = vunpack.c.l.b16 %v2870
      %v3060 = vpack.c.b16 %v3037, %v3036
      %v3061 = vpack.c.b16 %v3039, %v3038
      %v3062 = vpack.c.b16 %v3041, %v3040
      %v3063 = vpack.c.b16 %v3043, %v3042
      %v3064 = vpack.c.b16 %v3045, %v3044
      %v3065 = vpack.c.b16 %v3047, %v3046
      %v3066 = vpack.c.b16 %v3049, %v3048
      %v3067 = vpack.c.b16 %v3051, %v3050
      %v3068 = vpack.c.b16 %v3053, %v3052
      %v3069 = vpack.c.b16 %v3055, %v3054
      %v3070 = vpack.c.b16 %v3057, %v3056
      %v3071 = vpack.c.b16 %v3059, %v3058
      %v3085 = vsel %vm2968, %v2482, 0
      %3087 = vmatprep.subr.bf16.mxu0 0
      %3088 = vmatpush1.bf16.msra.mxu0 %v3060
      %3089 = vmatprep.subr.bf16.mxu0 0
      %3090 = vmatpush1.bf16.msra.mxu0 %v3061
      %3091 = vmatprep.subr.bf16.mxu0 0
      %3092 = vmatpush1.bf16.msra.mxu0 %v3062
      %3093 = vmatprep.subr.bf16.mxu0 0
      %3094 = vmatpush1.bf16.msra.mxu0 %v3063
      %3095 = vmatprep.subr.bf16.mxu0 0
      %3096 = vmatpush1.bf16.msra.mxu0 %v3064
      %3097 = vmatprep.subr.bf16.mxu0 0
      %3098 = vmatpush1.bf16.msra.mxu0 %v3065
      %3099 = vmatprep.subr.bf16.mxu0 0
      %3100 = vmatpush1.bf16.msra.mxu0 %v3066
      %3101 = vmatprep.subr.bf16.mxu0 0
      %3102 = vmatpush1.bf16.msra.mxu0 %v3067
      %3103 = vmatprep.subr.bf16.mxu0 0
      %3104 = vmatpush1.bf16.msra.mxu0 %v3068
      %3105 = vmatprep.subr.bf16.mxu0 0
      %3106 = vmatpush1.bf16.msra.mxu0 %v3069
      %3107 = vmatprep.subr.bf16.mxu0 0
      %3108 = vmatpush1.bf16.msra.mxu0 %v3070
      %3109 = vmatprep.subr.bf16.mxu0 0
      %3110 = vmatpush1.bf16.msra.mxu0 %v3071
      %3111 = vmatprep.subr.bf16.mxu0 0
      %3112 = vmatpush1.bf16.msra.mxu0 0
      %3113 = vmatprep.subr.bf16.mxu0 0
      %3114 = vmatpush1.bf16.msra.mxu0 0
      %3115 = vmatprep.subr.bf16.mxu0 0
      %3116 = vmatpush1.bf16.msra.mxu0 0
      %3117 = vmatprep.subr.bf16.mxu0 0
      %3118 = vmatpush1.bf16.msra.mxu0 0
      %3119 = vmatprep.mubr.bf16.mxu0 %v3085
      %3120 = vmatmul.mubr.bf16.gmra.mrb[0].mxu0 %v2481
      %v3121 = vpop.f32.mrb[0].mxu0
      %v3122 = vadd.f32 %v3007, %v3121
      %v3123 = vpop.f32.mrb[0].mxu0
      %v3124 = vpop.f32.mrb[0].mxu0
      %v3125 = vpop.f32.mrb[0].mxu0
      %3126 = vdwg.mxu0
      %s3127 = scalar_lea.vmem %s5, 192
      %v3128 = vld [vmem:[%s3127] sm:$0xf]
      %v3129 = vld [vmem:[%s3127 + $0x4] sm:$0xf]
      %v3130 = vld [vmem:[%s3127 + $0x8] sm:$0xf]
      %v3131 = vld [vmem:[%s3127 + $0xc] sm:$0xf]
      %v3132 = vld [vmem:[%s3127 + $0x10] sm:$0xf]
      %v3133 = vld [vmem:[%s3127 + $0x14] sm:$0xf]
      %v3134 = vld [vmem:[%s3127 + $0x18] sm:$0xf]
      %v3135 = vld [vmem:[%s3127 + $0x1c] sm:$0xf]
      %v3136 = vld [vmem:[%s3127 + $0x20] sm:$0xf]
      %v3137 = vld [vmem:[%s3127 + $0x24] sm:$0xf]
      %v3138 = vld [vmem:[%s3127 + $0x28] sm:$0xf]
      %v3139 = vld [vmem:[%s3127 + $0x2c] sm:$0xf]
      %v3140 = vld [vmem:[%s3127 + $0x30] sm:$0xf]
      %v3141 = vld [vmem:[%s3127 + $0x34] sm:$0xf]
      %v3142 = vld [vmem:[%s3127 + $0x38] sm:$0xf]
      %v3143 = vld [vmem:[%s3127 + $0x3c] sm:$0xf]
      %v3144 = vld [vmem:[%s3127 + $0x40] sm:$0xf]
      %v3145 = vld [vmem:[%s3127 + $0x44] sm:$0xf]
      %v3146 = vld [vmem:[%s3127 + $0x48] sm:$0xf]
      %v3147 = vld [vmem:[%s3127 + $0x4c] sm:$0xf]
      %v3148 = vld [vmem:[%s3127 + $0x50] sm:$0xf]
      %v3149 = vld [vmem:[%s3127 + $0x54] sm:$0xf]
      %v3150 = vld [vmem:[%s3127 + $0x58] sm:$0xf]
      %v3151 = vld [vmem:[%s3127 + $0x5c] sm:$0xf]
      %v3176 = vunpack.c.l.b16 %v3128
      %v3177 = vunpack.c.l.b16 %v3129
      %v3178 = vunpack.c.l.b16 %v3130
      %v3179 = vunpack.c.l.b16 %v3131
      %v3180 = vunpack.c.l.b16 %v3132
      %v3181 = vunpack.c.l.b16 %v3133
      %v3182 = vunpack.c.l.b16 %v3134
      %v3183 = vunpack.c.l.b16 %v3135
      %v3184 = vunpack.c.l.b16 %v3136
      %v3185 = vunpack.c.l.b16 %v3137
      %v3186 = vunpack.c.l.b16 %v3138
      %v3187 = vunpack.c.l.b16 %v3139
      %v3188 = vunpack.c.l.b16 %v3140
      %v3189 = vunpack.c.l.b16 %v3141
      %v3190 = vunpack.c.l.b16 %v3142
      %v3191 = vunpack.c.l.b16 %v3143
      %v3192 = vunpack.c.l.b16 %v3144
      %v3193 = vunpack.c.l.b16 %v3145
      %v3194 = vunpack.c.l.b16 %v3146
      %v3195 = vunpack.c.l.b16 %v3147
      %v3196 = vunpack.c.l.b16 %v3148
      %v3197 = vunpack.c.l.b16 %v3149
      %v3198 = vunpack.c.l.b16 %v3150
      %v3199 = vunpack.c.l.b16 %v3151
      %v3200 = vpack.c.b16 %v3177, %v3176
      %v3201 = vpack.c.b16 %v3179, %v3178
      %v3202 = vpack.c.b16 %v3181, %v3180
      %v3203 = vpack.c.b16 %v3183, %v3182
      %v3204 = vpack.c.b16 %v3185, %v3184
      %v3205 = vpack.c.b16 %v3187, %v3186
      %v3206 = vpack.c.b16 %v3189, %v3188
      %v3207 = vpack.c.b16 %v3191, %v3190
      %v3208 = vpack.c.b16 %v3193, %v3192
      %v3209 = vpack.c.b16 %v3195, %v3194
      %v3210 = vpack.c.b16 %v3197, %v3196
      %v3211 = vpack.c.b16 %v3199, %v3198
      %v3225 = vsel %vm2968, %v2846, 0
      %3227 = vmatprep.subr.bf16.mxu0 0
      %3228 = vmatpush1.bf16.msra.mxu0 %v3200
      %3229 = vmatprep.subr.bf16.mxu0 0
      %3230 = vmatpush1.bf16.msra.mxu0 %v3201
      %3231 = vmatprep.subr.bf16.mxu0 0
      %3232 = vmatpush1.bf16.msra.mxu0 %v3202
      %3233 = vmatprep.subr.bf16.mxu0 0
      %3234 = vmatpush1.bf16.msra.mxu0 %v3203
      %3235 = vmatprep.subr.bf16.mxu0 0
      %3236 = vmatpush1.bf16.msra.mxu0 %v3204
      %3237 = vmatprep.subr.bf16.mxu0 0
      %3238 = vmatpush1.bf16.msra.mxu0 %v3205
      %3239 = vmatprep.subr.bf16.mxu0 0
      %3240 = vmatpush1.bf16.msra.mxu0 %v3206
      %3241 = vmatprep.subr.bf16.mxu0 0
      %3242 = vmatpush1.bf16.msra.mxu0 %v3207
      %3243 = vmatprep.subr.bf16.mxu0 0
      %3244 = vmatpush1.bf16.msra.mxu0 %v3208
      %3245 = vmatprep.subr.bf16.mxu0 0
      %3246 = vmatpush1.bf16.msra.mxu0 %v3209
      %3247 = vmatprep.subr.bf16.mxu0 0
      %3248 = vmatpush1.bf16.msra.mxu0 %v3210
      %3249 = vmatprep.subr.bf16.mxu0 0
      %3250 = vmatpush1.bf16.msra.mxu0 %v3211
      %3251 = vmatprep.subr.bf16.mxu0 0
      %3252 = vmatpush1.bf16.msra.mxu0 0
      %3253 = vmatprep.subr.bf16.mxu0 0
      %3254 = vmatpush1.bf16.msra.mxu0 0
      %3255 = vmatprep.subr.bf16.mxu0 0
      %3256 = vmatpush1.bf16.msra.mxu0 0
      %3257 = vmatprep.subr.bf16.mxu0 0
      %3258 = vmatpush1.bf16.msra.mxu0 0
      %3259 = vmatprep.mubr.bf16.mxu0 %v3225
      %3260 = vmatmul.mubr.bf16.gmra.mrb[0].mxu0 %v2845
      %v3261 = vpop.f32.mrb[0].mxu0
      %v3262 = vadd.f32 0.0, %v3261
      %v3263 = vpop.f32.mrb[0].mxu0
      %v3264 = vpop.f32.mrb[0].mxu0
      %v3265 = vpop.f32.mrb[0].mxu0
      %3266 = vdwg.mxu0
      %v3267 = vadd.f32 %v3122, %v3262
      %v3268 = vld [vmem:[%s6] sm:$0x1]
      %v3269 = vadd.f32 %v3267, %v3268
      %v3270 = vmax.f32 %v3269, 0.0
      %v3271 = vpack.c.bf16 %v3270, %v3270
      %v3272 = vld [vmem:[%s7] sm:$0xff]
      %v3273 = vld [vmem:[%s7 + $0x8] sm:$0xff]
      %v3274 = vld [vmem:[%s7 + $0x10] sm:$0xff]
      %v3275 = vld [vmem:[%s7 + $0x18] sm:$0xff]
      %v3276 = vld [vmem:[%s7 + $0x20] sm:$0xff]
      %v3277 = vld [vmem:[%s7 + $0x28] sm:$0xff]
      %v3278 = vld [vmem:[%s7 + $0x30] sm:$0xff]
      %v3279 = vld [vmem:[%s7 + $0x38] sm:$0xff]
      %v3280 = vld [vmem:[%s7 + $0x40] sm:$0xff]
      %v3281 = vld [vmem:[%s7 + $0x48] sm:$0xff]
      %v3282 = vld [vmem:[%s7 + $0x50] sm:$0xff]
      %v3283 = vld [vmem:[%s7 + $0x58] sm:$0xff]
      %v3284 = vld [vmem:[%s7 + $0x60] sm:$0xff]
      %v3285 = vld [vmem:[%s7 + $0x68] sm:$0xff]
      %v3286 = vld [vmem:[%s7 + $0x70] sm:$0xff]
      %v3287 = vld [vmem:[%s7 + $0x78] sm:$0xff]
      %v3288 = vld [vmem:[%s8] sm:$0xf]
      %v3305 = vunpack.c.l.b16 %v3272
      %v3306 = vunpack.c.h.b16 %v3272
      %v3307 = vunpack.c.l.b16 %v3273
      %v3308 = vunpack.c.h.b16 %v3273
      %v3309 = vunpack.c.l.b16 %v3274
      %v3310 = vunpack.c.h.b16 %v3274
      %v3311 = vunpack.c.l.b16 %v3275
      %v3312 = vunpack.c.h.b16 %v3275
      %v3313 = vunpack.c.l.b16 %v3276
      %v3314 = vunpack.c.h.b16 %v3276
      %v3315 = vunpack.c.l.b16 %v3277
      %v3316 = vunpack.c.h.b16 %v3277
      %v3317 = vunpack.c.l.b16 %v3278
      %v3318 = vunpack.c.h.b16 %v3278
      %v3319 = vunpack.c.l.b16 %v3279
      %v3320 = vunpack.c.h.b16 %v3279
      %v3321 = vunpack.c.l.b16 %v3280
      %v3322 = vunpack.c.h.b16 %v3280
      %v3323 = vunpack.c.l.b16 %v3281
      %v3324 = vunpack.c.h.b16 %v3281
      %v3325 = vunpack.c.l.b16 %v3282
      %v3326 = vunpack.c.h.b16 %v3282
      %v3327 = vunpack.c.l.b16 %v3283
      %v3328 = vunpack.c.h.b16 %v3283
      %v3329 = vunpack.c.l.b16 %v3284
      %v3330 = vunpack.c.h.b16 %v3284
      %v3331 = vunpack.c.l.b16 %v3285
      %v3332 = vunpack.c.h.b16 %v3285
      %v3333 = vunpack.c.l.b16 %v3286
      %v3334 = vunpack.c.h.b16 %v3286
      %v3335 = vunpack.c.l.b16 %v3287
      %v3336 = vunpack.c.h.b16 %v3287
      %v3337 = vpack.c.b16 %v3309, %v3305
      %v3338 = vpack.c.b16 %v3310, %v3306
      %v3339 = vpack.c.b16 %v3311, %v3307
      %v3340 = vpack.c.b16 %v3312, %v3308
      %v3341 = vpack.c.b16 %v3317, %v3313
      %v3342 = vpack.c.b16 %v3318, %v3314
      %v3343 = vpack.c.b16 %v3319, %v3315
      %v3344 = vpack.c.b16 %v3320, %v3316
      %v3345 = vpack.c.b16 %v3325, %v3321
      %v3346 = vpack.c.b16 %v3326, %v3322
      %v3347 = vpack.c.b16 %v3327, %v3323
      %v3348 = vpack.c.b16 %v3328, %v3324
      %v3349 = vpack.c.b16 %v3333, %v3329
      %v3350 = vpack.c.b16 %v3334, %v3330
      %v3351 = vpack.c.b16 %v3335, %v3331
      %v3352 = vpack.c.b16 %v3336, %v3332
      %v3370 = vlaneseq
      %v3371 = vshrl.u32 %v3370, 7
      %v3372 = vsub.s32 0, %v3371
      %v3373 = vrot.slane %v3288, %v3372
      %v3374 = vlaneseq
      %v3375 = vshrl.u32 %v3374, 7
      %v3376 = vsub.s32 1, %v3375
      %v3377 = vrot.slane %v3288, %v3376
      %v3378 = vlaneseq
      %v3379 = vshrl.u32 %v3378, 7
      %v3380 = vsub.s32 2, %v3379
      %v3381 = vrot.slane %v3288, %v3380
      %v3382 = vlaneseq
      %v3383 = vshrl.u32 %v3382, 7
      %v3384 = vsub.s32 3, %v3383
      %v3385 = vrot.slane %v3288, %v3384
      %v3391 = vsel %vm2968, %v3271, 0
      %3393 = vmatprep.subr.bf16.mxu0 %v3338
      %3394 = vmatpush1.bf16.msra.mxu0 %v3337
      %3395 = vmatprep.subr.bf16.mxu0 %v3342
      %3396 = vmatpush1.bf16.msra.mxu0 %v3341
      %3397 = vmatprep.subr.bf16.mxu0 %v3346
      %3398 = vmatpush1.bf16.msra.mxu0 %v3345
      %3399 = vmatprep.subr.bf16.mxu0 %v3350
      %3400 = vmatpush1.bf16.msra.mxu0 %v3349
      %3401 = vmatprep.subr.bf16.mxu0 0
      %3402 = vmatpush1.bf16.msra.mxu0 0
      %3403 = vmatprep.subr.bf16.mxu0 0
      %3404 = vmatpush1.bf16.msra.mxu0 0
      %3405 = vmatprep.subr.bf16.mxu0 0
      %3406 = vmatpush1.bf16.msra.mxu0 0
      %3407 = vmatprep.subr.bf16.mxu0 0
      %3408 = vmatpush1.bf16.msra.mxu0 0
      %3409 = vmatprep.subr.bf16.mxu0 0
      %3410 = vmatpush1.bf16.msra.mxu0 0
      %3411 = vmatprep.subr.bf16.mxu0 0
      %3412 = vmatpush1.bf16.msra.mxu0 0
      %3413 = vmatprep.subr.bf16.mxu0 0
      %3414 = vmatpush1.bf16.msra.mxu0 0
      %3415 = vmatprep.subr.bf16.mxu0 0
      %3416 = vmatpush1.bf16.msra.mxu0 0
      %3417 = vmatprep.subr.bf16.mxu0 0
      %3418 = vmatpush1.bf16.msra.mxu0 0
      %3419 = vmatprep.subr.bf16.mxu0 0
      %3420 = vmatpush1.bf16.msra.mxu0 0
      %3421 = vmatprep.subr.bf16.mxu0 0
      %3422 = vmatpush1.bf16.msra.mxu0 0
      %3423 = vmatprep.subr.bf16.mxu0 0
      %3424 = vmatpush1.bf16.msra.mxu0 0
      %3425 = vmatprep.mubr.bf16.mxu0 0
      %3426 = vmatmul.mubr.bf16.gmra.mrb[0].mxu0 %v3391
      %v3427 = vpop.f32.mrb[0].mxu0
      %v3428 = vadd.f32 %v3373, %v3427
      %v3429 = vpop.f32.mrb[0].mxu0
      %v3430 = vadd.f32 %v3377, %v3429
      %v3431 = vpop.f32.mrb[0].mxu0
      %v3432 = vpop.f32.mrb[0].mxu0
      %3433 = vdwg.mxu0
      %3434 = vmatprep.subr.bf16.mxu0 %v3340
      %3435 = vmatpush1.bf16.msra.mxu0 %v3339
      %3436 = vmatprep.subr.bf16.mxu0 %v3344
      %3437 = vmatpush1.bf16.msra.mxu0 %v3343
      %3438 = vmatprep.subr.bf16.mxu0 %v3348
      %3439 = vmatpush1.bf16.msra.mxu0 %v3347
      %3440 = vmatprep.subr.bf16.mxu0 %v3352
      %3441 = vmatpush1.bf16.msra.mxu0 %v3351
      %3442 = vmatprep.subr.bf16.mxu0 0
      %3443 = vmatpush1.bf16.msra.mxu0 0
      %3444 = vmatprep.subr.bf16.mxu0 0
      %3445 = vmatpush1.bf16.msra.mxu0 0
      %3446 = vmatprep.subr.bf16.mxu0 0
      %3447 = vmatpush1.bf16.msra.mxu0 0
      %3448 = vmatprep.subr.bf16.mxu0 0
      %3449 = vmatpush1.bf16.msra.mxu0 0
      %3450 = vmatprep.subr.bf16.mxu0 0
      %3451 = vmatpush1.bf16.msra.mxu0 0
      %3452 = vmatprep.subr.bf16.mxu0 0
      %3453 = vmatpush1.bf16.msra.mxu0 0
      %3454 = vmatprep.subr.bf16.mxu0 0
      %3455 = vmatpush1.bf16.msra.mxu0 0
      %3456 = vmatprep.subr.bf16.mxu0 0
      %3457 = vmatpush1.bf16.msra.mxu0 0
      %3458 = vmatprep.subr.bf16.mxu0 0
      %3459 = vmatpush1.bf16.msra.mxu0 0
      %3460 = vmatprep.subr.bf16.mxu0 0
      %3461 = vmatpush1.bf16.msra.mxu0 0
      %3462 = vmatprep.subr.bf16.mxu0 0
      %3463 = vmatpush1.bf16.msra.mxu0 0
      %3464 = vmatprep.subr.bf16.mxu0 0
      %3465 = vmatpush1.bf16.msra.mxu0 0
      %3466 = vmatprep.mubr.bf16.mxu0 0
      %3467 = vmatmul.mubr.bf16.gmra.mrb[0].mxu0 %v3391
      %v3468 = vpop.f32.mrb[0].mxu0
      %v3469 = vadd.f32 %v3381, %v3468
      %v3470 = vpop.f32.mrb[0].mxu0
      %v3471 = vadd.f32 %v3385, %v3470
      %v3472 = vpop.f32.mrb[0].mxu0
      %v3473 = vpop.f32.mrb[0].mxu0
      %3474 = vdwg.mxu0
      %v3475 = vmax.f32 %v3428, 0.0
      %v3476 = vmax.f32 %v3430, 0.0
      %v3477 = vmax.f32 %v3469, 0.0
      %v3478 = vmax.f32 %v3471, 0.0
      %v3479 = vpack.c.bf16 %v3475, %v3475
      %v3480 = vpack.c.bf16 %v3476, %v3476
      %v3481 = vpack.c.bf16 %v3477, %v3477
      %v3482 = vpack.c.bf16 %v3478, %v3478
      %v3483 = vld [vmem:[%s9] sm:$0xf]
      %v3484 = vld [vmem:[%s9 + $0x4] sm:$0xf]
      %v3485 = vld [vmem:[%s9 + $0x8] sm:$0xf]
      %v3486 = vld [vmem:[%s9 + $0xc] sm:$0xf]
      %v3487 = vld [vmem:[%s9 + $0x10] sm:$0xf]
      %v3488 = vld [vmem:[%s9 + $0x14] sm:$0xf]
      %v3489 = vld [vmem:[%s9 + $0x18] sm:$0xf]
      %v3490 = vld [vmem:[%s9 + $0x1c] sm:$0xf]
      %v3491 = vld [vmem:[%s9 + $0x20] sm:$0xf]
      %v3492 = vld [vmem:[%s9 + $0x24] sm:$0xf]
      %v3493 = vld [vmem:[%s9 + $0x28] sm:$0xf]
      %v3494 = vld [vmem:[%s9 + $0x2c] sm:$0xf]
      %v3495 = vld [vmem:[%s9 + $0x30] sm:$0xf]
      %v3496 = vld [vmem:[%s9 + $0x34] sm:$0xf]
      %v3497 = vld [vmem:[%s9 + $0x38] sm:$0xf]
      %v3498 = vld [vmem:[%s9 + $0x3c] sm:$0xf]
      %v3499 = vld [vmem:[%s9 + $0x40] sm:$0xf]
      %v3500 = vld [vmem:[%s9 + $0x44] sm:$0xf]
      %v3501 = vld [vmem:[%s9 + $0x48] sm:$0xf]
      %v3502 = vld [vmem:[%s9 + $0x4c] sm:$0xf]
      %v3503 = vld [vmem:[%s9 + $0x50] sm:$0xf]
      %v3504 = vld [vmem:[%s9 + $0x54] sm:$0xf]
      %v3505 = vld [vmem:[%s9 + $0x58] sm:$0xf]
      %v3506 = vld [vmem:[%s9 + $0x5c] sm:$0xf]
      %v3507 = vld [vmem:[%s9 + $0x60] sm:$0xf]
      %v3508 = vld [vmem:[%s9 + $0x64] sm:$0xf]
      %v3509 = vld [vmem:[%s9 + $0x68] sm:$0xf]
      %v3510 = vld [vmem:[%s9 + $0x6c] sm:$0xf]
      %v3511 = vld [vmem:[%s9 + $0x70] sm:$0xf]
      %v3512 = vld [vmem:[%s9 + $0x74] sm:$0xf]
      %v3513 = vld [vmem:[%s9 + $0x78] sm:$0xf]
      %v3514 = vld [vmem:[%s9 + $0x7c] sm:$0xf]
      %v3515 = vld [vmem:[%s9 + $0x80] sm:$0xf]
      %v3516 = vld [vmem:[%s9 + $0x84] sm:$0xf]
      %v3517 = vld [vmem:[%s9 + $0x88] sm:$0xf]
      %v3518 = vld [vmem:[%s9 + $0x8c] sm:$0xf]
      %v3519 = vld [vmem:[%s9 + $0x90] sm:$0xf]
      %v3520 = vld [vmem:[%s9 + $0x94] sm:$0xf]
      %v3521 = vld [vmem:[%s9 + $0x98] sm:$0xf]
      %v3522 = vld [vmem:[%s9 + $0x9c] sm:$0xf]
      %v3523 = vld [vmem:[%s9 + $0xa0] sm:$0xf]
      %v3524 = vld [vmem:[%s9 + $0xa4] sm:$0xf]
      %v3525 = vld [vmem:[%s9 + $0xa8] sm:$0xf]
      %v3526 = vld [vmem:[%s9 + $0xac] sm:$0xf]
      %v3527 = vld [vmem:[%s9 + $0xb0] sm:$0xf]
      %v3528 = vld [vmem:[%s9 + $0xb4] sm:$0xf]
      %v3529 = vld [vmem:[%s9 + $0xb8] sm:$0xf]
      %v3530 = vld [vmem:[%s9 + $0xbc] sm:$0xf]
      %v3531 = vld [vmem:[%s9 + $0xc0] sm:$0xf]
      %v3532 = vld [vmem:[%s9 + $0xc4] sm:$0xf]
      %v3533 = vld [vmem:[%s9 + $0xc8] sm:$0xf]
      %v3534 = vld [vmem:[%s9 + $0xcc] sm:$0xf]
      %v3535 = vld [vmem:[%s9 + $0xd0] sm:$0xf]
      %v3536 = vld [vmem:[%s9 + $0xd4] sm:$0xf]
      %v3537 = vld [vmem:[%s9 + $0xd8] sm:$0xf]
      %v3538 = vld [vmem:[%s9 + $0xdc] sm:$0xf]
      %v3539 = vld [vmem:[%s9 + $0xe0] sm:$0xf]
      %v3540 = vld [vmem:[%s9 + $0xe4] sm:$0xf]
      %v3541 = vld [vmem:[%s9 + $0xe8] sm:$0xf]
      %v3542 = vld [vmem:[%s9 + $0xec] sm:$0xf]
      %v3543 = vld [vmem:[%s9 + $0xf0] sm:$0xf]
      %v3544 = vld [vmem:[%s9 + $0xf4] sm:$0xf]
      %v3545 = vld [vmem:[%s9 + $0xf8] sm:$0xf]
      %v3546 = vld [vmem:[%s9 + $0xfc] sm:$0xf]
      %v3547 = vld [vmem:[%s10] sm:$0x1]
      %v3612 = vunpack.c.l.b16 %v3483
      %v3613 = vunpack.c.l.b16 %v3484
      %v3614 = vunpack.c.l.b16 %v3485
      %v3615 = vunpack.c.l.b16 %v3486
      %v3616 = vunpack.c.l.b16 %v3487
      %v3617 = vunpack.c.l.b16 %v3488
      %v3618 = vunpack.c.l.b16 %v3489
      %v3619 = vunpack.c.l.b16 %v3490
      %v3620 = vunpack.c.l.b16 %v3491
      %v3621 = vunpack.c.l.b16 %v3492
      %v3622 = vunpack.c.l.b16 %v3493
      %v3623 = vunpack.c.l.b16 %v3494
      %v3624 = vunpack.c.l.b16 %v3495
      %v3625 = vunpack.c.l.b16 %v3496
      %v3626 = vunpack.c.l.b16 %v3497
      %v3627 = vunpack.c.l.b16 %v3498
      %v3628 = vunpack.c.l.b16 %v3499
      %v3629 = vunpack.c.l.b16 %v3500
      %v3630 = vunpack.c.l.b16 %v3501
      %v3631 = vunpack.c.l.b16 %v3502
      %v3632 = vunpack.c.l.b16 %v3503
      %v3633 = vunpack.c.l.b16 %v3504
      %v3634 = vunpack.c.l.b16 %v3505
      %v3635 = vunpack.c.l.b16 %v3506
      %v3636 = vunpack.c.l.b16 %v3507
      %v3637 = vunpack.c.l.b16 %v3508
      %v3638 = vunpack.c.l.b16 %v3509
      %v3639 = vunpack.c.l.b16 %v3510
      %v3640 = vunpack.c.l.b16 %v3511
      %v3641 = vunpack.c.l.b16 %v3512
      %v3642 = vunpack.c.l.b16 %v3513
      %v3643 = vunpack.c.l.b16 %v3514
      %v3644 = vunpack.c.l.b16 %v3515
      %v3645 = vunpack.c.l.b16 %v3516
      %v3646 = vunpack.c.l.b16 %v3517
      %v3647 = vunpack.c.l.b16 %v3518
      %v3648 = vunpack.c.l.b16 %v3519
      %v3649 = vunpack.c.l.b16 %v3520
      %v3650 = vunpack.c.l.b16 %v3521
      %v3651 = vunpack.c.l.b16 %v3522
      %v3652 = vunpack.c.l.b16 %v3523
      %v3653 = vunpack.c.l.b16 %v3524
      %v3654 = vunpack.c.l.b16 %v3525
      %v3655 = vunpack.c.l.b16 %v3526
      %v3656 = vunpack.c.l.b16 %v3527
      %v3657 = vunpack.c.l.b16 %v3528
      %v3658 = vunpack.c.l.b16 %v3529
      %v3659 = vunpack.c.l.b16 %v3530
      %v3660 = vunpack.c.l.b16 %v3531
      %v3661 = vunpack.c.l.b16 %v3532
      %v3662 = vunpack.c.l.b16 %v3533
      %v3663 = vunpack.c.l.b16 %v3534
      %v3664 = vunpack.c.l.b16 %v3535
      %v3665 = vunpack.c.l.b16 %v3536
      %v3666 = vunpack.c.l.b16 %v3537
      %v3667 = vunpack.c.l.b16 %v3538
      %v3668 = vunpack.c.l.b16 %v3539
      %v3669 = vunpack.c.l.b16 %v3540
      %v3670 = vunpack.c.l.b16 %v3541
      %v3671 = vunpack.c.l.b16 %v3542
      %v3672 = vunpack.c.l.b16 %v3543
      %v3673 = vunpack.c.l.b16 %v3544
      %v3674 = vunpack.c.l.b16 %v3545
      %v3675 = vunpack.c.l.b16 %v3546
      %v3676 = vpack.c.b16 %v3613, %v3612
      %v3677 = vpack.c.b16 %v3615, %v3614
      %v3678 = vpack.c.b16 %v3617, %v3616
      %v3679 = vpack.c.b16 %v3619, %v3618
      %v3680 = vpack.c.b16 %v3621, %v3620
      %v3681 = vpack.c.b16 %v3623, %v3622
      %v3682 = vpack.c.b16 %v3625, %v3624
      %v3683 = vpack.c.b16 %v3627, %v3626
      %v3684 = vpack.c.b16 %v3629, %v3628
      %v3685 = vpack.c.b16 %v3631, %v3630
      %v3686 = vpack.c.b16 %v3633, %v3632
      %v3687 = vpack.c.b16 %v3635, %v3634
      %v3688 = vpack.c.b16 %v3637, %v3636
      %v3689 = vpack.c.b16 %v3639, %v3638
      %v3690 = vpack.c.b16 %v3641, %v3640
      %v3691 = vpack.c.b16 %v3643, %v3642
      %v3692 = vpack.c.b16 %v3645, %v3644
      %v3693 = vpack.c.b16 %v3647, %v3646
      %v3694 = vpack.c.b16 %v3649, %v3648
      %v3695 = vpack.c.b16 %v3651, %v3650
      %v3696 = vpack.c.b16 %v3653, %v3652
      %v3697 = vpack.c.b16 %v3655, %v3654
      %v3698 = vpack.c.b16 %v3657, %v3656
      %v3699 = vpack.c.b16 %v3659, %v3658
      %v3700 = vpack.c.b16 %v3661, %v3660
      %v3701 = vpack.c.b16 %v3663, %v3662
      %v3702 = vpack.c.b16 %v3665, %v3664
      %v3703 = vpack.c.b16 %v3667, %v3666
      %v3704 = vpack.c.b16 %v3669, %v3668
      %v3705 = vpack.c.b16 %v3671, %v3670
      %v3706 = vpack.c.b16 %v3673, %v3672
      %v3707 = vpack.c.b16 %v3675, %v3674
      %3740 = vmatprep.subr.bf16.mxu0 0
      %3741 = vmatpush1.bf16.msra.mxu0 %v3676
      %3742 = vmatprep.subr.bf16.mxu0 0
      %3743 = vmatpush1.bf16.msra.mxu0 %v3677
      %3744 = vmatprep.subr.bf16.mxu0 0
      %3745 = vmatpush1.bf16.msra.mxu0 %v3678
      %3746 = vmatprep.subr.bf16.mxu0 0
      %3747 = vmatpush1.bf16.msra.mxu0 %v3679
      %3748 = vmatprep.subr.bf16.mxu0 0
      %3749 = vmatpush1.bf16.msra.mxu0 %v3680
      %3750 = vmatprep.subr.bf16.mxu0 0
      %3751 = vmatpush1.bf16.msra.mxu0 %v3681
      %3752 = vmatprep.subr.bf16.mxu0 0
      %3753 = vmatpush1.bf16.msra.mxu0 %v3682
      %3754 = vmatprep.subr.bf16.mxu0 0
      %3755 = vmatpush1.bf16.msra.mxu0 %v3683
      %3756 = vmatprep.subr.bf16.mxu0 0
      %3757 = vmatpush1.bf16.msra.mxu0 %v3684
      %3758 = vmatprep.subr.bf16.mxu0 0
      %3759 = vmatpush1.bf16.msra.mxu0 %v3685
      %3760 = vmatprep.subr.bf16.mxu0 0
      %3761 = vmatpush1.bf16.msra.mxu0 %v3686
      %3762 = vmatprep.subr.bf16.mxu0 0
      %3763 = vmatpush1.bf16.msra.mxu0 %v3687
      %3764 = vmatprep.subr.bf16.mxu0 0
      %3765 = vmatpush1.bf16.msra.mxu0 %v3688
      %3766 = vmatprep.subr.bf16.mxu0 0
      %3767 = vmatpush1.bf16.msra.mxu0 %v3689
      %3768 = vmatprep.subr.bf16.mxu0 0
      %3769 = vmatpush1.bf16.msra.mxu0 %v3690
      %3770 = vmatprep.subr.bf16.mxu0 0
      %3771 = vmatpush1.bf16.msra.mxu0 %v3691
      %3772 = vmatprep.mubr.bf16.mxu0 %v3480
      %3773 = vmatmul.mubr.bf16.gmra.mrb[0].mxu0 %v3479
      %v3774 = vpop.f32.mrb[0].mxu0
      %v3775 = vadd.f32 %v3547, %v3774
      %v3776 = vpop.f32.mrb[0].mxu0
      %v3777 = vpop.f32.mrb[0].mxu0
      %v3778 = vpop.f32.mrb[0].mxu0
      %3779 = vdwg.mxu0
      %3780 = vmatprep.subr.bf16.mxu0 0
      %3781 = vmatpush1.bf16.msra.mxu0 %v3692
      %3782 = vmatprep.subr.bf16.mxu0 0
      %3783 = vmatpush1.bf16.msra.mxu0 %v3693
      %3784 = vmatprep.subr.bf16.mxu0 0
      %3785 = vmatpush1.bf16.msra.mxu0 %v3694
      %3786 = vmatprep.subr.bf16.mxu0 0
      %3787 = vmatpush1.bf16.msra.mxu0 %v3695
      %3788 = vmatprep.subr.bf16.mxu0 0
      %3789 = vmatpush1.bf16.msra.mxu0 %v3696
      %3790 = vmatprep.subr.bf16.mxu0 0
      %3791 = vmatpush1.bf16.msra.mxu0 %v3697
      %3792 = vmatprep.subr.bf16.mxu0 0
      %3793 = vmatpush1.bf16.msra.mxu0 %v3698
      %3794 = vmatprep.subr.bf16.mxu0 0
      %3795 = vmatpush1.bf16.msra.mxu0 %v3699
      %3796 = vmatprep.subr.bf16.mxu0 0
      %3797 = vmatpush1.bf16.msra.mxu0 %v3700
      %3798 = vmatprep.subr.bf16.mxu0 0
      %3799 = vmatpush1.bf16.msra.mxu0 %v3701
      %3800 = vmatprep.subr.bf16.mxu0 0
      %3801 = vmatpush1.bf16.msra.mxu0 %v3702
      %3802 = vmatprep.subr.bf16.mxu0 0
      %3803 = vmatpush1.bf16.msra.mxu0 %v3703
      %3804 = vmatprep.subr.bf16.mxu0 0
      %3805 = vmatpush1.bf16.msra.mxu0 %v3704
      %3806 = vmatprep.subr.bf16.mxu0 0
      %3807 = vmatpush1.bf16.msra.mxu0 %v3705
      %3808 = vmatprep.subr.bf16.mxu0 0
      %3809 = vmatpush1.bf16.msra.mxu0 %v3706
      %3810 = vmatprep.subr.bf16.mxu0 0
      %3811 = vmatpush1.bf16.msra.mxu0 %v3707
      %3812 = vmatprep.mubr.bf16.mxu0 %v3482
      %3813 = vmatmul.mubr.bf16.gmra.mrb[0].mxu0 %v3481
      %v3814 = vpop.f32.mrb[0].mxu0
      %v3815 = vadd.f32 %v3775, %v3814
      %v3816 = vpop.f32.mrb[0].mxu0
      %v3817 = vpop.f32.mrb[0].mxu0
      %v3818 = vpop.f32.mrb[0].mxu0
      %3819 = vdwg.mxu0
      %v3820 = vlaneseq
      %v3821 = vshrl.u32 %v3820, 7
      %v3822 = vsub.s32 0, %v3821
      %v3823 = vrot.slane %v3815, %v3822
      %3824 = vst [vmem:[%s384] sm:$0xff] %v3823
      %p3825 = scmp.lt.s32.totalorder %s22, 1
      %s3826 = scalar_select %p3825, %s22, 1
      %s3827 = smul.addr %s3826, 8
      %s3828 = scalar_lea.vmem %s11, %s3827
      // Predicated region
      $region65: #{agent_nn_forward.1} parent=63 // pred_check
        %p3829 = pneg %p276
      $region66: #{agent_nn_forward.1} parent=63 // pred_check_branch
        %3831 = sbr.rel (%p3829) target = $region68
      $region67: #{agent_nn_forward.1} parent=63 // pred_region
        _
      $region68: #{agent_nn_forward.1} parent=63 // pred_fallthru
        _
    $region64: #{agent_nn_forward.1} parent=5 // pred_fallthru
      _
    %p3832 = scmp.le.s32.totalorder 2, %s17
    // Predicated region
    $region69: #{agent_nn_forward.1} parent=5 // pred_check
      %p3833 = pneg %p3832
    $region70: #{agent_nn_forward.1} parent=5 // pred_check_branch
      %3835 = sbr.rel (%p3833) target = $region72
    $region71: #{agent_nn_forward.1} parent=5 // pred_region
      %s3836 = ssub.s32 %s17, 2
      // Predicated region
      $region73: #{agent_nn_forward.1} parent=71 // pred_check
        %p3837 = pneg %p282
      $region74: #{agent_nn_forward.1} parent=71 // pred_check_branch
        %3839 = sbr.rel (%p3837) target = $region76
      $region75: #{agent_nn_forward.1} parent=71 // pred_region
        %p3840 = scmp.lt.s32.totalorder %s23, 1
        %s3841 = scalar_select %p3840, %s23, 1
        %s3842 = smul.addr %s3841, 8
        %s3843 = scalar_lea.vmem %s11, %s3842
      $region76: #{agent_nn_forward.1} parent=71 // pred_fallthru
        _
    $region72: #{agent_nn_forward.1} parent=5 // pred_fallthru
      _
  $region6: #{agent_nn_forward.1} parent=0 // loop_footer
    %s21 = sadd.s32 1, %s17
  $region7: #{agent_nn_forward.1} parent=0 // loop_footer_branch
    %16 = sbr.rel target = $region3
  $region8: #{agent_nn_forward.1} parent=0 // loop_exit
    _

</llo_original>
